<compile_context>
chip_gen: v7x
topology: tpu7x:2x2x1
jax: 0.10.0
libtpu: 0.0.40
codegen_flags: <defaults>
</compile_context>

<pallas_src>
import jax
import jax.numpy as jnp
from jax.experimental import pallas as pl
from jax.experimental.pallas import tpu as pltpu

# ---------------- model config ----------------------------------------------
NUM_INPUTS = 3          # e.g. (x, y, t)
NUM_LAYERS = 2          # -> 3 linear layers total
NUM_NEURONS = 128
NUM_OUTPUTS = 1
FOURIER_DIM = 64        # m  -> embedding dim = 2*m = 128
SIGMA_FOURIER = 5.0
MU_RWF = 1.0
SIGMA_RWF = 0.1

BATCH = 512             # demo collocation batch
TILE_B = 256            # lane-dense batch tile (multiple of 128); grid=(2,)

# Set to jnp.bfloat16 on v5e/v6e for higher MXU throughput (f32 accumulation
# kept via preferred_element_type); f32 default preserves exact semantics.
MXU_DTYPE = jnp.float32


# ---------------- Pallas kernel ----------------------------------------------
def pinn_kernel(xT_ref, bf_ref,
                w0_ref, b0_ref,
                w1_ref, b1_ref,
                w2_ref, b2_ref,
                oT_ref):
    """Fused: Fourier embedding -> [linear+tanh] x2 -> linear (feature-major)."""
    xT = xT_ref[...]                                         # (num_inputs, TB)

    # Fourier projection; 2*pi already folded into bf at parameter build time.
    proj = jnp.dot(bf_ref[...], xT,
                   preferred_element_type=jnp.float32)       # (m, TB)

    # Stack [sin; cos] on the sublane (feature) axis so layer-0 is a single
    # K = 2*m = 128 matmul (one MXU push instead of two K=64 dots).
    feats = jnp.concatenate([jnp.sin(proj), jnp.cos(proj)], axis=0)  # (2m, TB)

    d = MXU_DTYPE
    h = jnp.tanh(
        jnp.dot(w0_ref[...].astype(d), feats.astype(d),
                preferred_element_type=jnp.float32)
        + b0_ref[...])                                       # (neurons, TB)

    h = jnp.tanh(
        jnp.dot(w1_ref[...].astype(d), h.astype(d),
                preferred_element_type=jnp.float32)
        + b1_ref[...])                                       # (neurons, TB)

    out = (jnp.dot(w2_ref[...].astype(d), h.astype(d),
                   preferred_element_type=jnp.float32)
           + b2_ref[0, 0])                                   # (1, TB) lane-dense

    oT_ref[...] = out.astype(oT_ref.dtype)


@jax.jit
def enhanced_pinn_forward(x, fourier_b, w0, b0, w1, b1, w2, b2):
    """x: (B, num_inputs) f32 -> (B, num_outputs) f32."""
    B = x.shape[0]
    Bp = pl.cdiv(B, TILE_B) * TILE_B

    xT = x.T                                                 # (num_inputs, B)
    if Bp != B:
        xT = jnp.pad(xT, ((0, 0), (0, Bp - B)))

    grid = (Bp // TILE_B,)

    def const(shape):      # resident constants: same block every grid step
        return pl.BlockSpec(shape, lambda i: (0, 0))

    outT = pl.pallas_call(
        pinn_kernel,
        out_shape=jax.ShapeDtypeStruct((NUM_OUTPUTS, Bp), jnp.float32),
        grid_spec=pltpu.PrefetchScalarGridSpec(
            num_scalar_prefetch=0,
            grid=grid,
            in_specs=[
                pl.BlockSpec((NUM_INPUTS, TILE_B), lambda i: (0, i)),  # x^T
                const(fourier_b.shape),                                # 2*pi*B
                const(w0.shape), const(b0.shape),
                const(w1.shape), const(b1.shape),
                const(w2.shape),
                pl.BlockSpec(memory_space=pltpu.MemorySpace.SMEM),     # b2 scalar
            ],
            out_specs=pl.BlockSpec((NUM_OUTPUTS, TILE_B), lambda i: (0, i)),
        ),
        compiler_params=pltpu.CompilerParams(
            dimension_semantics=("parallel",)),
    )(xT, fourier_b, w0, b0, w1, b1, w2, b2)

    return outT[:, :B].T                                     # (B, num_outputs)


# ---------------- deterministic parameter construction (glue) ----------------
def xavier_normal(key, out_features, in_features):
    std = jnp.sqrt(2.0 / (in_features + out_features))
    return jax.random.normal(key, (out_features, in_features), jnp.float32) * std


def make_rwf_layer(key, in_features, out_features):
    """RandomWeightFactorizedLinear: weight = exp(s)[:, None] * V (Xavier V)."""
    k_s, k_v = jax.random.split(key)
    s = jax.random.normal(k_s, (out_features,), jnp.float32) * SIGMA_RWF + MU_RWF
    V = xavier_normal(k_v, out_features, in_features)
    W = jnp.exp(s)[:, None] * V                    # natural (out, in) layout
    b = jnp.zeros((out_features,), jnp.float32)
    return W, b


def make_params(key):
    keys = jax.random.split(key, 4)
    # Fourier buffer B: (mapping_size, num_inputs) * sigma; fold 2*pi here.
    B_mat = jax.random.normal(keys[0], (FOURIER_DIM, NUM_INPUTS),
                              jnp.float32) * SIGMA_FOURIER
    fourier_b = (2.0 * jnp.pi) * B_mat             # (m, num_inputs)

    w0, b0 = make_rwf_layer(keys[1], 2 * FOURIER_DIM, NUM_NEURONS)
    w1, b1 = make_rwf_layer(keys[2], NUM_NEURONS, NUM_NEURONS)
    w2, b2 = make_rwf_layer(keys[3], NUM_NEURONS, NUM_OUTPUTS)

    return (fourier_b,
            w0, b0[:, None],          # biases as (neurons, 1) columns
            w1, b1[:, None],
            w2, b2[None, :])          # (1, 1) scalar bias -> SMEM


# ---------------- pure-JAX reference (sanity check) ---------------------------
def reference_forward(x, fourier_b, w0, b0, w1, b1, w2, b2):
    proj = x @ fourier_b.T                                    # 2*pi folded in
    feats = jnp.concatenate([jnp.sin(proj), jnp.cos(proj)], axis=-1)
    h = jnp.tanh(feats @ w0.T + b0[:, 0])
    h = jnp.tanh(h @ w1.T + b1[:, 0])
    return h @ w2.T + b2[0, 0]


if __name__ == "__main__":
    key = jax.random.PRNGKey(0)
    k_param, k_x = jax.random.split(key)

    params = make_params(k_param)
    x = jax.random.uniform(k_x, (BATCH, NUM_INPUTS), jnp.float32)

    out = jax.block_until_ready(enhanced_pinn_forward(x, *params))

    ref = reference_forward(x, *params)
    assert out.shape == (BATCH, NUM_OUTPUTS)
    assert jnp.allclose(out, ref, atol=5e-4, rtol=5e-4), "mismatch vs reference"

    print("KERNEL_OK")
</pallas_src>

<mosaic_0001>
module attributes {stable_mosaic.version = 11 : i64} {
  func.func @pinn_kernel(%arg0: i32, %arg1: memref<3x256xf32, #tpu.memory_space<vmem>>, %arg2: memref<64x3xf32, #tpu.memory_space<vmem>>, %arg3: memref<128x128xf32, #tpu.memory_space<vmem>>, %arg4: memref<128x1xf32, #tpu.memory_space<vmem>>, %arg5: memref<128x128xf32, #tpu.memory_space<vmem>>, %arg6: memref<128x1xf32, #tpu.memory_space<vmem>>, %arg7: memref<1x128xf32, #tpu.memory_space<vmem>>, %arg8: memref<1x1xf32, #tpu.memory_space<smem>>, %arg9: memref<1x256xf32, #tpu.memory_space<vmem>>) attributes {dimension_semantics = [#tpu.dimension_semantics<parallel>], iteration_bounds = array<i64: 2>, scalar_prefetch = 0 : i64, scratch_operands = 0 : i64, tpu.core_type = #tpu.core_type<tc>, window_params = [{transform_indices = @transform_0, window_bounds = array<i64: 3, 256>}, {pipeline_mode = #tpu.pipeline_mode<synchronous>, transform_indices = @transform_1, window_bounds = array<i64: 64, 3>}, {pipeline_mode = #tpu.pipeline_mode<synchronous>, transform_indices = @transform_2, window_bounds = array<i64: 128, 128>}, {pipeline_mode = #tpu.pipeline_mode<synchronous>, transform_indices = @transform_3, window_bounds = array<i64: 128, 1>}, {pipeline_mode = #tpu.pipeline_mode<synchronous>, transform_indices = @transform_4, window_bounds = array<i64: 128, 128>}, {pipeline_mode = #tpu.pipeline_mode<synchronous>, transform_indices = @transform_5, window_bounds = array<i64: 128, 1>}, {pipeline_mode = #tpu.pipeline_mode<synchronous>, transform_indices = @transform_6, window_bounds = array<i64: 1, 128>}, {transform_indices = @transform_7, window_bounds = array<i64: 1, 1>}, {transform_indices = @transform_8, window_bounds = array<i64: 1, 256>}]} {
    %c0 = arith.constant 0 : index
    %c0_0 = arith.constant 0 : index
    %0 = vector.load %arg1[%c0, %c0_0] : memref<3x256xf32, #tpu.memory_space<vmem>>, vector<3x256xf32>
    %c0_1 = arith.constant 0 : index
    %c0_2 = arith.constant 0 : index
    %1 = vector.load %arg2[%c0_1, %c0_2] : memref<64x3xf32, #tpu.memory_space<vmem>>, vector<64x3xf32>
    %cst = arith.constant dense<0.000000e+00> : vector<64x256xf32>
    %2 = tpu.matmul %1, %0, %cst {dimension_numbers = #tpu.dot_dimension_numbers<[1], [0], [0], [1], [0, 0, 1, 1], [], []>} : vector<64x3xf32>, vector<3x256xf32>, vector<64x256xf32> -> vector<64x256xf32>
    %3 = math.sin %2 : vector<64x256xf32>
    %4 = math.cos %2 : vector<64x256xf32>
    %5 = tpu.concatenate %3, %4 in 0 : vector<64x256xf32>, vector<64x256xf32> -> vector<128x256xf32>
    %c0_3 = arith.constant 0 : index
    %c0_4 = arith.constant 0 : index
    %6 = vector.load %arg3[%c0_3, %c0_4] : memref<128x128xf32, #tpu.memory_space<vmem>>, vector<128x128xf32>
    %cst_5 = arith.constant dense<0.000000e+00> : vector<128x256xf32>
    %7 = tpu.matmul %6, %5, %cst_5 {dimension_numbers = #tpu.dot_dimension_numbers<[1], [0], [0], [1], [0, 0, 1, 1], [], []>} : vector<128x128xf32>, vector<128x256xf32>, vector<128x256xf32> -> vector<128x256xf32>
    %c0_6 = arith.constant 0 : index
    %c0_7 = arith.constant 0 : index
    %8 = vector.load %arg4[%c0_6, %c0_7] : memref<128x1xf32, #tpu.memory_space<vmem>>, vector<128x1xf32>
    %9 = vector.broadcast %8 : vector<128x1xf32> to vector<128x256xf32>
    %10 = arith.addf %7, %9 : vector<128x256xf32>
    %11 = math.tanh %10 : vector<128x256xf32>
    %c0_8 = arith.constant 0 : index
    %c0_9 = arith.constant 0 : index
    %12 = vector.load %arg5[%c0_8, %c0_9] : memref<128x128xf32, #tpu.memory_space<vmem>>, vector<128x128xf32>
    %cst_10 = arith.constant dense<0.000000e+00> : vector<128x256xf32>
    %13 = tpu.matmul %12, %11, %cst_10 {dimension_numbers = #tpu.dot_dimension_numbers<[1], [0], [0], [1], [0, 0, 1, 1], [], []>} : vector<128x128xf32>, vector<128x256xf32>, vector<128x256xf32> -> vector<128x256xf32>
    %c0_11 = arith.constant 0 : index
    %c0_12 = arith.constant 0 : index
    %14 = vector.load %arg6[%c0_11, %c0_12] : memref<128x1xf32, #tpu.memory_space<vmem>>, vector<128x1xf32>
    %15 = vector.broadcast %14 : vector<128x1xf32> to vector<128x256xf32>
    %16 = arith.addf %13, %15 : vector<128x256xf32>
    %17 = math.tanh %16 : vector<128x256xf32>
    %c0_13 = arith.constant 0 : index
    %c0_14 = arith.constant 0 : index
    %18 = vector.load %arg7[%c0_13, %c0_14] : memref<1x128xf32, #tpu.memory_space<vmem>>, vector<1x128xf32>
    %cst_15 = arith.constant dense<0.000000e+00> : vector<1x256xf32>
    %19 = tpu.matmul %18, %17, %cst_15 {dimension_numbers = #tpu.dot_dimension_numbers<[1], [0], [0], [1], [0, 0, 1, 1], [], []>} : vector<1x128xf32>, vector<128x256xf32>, vector<1x256xf32> -> vector<1x256xf32>
    %c0_16 = arith.constant 0 : index
    %c0_17 = arith.constant 0 : index
    %20 = memref.load %arg8[%c0_16, %c0_17] : memref<1x1xf32, #tpu.memory_space<smem>>
    %21 = vector.broadcast %20 : f32 to vector<1x256xf32>
    %22 = arith.addf %19, %21 : vector<1x256xf32>
    %c0_18 = arith.constant 0 : index
    %c0_19 = arith.constant 0 : index
    %23 = vector.load %arg9[%c0_18, %c0_19] : memref<1x256xf32, #tpu.memory_space<vmem>>, vector<1x256xf32>
    tpu.vector_store %arg9[%c0_18, %c0_19], %22 {strides = array<i32>} : memref<1x256xf32, #tpu.memory_space<vmem>>, vector<1x256xf32>,
    return
  }
  func.func @transform_0(%arg0: i32) -> (i32, i32) {
    %c0_i32 = arith.constant 0 : i32
    %c0_i32_0 = arith.constant 0 : i32
    return %c0_i32, %arg0 : i32, i32
  }
  func.func @transform_1(%arg0: i32) -> (i32, i32) {
    %c0_i32 = arith.constant 0 : i32
    %c0_i32_0 = arith.constant 0 : i32
    %c0_i32_1 = arith.constant 0 : i32
    return %c0_i32, %c0_i32_0 : i32, i32
  }
  func.func @transform_2(%arg0: i32) -> (i32, i32) {
    %c0_i32 = arith.constant 0 : i32
    %c0_i32_0 = arith.constant 0 : i32
    %c0_i32_1 = arith.constant 0 : i32
    return %c0_i32, %c0_i32_0 : i32, i32
  }
  func.func @transform_3(%arg0: i32) -> (i32, i32) {
    %c0_i32 = arith.constant 0 : i32
    %c0_i32_0 = arith.constant 0 : i32
    %c0_i32_1 = arith.constant 0 : i32
    return %c0_i32, %c0_i32_0 : i32, i32
  }
  func.func @transform_4(%arg0: i32) -> (i32, i32) {
    %c0_i32 = arith.constant 0 : i32
    %c0_i32_0 = arith.constant 0 : i32
    %c0_i32_1 = arith.constant 0 : i32
    return %c0_i32, %c0_i32_0 : i32, i32
  }
  func.func @transform_5(%arg0: i32) -> (i32, i32) {
    %c0_i32 = arith.constant 0 : i32
    %c0_i32_0 = arith.constant 0 : i32
    %c0_i32_1 = arith.constant 0 : i32
    return %c0_i32, %c0_i32_0 : i32, i32
  }
  func.func @transform_6(%arg0: i32) -> (i32, i32) {
    %c0_i32 = arith.constant 0 : i32
    %c0_i32_0 = arith.constant 0 : i32
    %c0_i32_1 = arith.constant 0 : i32
    return %c0_i32, %c0_i32_0 : i32, i32
  }
  func.func @transform_7(%arg0: i32) -> (i32, i32) {
    %c0_i32 = arith.constant 0 : i32
    %c0_i32_0 = arith.constant 0 : i32
    %c0_i32_1 = arith.constant 0 : i32
    return %c0_i32, %c0_i32_0 : i32, i32
  }
  func.func @transform_8(%arg0: i32) -> (i32, i32) {
    %c0_i32 = arith.constant 0 : i32
    %c0_i32_0 = arith.constant 0 : i32
    return %c0_i32, %arg0 : i32, i32
  }
}

</mosaic_0001>

<llo_original>
// kernel: enhanced_pinn_forward.1
$region0: #{enhanced_pinn_forward.1}
  #allocation0 [shape = 'u32[]', space=smem, size = 0x4, offset = 0x4, fixed_abs, tag = 'smem constant byte address 0x4 - core index']
  #allocation1 [shape = 'u32[144,128]{1,0:T(1,128)}', space=vmem, size = 0x12000, scoped, tag = 'internal scratch']
  #allocation2 [shape = 'f32[1,1]{1,0:T(1,128)S(6)}', space=smem, size = 0x200, scoped, tag = 'scoped memory for enhanced_pinn_forward.1']
  %s0 = inlined_call_operand.vmem [shape: f32[3,512], index: 0, kind: input, shape index: {}]
  %s1 = inlined_call_operand.vmem [shape: f32[64,3], index: 1, kind: input, shape index: {}]
  %s2 = inlined_call_operand.vmem [shape: f32[128,128], index: 2, kind: input, shape index: {}]
  %s3 = inlined_call_operand.vmem [shape: f32[128,1], index: 3, kind: input, shape index: {}]
  %s4 = inlined_call_operand.vmem [shape: f32[128,128], index: 4, kind: input, shape index: {}]
  %s5 = inlined_call_operand.vmem [shape: f32[128,1], index: 5, kind: input, shape index: {}]
  %s6 = inlined_call_operand.vmem [shape: f32[1,128], index: 6, kind: input, shape index: {}]
  %s7 = inlined_call_operand.<no memory space> [shape: f32[1,1], index: 7, kind: input, shape index: {}]
  %s8 = inlined_call_operand.hbm [shape: f32[1,512], index: 8, kind: output, shape index: {}]
  %s9 = sld [smem:[#allocation0]]
  $region65: #{enhanced_pinn_forward.1} parent=0
    _
  %s11 = ssub.s32 1, %s9
  %s12 = scalar_select 0, %s11, %s9
  %13 = sst [smem:[#allocation2]] %s7
  $region1: #{enhanced_pinn_forward.1} parent=0
    #allocation3 [shape = 'u8[2048]{0}', space=vmem, size = 0x800, scoped, tag = 'output window, operand 0']
    #allocation4 [shape = 's32[2]{0}', space=sflag, size = 0x8, scoped, tag = 'scoped memory for enhanced_pinn_forward.1']
    %14 = vsyncpa [#allocation4], 0
    %s15 = scalar_lea.sflag [#allocation4], 1
    %16 = vsyncpa %s15, 0
    loop: start=0, step=1, limit=4
    $region2: #{enhanced_pinn_forward.1} parent=1 // loop_pre_header
      _
    $region3: #{enhanced_pinn_forward.1} parent=1 // loop_header
      %s18 = sphi 0, %s22
      %p19 = scmp.ge.s32.totalorder %s18, 4
      %s28 = sphi 0, %s30
      %s31 = sphi 0, %s28
      %s32 = sphi 0, %s31
      %s48 = sphi 0, %s32
      %s52 = sphi 0, %s52
      %s54 = sphi 0, %s52
      %s55 = sphi 0, %s54
      %s69 = sphi 0, %s55
      %s73 = sphi 0, %s73
      %s75 = sphi 0, %s73
      %s76 = sphi 0, %s75
      %s90 = sphi 0, %s76
      %s94 = sphi 0, %s94
      %s96 = sphi 0, %s94
      %s97 = sphi 0, %s96
      %s111 = sphi 0, %s97
      %s115 = sphi 0, %s115
      %s117 = sphi 0, %s115
      %s118 = sphi 0, %s117
      %s132 = sphi 0, %s118
      %s136 = sphi 0, %s136
      %s138 = sphi 0, %s136
      %s139 = sphi 0, %s138
      %s153 = sphi 0, %s139
      %s157 = sphi 0, %s157
      %s159 = sphi 0, %s157
      %s160 = sphi 0, %s159
      %s174 = sphi 0, %s160
      %s178 = sphi 0, %s178
      %s180 = sphi 0, %s178
      %s181 = sphi 0, %s180
      %s195 = sphi 0, %s181
      %s201 = sphi 0, %s203
      %s204 = sphi 0, %s201
      %s205 = sphi 0, %s204
      %s221 = sphi 0, %s205
    $region4: #{enhanced_pinn_forward.1} parent=1 // loop_header_branch
      %21 = sbr.rel (%p19) target = $region8
    $region5: #{enhanced_pinn_forward.1} parent=1 // loop_body
      %s23 = ssub.s32 %s18, 1
      %s24 = ssub.s32 %s18, 2
      %s25 = sadd.s32 %s18, 1
      %s26 = ssub.s32 %s18, %s25
      %p27 = scmp.eq.s32.totalorder %s26, 0
      %s29 = sadd.s32 %s28, 1
      %s30 = scalar_select %p27, %s28, %s29
      %p33 = pneg %p27
      %p34 = scmp.eq.s32.totalorder %s18, 1
      %p35 = por %p33, %p34
      %p36 = scmp.ne.s32.totalorder %s28, %s31
      %p37 = scmp.eq.s32.totalorder %s18, 0
      %p38 = por %p36, %p37
      %p39 = scmp.ne.s32.totalorder %s28, %s31
      %p40 = scmp.eq.s32.totalorder %s23, 1
      %p41 = por %p39, %p40
      %p42 = scmp.ne.s32.totalorder %s31, %s32
      %p43 = scmp.eq.s32.totalorder %s23, 0
      %p44 = por %p42, %p43
      %p45 = scmp.ne.s32.totalorder %s31, %s32
      %p46 = scmp.eq.s32.totalorder %s24, 1
      %p47 = por %p45, %p46
      %p49 = scmp.ne.s32.totalorder %s32, %s48
      %p50 = scmp.eq.s32.totalorder %s24, 0
      %p51 = por %p49, %p50
      %s53 = sadd.s32 %s52, 1
      %p56 = scmp.eq.s32.totalorder %s18, 1
      %p57 = scmp.ne.s32.totalorder %s52, %s54
      %p58 = scmp.eq.s32.totalorder %s18, 0
      %p59 = por %p57, %p58
      %p60 = scmp.ne.s32.totalorder %s52, %s54
      %p61 = scmp.eq.s32.totalorder %s23, 1
      %p62 = por %p60, %p61
      %p63 = scmp.ne.s32.totalorder %s54, %s55
      %p64 = scmp.eq.s32.totalorder %s23, 0
      %p65 = por %p63, %p64
      %p66 = scmp.ne.s32.totalorder %s54, %s55
      %p67 = scmp.eq.s32.totalorder %s24, 1
      %p68 = por %p66, %p67
      %p70 = scmp.ne.s32.totalorder %s55, %s69
      %p71 = scmp.eq.s32.totalorder %s24, 0
      %p72 = por %p70, %p71
      %s74 = sadd.s32 %s73, 1
      %p77 = scmp.eq.s32.totalorder %s18, 1
      %p78 = scmp.ne.s32.totalorder %s73, %s75
      %p79 = scmp.eq.s32.totalorder %s18, 0
      %p80 = por %p78, %p79
      %p81 = scmp.ne.s32.totalorder %s73, %s75
      %p82 = scmp.eq.s32.totalorder %s23, 1
      %p83 = por %p81, %p82
      %p84 = scmp.ne.s32.totalorder %s75, %s76
      %p85 = scmp.eq.s32.totalorder %s23, 0
      %p86 = por %p84, %p85
      %p87 = scmp.ne.s32.totalorder %s75, %s76
      %p88 = scmp.eq.s32.totalorder %s24, 1
      %p89 = por %p87, %p88
      %p91 = scmp.ne.s32.totalorder %s76, %s90
      %p92 = scmp.eq.s32.totalorder %s24, 0
      %p93 = por %p91, %p92
      %s95 = sadd.s32 %s94, 1
      %p98 = scmp.eq.s32.totalorder %s18, 1
      %p99 = scmp.ne.s32.totalorder %s94, %s96
      %p100 = scmp.eq.s32.totalorder %s18, 0
      %p101 = por %p99, %p100
      %p102 = scmp.ne.s32.totalorder %s94, %s96
      %p103 = scmp.eq.s32.totalorder %s23, 1
      %p104 = por %p102, %p103
      %p105 = scmp.ne.s32.totalorder %s96, %s97
      %p106 = scmp.eq.s32.totalorder %s23, 0
      %p107 = por %p105, %p106
      %p108 = scmp.ne.s32.totalorder %s96, %s97
      %p109 = scmp.eq.s32.totalorder %s24, 1
      %p110 = por %p108, %p109
      %p112 = scmp.ne.s32.totalorder %s97, %s111
      %p113 = scmp.eq.s32.totalorder %s24, 0
      %p114 = por %p112, %p113
      %s116 = sadd.s32 %s115, 1
      %p119 = scmp.eq.s32.totalorder %s18, 1
      %p120 = scmp.ne.s32.totalorder %s115, %s117
      %p121 = scmp.eq.s32.totalorder %s18, 0
      %p122 = por %p120, %p121
      %p123 = scmp.ne.s32.totalorder %s115, %s117
      %p124 = scmp.eq.s32.totalorder %s23, 1
      %p125 = por %p123, %p124
      %p126 = scmp.ne.s32.totalorder %s117, %s118
      %p127 = scmp.eq.s32.totalorder %s23, 0
      %p128 = por %p126, %p127
      %p129 = scmp.ne.s32.totalorder %s117, %s118
      %p130 = scmp.eq.s32.totalorder %s24, 1
      %p131 = por %p129, %p130
      %p133 = scmp.ne.s32.totalorder %s118, %s132
      %p134 = scmp.eq.s32.totalorder %s24, 0
      %p135 = por %p133, %p134
      %s137 = sadd.s32 %s136, 1
      %p140 = scmp.eq.s32.totalorder %s18, 1
      %p141 = scmp.ne.s32.totalorder %s136, %s138
      %p142 = scmp.eq.s32.totalorder %s18, 0
      %p143 = por %p141, %p142
      %p144 = scmp.ne.s32.totalorder %s136, %s138
      %p145 = scmp.eq.s32.totalorder %s23, 1
      %p146 = por %p144, %p145
      %p147 = scmp.ne.s32.totalorder %s138, %s139
      %p148 = scmp.eq.s32.totalorder %s23, 0
      %p149 = por %p147, %p148
      %p150 = scmp.ne.s32.totalorder %s138, %s139
      %p151 = scmp.eq.s32.totalorder %s24, 1
      %p152 = por %p150, %p151
      %p154 = scmp.ne.s32.totalorder %s139, %s153
      %p155 = scmp.eq.s32.totalorder %s24, 0
      %p156 = por %p154, %p155
      %s158 = sadd.s32 %s157, 1
      %p161 = scmp.eq.s32.totalorder %s18, 1
      %p162 = scmp.ne.s32.totalorder %s157, %s159
      %p163 = scmp.eq.s32.totalorder %s18, 0
      %p164 = por %p162, %p163
      %p165 = scmp.ne.s32.totalorder %s157, %s159
      %p166 = scmp.eq.s32.totalorder %s23, 1
      %p167 = por %p165, %p166
      %p168 = scmp.ne.s32.totalorder %s159, %s160
      %p169 = scmp.eq.s32.totalorder %s23, 0
      %p170 = por %p168, %p169
      %p171 = scmp.ne.s32.totalorder %s159, %s160
      %p172 = scmp.eq.s32.totalorder %s24, 1
      %p173 = por %p171, %p172
      %p175 = scmp.ne.s32.totalorder %s160, %s174
      %p176 = scmp.eq.s32.totalorder %s24, 0
      %p177 = por %p175, %p176
      %s179 = sadd.s32 %s178, 1
      %p182 = scmp.eq.s32.totalorder %s18, 1
      %p183 = scmp.ne.s32.totalorder %s178, %s180
      %p184 = scmp.eq.s32.totalorder %s18, 0
      %p185 = por %p183, %p184
      %p186 = scmp.ne.s32.totalorder %s178, %s180
      %p187 = scmp.eq.s32.totalorder %s23, 1
      %p188 = por %p186, %p187
      %p189 = scmp.ne.s32.totalorder %s180, %s181
      %p190 = scmp.eq.s32.totalorder %s23, 0
      %p191 = por %p189, %p190
      %p192 = scmp.ne.s32.totalorder %s180, %s181
      %p193 = scmp.eq.s32.totalorder %s24, 1
      %p194 = por %p192, %p193
      %p196 = scmp.ne.s32.totalorder %s181, %s195
      %p197 = scmp.eq.s32.totalorder %s24, 0
      %p198 = por %p196, %p197
      %s199 = ssub.s32 %s18, %s25
      %p200 = scmp.eq.s32.totalorder %s199, 0
      %s202 = sadd.s32 %s201, 1
      %s203 = scalar_select %p200, %s201, %s202
      %p206 = pneg %p200
      %p207 = scmp.eq.s32.totalorder %s18, 1
      %p208 = por %p206, %p207
      %p209 = scmp.ne.s32.totalorder %s201, %s204
      %p210 = scmp.eq.s32.totalorder %s18, 0
      %p211 = por %p209, %p210
      %p212 = scmp.ne.s32.totalorder %s201, %s204
      %p213 = scmp.eq.s32.totalorder %s23, 1
      %p214 = por %p212, %p213
      %p215 = scmp.ne.s32.totalorder %s204, %s205
      %p216 = scmp.eq.s32.totalorder %s23, 0
      %p217 = por %p215, %p216
      %p218 = scmp.ne.s32.totalorder %s204, %s205
      %p219 = scmp.eq.s32.totalorder %s24, 1
      %p220 = por %p218, %p219
      %p222 = scmp.ne.s32.totalorder %s205, %s221
      %p223 = scmp.eq.s32.totalorder %s24, 0
      %p224 = por %p222, %p223
      %p225 = scmp.le.s32.totalorder 1, %s18
      %p226 = scmp.lt.s32.totalorder %s18, 3
      %p227 = pnand %p225, %p226
      %p228 = pneg %p227
      // Predicated region
      $region9: #{enhanced_pinn_forward.1} parent=5 // pred_check
        _
      $region10: #{enhanced_pinn_forward.1} parent=5 // pred_check_branch
        %230 = sbr.rel (%p227) target = $region12
      $region11: #{enhanced_pinn_forward.1} parent=5 // pred_region
        %s231 = ssub.s32 %s18, 1
        // Predicated region
        $region13: #{enhanced_pinn_forward.1} parent=11 // pred_check
          %p232 = pneg %p65
        $region14: #{enhanced_pinn_forward.1} parent=11 // pred_check_branch
          %234 = sbr.rel (%p232) target = $region16
        $region15: #{enhanced_pinn_forward.1} parent=11 // pred_region
          _
        $region16: #{enhanced_pinn_forward.1} parent=11 // pred_fallthru
          _
        // Predicated region
        $region17: #{enhanced_pinn_forward.1} parent=11 // pred_check
          %p235 = pneg %p86
        $region18: #{enhanced_pinn_forward.1} parent=11 // pred_check_branch
          %237 = sbr.rel (%p235) target = $region20
        $region19: #{enhanced_pinn_forward.1} parent=11 // pred_region
          _
        $region20: #{enhanced_pinn_forward.1} parent=11 // pred_fallthru
          _
        // Predicated region
        $region21: #{enhanced_pinn_forward.1} parent=11 // pred_check
          %p238 = pneg %p107
        $region22: #{enhanced_pinn_forward.1} parent=11 // pred_check_branch
          %240 = sbr.rel (%p238) target = $region24
        $region23: #{enhanced_pinn_forward.1} parent=11 // pred_region
          _
        $region24: #{enhanced_pinn_forward.1} parent=11 // pred_fallthru
          _
        // Predicated region
        $region25: #{enhanced_pinn_forward.1} parent=11 // pred_check
          %p241 = pneg %p128
        $region26: #{enhanced_pinn_forward.1} parent=11 // pred_check_branch
          %243 = sbr.rel (%p241) target = $region28
        $region27: #{enhanced_pinn_forward.1} parent=11 // pred_region
          _
        $region28: #{enhanced_pinn_forward.1} parent=11 // pred_fallthru
          _
        // Predicated region
        $region29: #{enhanced_pinn_forward.1} parent=11 // pred_check
          %p244 = pneg %p149
        $region30: #{enhanced_pinn_forward.1} parent=11 // pred_check_branch
          %246 = sbr.rel (%p244) target = $region32
        $region31: #{enhanced_pinn_forward.1} parent=11 // pred_region
          _
        $region32: #{enhanced_pinn_forward.1} parent=11 // pred_fallthru
          _
        // Predicated region
        $region33: #{enhanced_pinn_forward.1} parent=11 // pred_check
          %p247 = pneg %p170
        $region34: #{enhanced_pinn_forward.1} parent=11 // pred_check_branch
          %249 = sbr.rel (%p247) target = $region36
        $region35: #{enhanced_pinn_forward.1} parent=11 // pred_region
          _
        $region36: #{enhanced_pinn_forward.1} parent=11 // pred_fallthru
          _
        // Predicated region
        $region37: #{enhanced_pinn_forward.1} parent=11 // pred_check
          %p250 = pneg %p191
        $region38: #{enhanced_pinn_forward.1} parent=11 // pred_check_branch
          %252 = sbr.rel (%p250) target = $region40
        $region39: #{enhanced_pinn_forward.1} parent=11 // pred_region
          _
        $region40: #{enhanced_pinn_forward.1} parent=11 // pred_fallthru
          _
      $region12: #{enhanced_pinn_forward.1} parent=5 // pred_fallthru
        _
      %p253 = scmp.lt.s32.totalorder %s18, 2
      // Predicated region
      $region41: #{enhanced_pinn_forward.1} parent=5 // pred_check
        %p254 = pneg %p253
      $region42: #{enhanced_pinn_forward.1} parent=5 // pred_check_branch
        %256 = sbr.rel (%p254) target = $region44
      $region43: #{enhanced_pinn_forward.1} parent=5 // pred_region
        // Predicated region
        $region45: #{enhanced_pinn_forward.1} parent=43 // pred_check
          %p257 = pneg %p38
        $region46: #{enhanced_pinn_forward.1} parent=43 // pred_check_branch
          %259 = sbr.rel (%p257) target = $region48
        $region47: #{enhanced_pinn_forward.1} parent=43 // pred_region
          %s260 = smul.u32 2, %s18
          %p261 = scmp.lt.s32.totalorder %s260, 3
          %s262 = scalar_select %p261, %s260, 3
          %s263 = smul.addr %s262, 4
          %s264 = scalar_lea.vmem %s0, %s263
          %s265 = smul.u32 2, %s18
        $region48: #{enhanced_pinn_forward.1} parent=43 // pred_fallthru
          _
      $region44: #{enhanced_pinn_forward.1} parent=5 // pred_fallthru
        _
      %p266 = scmp.le.s32.totalorder 1, %s18
      %p267 = scmp.lt.s32.totalorder %s18, 3
      %p268 = pnand %p266, %p267
      %p269 = pneg %p268
      // Predicated region
      $region49: #{enhanced_pinn_forward.1} parent=5 // pred_check
        _
      $region50: #{enhanced_pinn_forward.1} parent=5 // pred_check_branch
        %271 = sbr.rel (%p268) target = $region52
      $region51: #{enhanced_pinn_forward.1} parent=5 // pred_region
        %s272 = ssub.s32 %s18, 1
        %s273 = smul.u32 2, %s23
        %p274 = scmp.lt.s32.totalorder %s273, 3
        %s275 = scalar_select %p274, %s273, 3
        %s276 = smul.addr %s275, 4
        %s277 = scalar_lea.vmem %s0, %s276
        %p278 = pneg %p44
        %p279 = pneg %p41
        %p280 = pneg %p65
        %p281 = pneg %p62
        %p282 = pneg %p86
        %p283 = pneg %p83
        %p284 = pneg %p107
        %p285 = pneg %p104
        %p286 = pneg %p128
        %p287 = pneg %p125
        %p288 = pneg %p149
        %p289 = pneg %p146
        %p290 = pneg %p170
        %p291 = pneg %p167
        %p292 = pneg %p191
        %p293 = pneg %p188
        %p294 = pneg %p217
        %p295 = pneg %p214
        %s296 = sand.u32 %s204, 1
        %s297 = scalar_lea.sflag [#allocation4], %s296
        %s298 = sand.u32 %s204, 1
        %s299 = smul.addr %s298, 2
        %s300 = scalar_lea.vmem [#allocation3], %s299
        %s301 = smul.u32 2, %s23
        %p302 = scmp.lt.s32.totalorder %s301, 3
        %s303 = scalar_select %p302, %s301, 3
        %s304 = smul.addr %s303, 4
        %s305 = scalar_lea.vmem %s0, %s304
        %s306 = smul.u32 2, %s23
        %s307 = smul.u32 2, %s23
        %v308 = vld [vmem:[%s305] sm:$0x77]
        %v309 = vld [vmem:[%s1] sm:$0xff]
        %v310 = vld [vmem:[%s1 + $0x8] sm:$0xff]
        %v311 = vld [vmem:[%s1 + $0x10] sm:$0xff]
        %v312 = vld [vmem:[%s1 + $0x18] sm:$0xff]
        %v313 = vld [vmem:[%s1 + $0x20] sm:$0xff]
        %v314 = vld [vmem:[%s1 + $0x28] sm:$0xff]
        %v315 = vld [vmem:[%s1 + $0x30] sm:$0xff]
        %v316 = vld [vmem:[%s1 + $0x38] sm:$0xff]
        %v318 = vcombine.high %v308, %v308
        %vm319 = vcmask 23552
        %v321 = vsel %vm319, %v309, 0
        %v324 = vsel %vm319, %v310, 0
        %v327 = vsel %vm319, %v311, 0
        %v330 = vsel %vm319, %v312, 0
        %v333 = vsel %vm319, %v313, 0
        %v336 = vsel %vm319, %v314, 0
        %v339 = vsel %vm319, %v315, 0
        %v342 = vsel %vm319, %v316, 0
        %vm344 = vcmask 1042432
        %v345 = vsel %vm344, %v308, 0
        %v347 = vsel %vm344, %v318, 0
        %349 = vmatprep.subr.mxu0 %v347
        %350 = vmatpush1.msra.mxu0 %v345
        %351 = vmatprep.subr.mxu0 0.0
        %352 = vmatpush1.msra.mxu0 0.0
        %353 = vmatprep.subr.mxu0 0.0
        %354 = vmatpush1.msra.mxu0 0.0
        %355 = vmatprep.subr.mxu0 0.0
        %356 = vmatpush1.msra.mxu0 0.0
        %357 = vmatprep.subr.mxu0 0.0
        %358 = vmatpush1.msra.mxu0 0.0
        %359 = vmatprep.subr.mxu0 0.0
        %360 = vmatpush1.msra.mxu0 0.0
        %361 = vmatprep.subr.mxu0 0.0
        %362 = vmatpush1.msra.mxu0 0.0
        %363 = vmatprep.subr.mxu0 0.0
        %364 = vmatpush1.msra.mxu0 0.0
        %365 = vmatprep.subr.mxu0 0.0
        %366 = vmatpush1.msra.mxu0 0.0
        %367 = vmatprep.subr.mxu0 0.0
        %368 = vmatpush1.msra.mxu0 0.0
        %369 = vmatprep.subr.mxu0 0.0
        %370 = vmatpush1.msra.mxu0 0.0
        %371 = vmatprep.subr.mxu0 0.0
        %372 = vmatpush1.msra.mxu0 0.0
        %373 = vmatprep.subr.mxu0 0.0
        %374 = vmatpush1.msra.mxu0 0.0
        %375 = vmatprep.subr.mxu0 0.0
        %376 = vmatpush1.msra.mxu0 0.0
        %377 = vmatprep.subr.mxu0 0.0
        %378 = vmatpush1.msra.mxu0 0.0
        %379 = vmatprep.subr.mxu0 0.0
        %380 = vmatpush1.msra.mxu0 0.0
        %381 = vmatprep.subr.mxu0 0.0
        %382 = vmatpush1.msra.mxu0 0.0
        %383 = vmatprep.subr.mxu0 0.0
        %384 = vmatpush1.msra.mxu0 0.0
        %385 = vmatprep.subr.mxu0 0.0
        %386 = vmatpush1.msra.mxu0 0.0
        %387 = vmatprep.subr.mxu0 0.0
        %388 = vmatpush1.msra.mxu0 0.0
        %389 = vmatprep.subr.mxu0 0.0
        %390 = vmatpush1.msra.mxu0 0.0
        %391 = vmatprep.subr.mxu0 0.0
        %392 = vmatpush1.msra.mxu0 0.0
        %393 = vmatprep.subr.mxu0 0.0
        %394 = vmatpush1.msra.mxu0 0.0
        %395 = vmatprep.subr.mxu0 0.0
        %396 = vmatpush1.msra.mxu0 0.0
        %397 = vmatprep.subr.mxu0 0.0
        %398 = vmatpush1.msra.mxu0 0.0
        %399 = vmatprep.subr.mxu0 0.0
        %400 = vmatpush1.msra.mxu0 0.0
        %401 = vmatprep.subr.mxu0 0.0
        %402 = vmatpush1.msra.mxu0 0.0
        %403 = vmatprep.subr.mxu0 0.0
        %404 = vmatpush1.msra.mxu0 0.0
        %405 = vmatprep.subr.mxu0 0.0
        %406 = vmatpush1.msra.mxu0 0.0
        %407 = vmatprep.subr.mxu0 0.0
        %408 = vmatpush1.msra.mxu0 0.0
        %409 = vmatprep.subr.mxu0 0.0
        %410 = vmatpush1.msra.mxu0 0.0
        %411 = vmatprep.subr.mxu0 0.0
        %412 = vmatpush1.msra.mxu0 0.0
        %413 = vmatprep.mubr.f32.mxu0 0.0
        %414 = vmatmul.mubr.f32.gmra.mrb[0].mxu0 %v321
        %v415 = vpop.f32.mrb[0].mxu0
        %v416 = vadd.f32 0.0, %v415
        %v417 = vpop.f32.mrb[0].mxu0
        %v418 = vadd.f32 0.0, %v417
        %419 = vmatprep.mubr.f32.mxu0 0.0
        %420 = vmatmul.mubr.f32.gmra.mrb[0].mxu0 %v324
        %v421 = vpop.f32.mrb[0].mxu0
        %v422 = vadd.f32 0.0, %v421
        %v423 = vpop.f32.mrb[0].mxu0
        %v424 = vadd.f32 0.0, %v423
        %425 = vmatprep.mubr.f32.mxu0 0.0
        %426 = vmatmul.mubr.f32.gmra.mrb[0].mxu0 %v327
        %v427 = vpop.f32.mrb[0].mxu0
        %v428 = vadd.f32 0.0, %v427
        %v429 = vpop.f32.mrb[0].mxu0
        %v430 = vadd.f32 0.0, %v429
        %431 = vmatprep.mubr.f32.mxu0 0.0
        %432 = vmatmul.mubr.f32.gmra.mrb[0].mxu0 %v330
        %v433 = vpop.f32.mrb[0].mxu0
        %v434 = vadd.f32 0.0, %v433
        %v435 = vpop.f32.mrb[0].mxu0
        %v436 = vadd.f32 0.0, %v435
        %437 = vmatprep.mubr.f32.mxu0 0.0
        %438 = vmatmul.mubr.f32.gmra.mrb[0].mxu0 %v333
        %v439 = vpop.f32.mrb[0].mxu0
        %v440 = vadd.f32 0.0, %v439
        %v441 = vpop.f32.mrb[0].mxu0
        %v442 = vadd.f32 0.0, %v441
        %443 = vmatprep.mubr.f32.mxu0 0.0
        %444 = vmatmul.mubr.f32.gmra.mrb[0].mxu0 %v336
        %v445 = vpop.f32.mrb[0].mxu0
        %v446 = vadd.f32 0.0, %v445
        %v447 = vpop.f32.mrb[0].mxu0
        %v448 = vadd.f32 0.0, %v447
        %449 = vmatprep.mubr.f32.mxu0 0.0
        %450 = vmatmul.mubr.f32.gmra.mrb[0].mxu0 %v339
        %v451 = vpop.f32.mrb[0].mxu0
        %v452 = vadd.f32 0.0, %v451
        %v453 = vpop.f32.mrb[0].mxu0
        %v454 = vadd.f32 0.0, %v453
        %455 = vmatprep.mubr.f32.mxu0 0.0
        %456 = vmatmul.mubr.f32.gmra.mrb[0].mxu0 %v342
        %v457 = vpop.f32.mrb[0].mxu0
        %v458 = vadd.f32 0.0, %v457
        %v459 = vpop.f32.mrb[0].mxu0
        %v460 = vadd.f32 0.0, %v459
        %461 = vdwg.mxu0
        %v462 = vand.u32 2147483647, %v416
        %vm463 = vcmp.le.f32.partialorder %v462, 0.7853982
        %vm464 = vcmp.lt.s32.totalorder %v416, 0
        %v465 = vand.u32 %v416, 2139095040
        %v466 = vshrl.u32 %v465, 23
        %v467 = vsub.s32 %v466, 127
        %v468 = vand.u32 2147483647, %v416
        %v469 = vand.u32 %v468, 8388607
        %v470 = vor.u32 %v469, 8388608
        %v471 = vsub.s32 0, %v470
        %v472 = vadd.s32 %v467, 1
        %vm473 = vcmp.gt.s32.totalorder %v472, 0
        %v474 = vsel %vm473, %v472, 0
        %v475 = vshrl.u32 %v474, 5
        %v476 = vand.u32 %v474, 31
        %v477 = vsub.s32 32, %v476
        %v478 = vshrl.u32 683565275, %v477
        %v479 = vshll.u32 683565275, %v476
        %v480 = vshrl.u32 2475754826, %v477
        %v481 = vor.u32 %v479, %v480
        %v482 = vshll.u32 2475754826, %v476
        %v483 = vshrl.u32 2131351028, %v477
        %v484 = vor.u32 %v482, %v483
        %v485 = vshll.u32 2131351028, %v476
        %v486 = vshrl.u32 2102212464, %v477
        %v487 = vor.u32 %v485, %v486
        %v488 = vshll.u32 2102212464, %v476
        %v489 = vshrl.u32 920167782, %v477
        %v490 = vor.u32 %v488, %v489
        %v491 = vshll.u32 920167782, %v476
        %v492 = vshrl.u32 1326507024, %v477
        %v493 = vor.u32 %v491, %v492
        %vm494 = vcmp.lt.s32.totalorder %v475, 1
        %vm495 = vcmp.lt.s32.totalorder %v475, 2
        %vm496 = vcmp.lt.s32.totalorder %v475, 3
        %vm497 = vcmp.lt.s32.totalorder %v475, 4
        %v498 = vsel %vm494, %v478, %v481
        %v499 = vsel %vm497, %v487, 2102212464
        %v500 = vsel %vm496, %v484, %v499
        %v501 = vsel %vm495, %v498, %v500
        %v502 = vsel %vm494, %v481, %v484
        %v503 = vsel %vm497, %v490, 920167782
        %v504 = vsel %vm496, %v487, %v503
        %v505 = vsel %vm495, %v502, %v504
        %v506 = vsel %vm494, %v484, %v487
        %v507 = vsel %vm497, %v493, 1326507024
        %v508 = vsel %vm496, %v490, %v507
        %v509 = vsel %vm495, %v506, %v508
        %v510 = vshll.u32 %v470, 8
        %v511 = vmul.u32.u64.compose %v510, %v509
        %v512 = vextract.low.u32 %v511
        %v513 = vextract.high.u32 %v511
        %v514 = vmul.u32.u64.compose %v510, %v505
        %v515 = vextract.low.u32 %v514
        %v516 = vextract.high.u32 %v514
        %v517 = vmul.u32 %v510, %v501
        %v518 = vadd.s32 %v513, %v515
        %vm519 = vc.u32 %v513, %v515
        %v520 = vadd.s32 %v516, 1
        %v521 = vsel %vm519, %v520, %v516
        %v522 = vadd.s32 %v517, %v521
        %v523 = vadd.s32 %v522, 536870912
        %v524 = vshrl.u32 %v523, 30
        %v525 = vshll.u32 %v524, 30
        %v526 = vsub.s32 %v522, %v525
        %vm527 = vcmp.lt.s32.totalorder %v526, 0
        %v528 = vsub.s32 0, %v526
        %v529 = vsel %vm527, %v528, %v526
        %v530 = vclz %v529
        %v531 = vsub.s32 %v530, 2
        %vm532 = vcmp.gt.s32.totalorder 0, %v531
        %v533 = vsel %vm532, 0, %v531
        %v534 = vsub.s32 32, %v533
        %v535 = vshll.u32 %v526, %v533
        %v536 = vshrl.u32 %v518, %v534
        %v537 = vor.u32 %v535, %v536
        %v538 = vsub.s32 4294967266, %v533
        %v539 = vadd.s32 %v538, 127
        %v540 = vshll.u32 %v539, 23
        %v541 = vor.u32 4788187, %v540
        %v542 = vand.u32 2147483647, %v541
        %v544 = vcvt.s32.f32 %v537
        %v545 = vmul.f32 %v544, %v542
        %v546 = vxor.u32 %v545, 2147483648
        %v547 = vsel %vm464, %v546, %v545
        %v548 = vsub.s32 4, %v524
        %v549 = vsel %vm464, %v548, %v524
        %v550 = vsel %vm463, %v416, %v547
        %v551 = vsel %vm463, 0, %v549
        %v552 = vcosq.f32.pop %v550
        %v553 = vsinq.f32.pop %v550
        %vm554 = vweird.f32 %v416
        %v555 = vadd.s32 %v551, 3
        %v556 = vand.u32 %v555, 3
        %vm557 = vcmp.lt.s32.totalorder %v556, 2
        %vm558 = vcmp.eq.s32.totalorder %v556, 0
        %v559 = vxor.u32 %v553, 2147483648
        %v560 = vsel %vm558, %v552, %v559
        %vm561 = vcmp.eq.s32.totalorder %v556, 2
        %v562 = vxor.u32 %v552, 2147483648
        %v563 = vsel %vm561, %v562, %v553
        %v564 = vsel %vm557, %v560, %v563
        %v565 = vsel %vm554, nan, %v564
        %v566 = vand.u32 2147483647, %v418
        %vm567 = vcmp.le.f32.partialorder %v566, 0.7853982
        %vm568 = vcmp.lt.s32.totalorder %v418, 0
        %v569 = vand.u32 %v418, 2139095040
        %v570 = vshrl.u32 %v569, 23
        %v571 = vsub.s32 %v570, 127
        %v572 = vand.u32 2147483647, %v418
        %v573 = vand.u32 %v572, 8388607
        %v574 = vor.u32 %v573, 8388608
        %v575 = vsub.s32 0, %v574
        %v576 = vadd.s32 %v571, 1
        %vm577 = vcmp.gt.s32.totalorder %v576, 0
        %v578 = vsel %vm577, %v576, 0
        %v579 = vshrl.u32 %v578, 5
        %v580 = vand.u32 %v578, 31
        %v581 = vsub.s32 32, %v580
        %v582 = vshrl.u32 683565275, %v581
        %v583 = vshll.u32 683565275, %v580
        %v584 = vshrl.u32 2475754826, %v581
        %v585 = vor.u32 %v583, %v584
        %v586 = vshll.u32 2475754826, %v580
        %v587 = vshrl.u32 2131351028, %v581
        %v588 = vor.u32 %v586, %v587
        %v589 = vshll.u32 2131351028, %v580
        %v590 = vshrl.u32 2102212464, %v581
        %v591 = vor.u32 %v589, %v590
        %v592 = vshll.u32 2102212464, %v580
        %v593 = vshrl.u32 920167782, %v581
        %v594 = vor.u32 %v592, %v593
        %v595 = vshll.u32 920167782, %v580
        %v596 = vshrl.u32 1326507024, %v581
        %v597 = vor.u32 %v595, %v596
        %vm598 = vcmp.lt.s32.totalorder %v579, 1
        %vm599 = vcmp.lt.s32.totalorder %v579, 2
        %vm600 = vcmp.lt.s32.totalorder %v579, 3
        %vm601 = vcmp.lt.s32.totalorder %v579, 4
        %v602 = vsel %vm598, %v582, %v585
        %v603 = vsel %vm601, %v591, 2102212464
        %v604 = vsel %vm600, %v588, %v603
        %v605 = vsel %vm599, %v602, %v604
        %v606 = vsel %vm598, %v585, %v588
        %v607 = vsel %vm601, %v594, 920167782
        %v608 = vsel %vm600, %v591, %v607
        %v609 = vsel %vm599, %v606, %v608
        %v610 = vsel %vm598, %v588, %v591
        %v611 = vsel %vm601, %v597, 1326507024
        %v612 = vsel %vm600, %v594, %v611
        %v613 = vsel %vm599, %v610, %v612
        %v614 = vshll.u32 %v574, 8
        %v615 = vmul.u32.u64.compose %v614, %v613
        %v616 = vextract.low.u32 %v615
        %v617 = vextract.high.u32 %v615
        %v618 = vmul.u32.u64.compose %v614, %v609
        %v619 = vextract.low.u32 %v618
        %v620 = vextract.high.u32 %v618
        %v621 = vmul.u32 %v614, %v605
        %v622 = vadd.s32 %v617, %v619
        %vm623 = vc.u32 %v617, %v619
        %v624 = vadd.s32 %v620, 1
        %v625 = vsel %vm623, %v624, %v620
        %v626 = vadd.s32 %v621, %v625
        %v627 = vadd.s32 %v626, 536870912
        %v628 = vshrl.u32 %v627, 30
        %v629 = vshll.u32 %v628, 30
        %v630 = vsub.s32 %v626, %v629
        %vm631 = vcmp.lt.s32.totalorder %v630, 0
        %v632 = vsub.s32 0, %v630
        %v633 = vsel %vm631, %v632, %v630
        %v634 = vclz %v633
        %v635 = vsub.s32 %v634, 2
        %vm636 = vcmp.gt.s32.totalorder 0, %v635
        %v637 = vsel %vm636, 0, %v635
        %v638 = vsub.s32 32, %v637
        %v639 = vshll.u32 %v630, %v637
        %v640 = vshrl.u32 %v622, %v638
        %v641 = vor.u32 %v639, %v640
        %v642 = vsub.s32 4294967266, %v637
        %v643 = vadd.s32 %v642, 127
        %v644 = vshll.u32 %v643, 23
        %v645 = vor.u32 4788187, %v644
        %v646 = vand.u32 2147483647, %v645
        %v648 = vcvt.s32.f32 %v641
        %v649 = vmul.f32 %v648, %v646
        %v650 = vxor.u32 %v649, 2147483648
        %v651 = vsel %vm568, %v650, %v649
        %v652 = vsub.s32 4, %v628
        %v653 = vsel %vm568, %v652, %v628
        %v654 = vsel %vm567, %v418, %v651
        %v655 = vsel %vm567, 0, %v653
        %v656 = vcosq.f32.pop %v654
        %v657 = vsinq.f32.pop %v654
        %vm658 = vweird.f32 %v418
        %v659 = vadd.s32 %v655, 3
        %v660 = vand.u32 %v659, 3
        %vm661 = vcmp.lt.s32.totalorder %v660, 2
        %vm662 = vcmp.eq.s32.totalorder %v660, 0
        %v663 = vxor.u32 %v657, 2147483648
        %v664 = vsel %vm662, %v656, %v663
        %vm665 = vcmp.eq.s32.totalorder %v660, 2
        %v666 = vxor.u32 %v656, 2147483648
        %v667 = vsel %vm665, %v666, %v657
        %v668 = vsel %vm661, %v664, %v667
        %v669 = vsel %vm658, nan, %v668
        %v670 = vand.u32 2147483647, %v422
        %vm671 = vcmp.le.f32.partialorder %v670, 0.7853982
        %vm672 = vcmp.lt.s32.totalorder %v422, 0
        %v673 = vand.u32 %v422, 2139095040
        %v674 = vshrl.u32 %v673, 23
        %v675 = vsub.s32 %v674, 127
        %v676 = vand.u32 2147483647, %v422
        %v677 = vand.u32 %v676, 8388607
        %v678 = vor.u32 %v677, 8388608
        %v679 = vsub.s32 0, %v678
        %v680 = vadd.s32 %v675, 1
        %vm681 = vcmp.gt.s32.totalorder %v680, 0
        %v682 = vsel %vm681, %v680, 0
        %v683 = vshrl.u32 %v682, 5
        %v684 = vand.u32 %v682, 31
        %v685 = vsub.s32 32, %v684
        %v686 = vshrl.u32 683565275, %v685
        %v687 = vshll.u32 683565275, %v684
        %v688 = vshrl.u32 2475754826, %v685
        %v689 = vor.u32 %v687, %v688
        %v690 = vshll.u32 2475754826, %v684
        %v691 = vshrl.u32 2131351028, %v685
        %v692 = vor.u32 %v690, %v691
        %v693 = vshll.u32 2131351028, %v684
        %v694 = vshrl.u32 2102212464, %v685
        %v695 = vor.u32 %v693, %v694
        %v696 = vshll.u32 2102212464, %v684
        %v697 = vshrl.u32 920167782, %v685
        %v698 = vor.u32 %v696, %v697
        %v699 = vshll.u32 920167782, %v684
        %v700 = vshrl.u32 1326507024, %v685
        %v701 = vor.u32 %v699, %v700
        %vm702 = vcmp.lt.s32.totalorder %v683, 1
        %vm703 = vcmp.lt.s32.totalorder %v683, 2
        %vm704 = vcmp.lt.s32.totalorder %v683, 3
        %vm705 = vcmp.lt.s32.totalorder %v683, 4
        %v706 = vsel %vm702, %v686, %v689
        %v707 = vsel %vm705, %v695, 2102212464
        %v708 = vsel %vm704, %v692, %v707
        %v709 = vsel %vm703, %v706, %v708
        %v710 = vsel %vm702, %v689, %v692
        %v711 = vsel %vm705, %v698, 920167782
        %v712 = vsel %vm704, %v695, %v711
        %v713 = vsel %vm703, %v710, %v712
        %v714 = vsel %vm702, %v692, %v695
        %v715 = vsel %vm705, %v701, 1326507024
        %v716 = vsel %vm704, %v698, %v715
        %v717 = vsel %vm703, %v714, %v716
        %v718 = vshll.u32 %v678, 8
        %v719 = vmul.u32.u64.compose %v718, %v717
        %v720 = vextract.low.u32 %v719
        %v721 = vextract.high.u32 %v719
        %v722 = vmul.u32.u64.compose %v718, %v713
        %v723 = vextract.low.u32 %v722
        %v724 = vextract.high.u32 %v722
        %v725 = vmul.u32 %v718, %v709
        %v726 = vadd.s32 %v721, %v723
        %vm727 = vc.u32 %v721, %v723
        %v728 = vadd.s32 %v724, 1
        %v729 = vsel %vm727, %v728, %v724
        %v730 = vadd.s32 %v725, %v729
        %v731 = vadd.s32 %v730, 536870912
        %v732 = vshrl.u32 %v731, 30
        %v733 = vshll.u32 %v732, 30
        %v734 = vsub.s32 %v730, %v733
        %vm735 = vcmp.lt.s32.totalorder %v734, 0
        %v736 = vsub.s32 0, %v734
        %v737 = vsel %vm735, %v736, %v734
        %v738 = vclz %v737
        %v739 = vsub.s32 %v738, 2
        %vm740 = vcmp.gt.s32.totalorder 0, %v739
        %v741 = vsel %vm740, 0, %v739
        %v742 = vsub.s32 32, %v741
        %v743 = vshll.u32 %v734, %v741
        %v744 = vshrl.u32 %v726, %v742
        %v745 = vor.u32 %v743, %v744
        %v746 = vsub.s32 4294967266, %v741
        %v747 = vadd.s32 %v746, 127
        %v748 = vshll.u32 %v747, 23
        %v749 = vor.u32 4788187, %v748
        %v750 = vand.u32 2147483647, %v749
        %v752 = vcvt.s32.f32 %v745
        %v753 = vmul.f32 %v752, %v750
        %v754 = vxor.u32 %v753, 2147483648
        %v755 = vsel %vm672, %v754, %v753
        %v756 = vsub.s32 4, %v732
        %v757 = vsel %vm672, %v756, %v732
        %v758 = vsel %vm671, %v422, %v755
        %v759 = vsel %vm671, 0, %v757
        %v760 = vcosq.f32.pop %v758
        %v761 = vsinq.f32.pop %v758
        %vm762 = vweird.f32 %v422
        %v763 = vadd.s32 %v759, 3
        %v764 = vand.u32 %v763, 3
        %vm765 = vcmp.lt.s32.totalorder %v764, 2
        %vm766 = vcmp.eq.s32.totalorder %v764, 0
        %v767 = vxor.u32 %v761, 2147483648
        %v768 = vsel %vm766, %v760, %v767
        %vm769 = vcmp.eq.s32.totalorder %v764, 2
        %v770 = vxor.u32 %v760, 2147483648
        %v771 = vsel %vm769, %v770, %v761
        %v772 = vsel %vm765, %v768, %v771
        %v773 = vsel %vm762, nan, %v772
        %v774 = vand.u32 2147483647, %v424
        %vm775 = vcmp.le.f32.partialorder %v774, 0.7853982
        %vm776 = vcmp.lt.s32.totalorder %v424, 0
        %v777 = vand.u32 %v424, 2139095040
        %v778 = vshrl.u32 %v777, 23
        %v779 = vsub.s32 %v778, 127
        %v780 = vand.u32 2147483647, %v424
        %v781 = vand.u32 %v780, 8388607
        %v782 = vor.u32 %v781, 8388608
        %v783 = vsub.s32 0, %v782
        %v784 = vadd.s32 %v779, 1
        %vm785 = vcmp.gt.s32.totalorder %v784, 0
        %v786 = vsel %vm785, %v784, 0
        %v787 = vshrl.u32 %v786, 5
        %v788 = vand.u32 %v786, 31
        %v789 = vsub.s32 32, %v788
        %v790 = vshrl.u32 683565275, %v789
        %v791 = vshll.u32 683565275, %v788
        %v792 = vshrl.u32 2475754826, %v789
        %v793 = vor.u32 %v791, %v792
        %v794 = vshll.u32 2475754826, %v788
        %v795 = vshrl.u32 2131351028, %v789
        %v796 = vor.u32 %v794, %v795
        %v797 = vshll.u32 2131351028, %v788
        %v798 = vshrl.u32 2102212464, %v789
        %v799 = vor.u32 %v797, %v798
        %v800 = vshll.u32 2102212464, %v788
        %v801 = vshrl.u32 920167782, %v789
        %v802 = vor.u32 %v800, %v801
        %v803 = vshll.u32 920167782, %v788
        %v804 = vshrl.u32 1326507024, %v789
        %v805 = vor.u32 %v803, %v804
        %vm806 = vcmp.lt.s32.totalorder %v787, 1
        %vm807 = vcmp.lt.s32.totalorder %v787, 2
        %vm808 = vcmp.lt.s32.totalorder %v787, 3
        %vm809 = vcmp.lt.s32.totalorder %v787, 4
        %v810 = vsel %vm806, %v790, %v793
        %v811 = vsel %vm809, %v799, 2102212464
        %v812 = vsel %vm808, %v796, %v811
        %v813 = vsel %vm807, %v810, %v812
        %v814 = vsel %vm806, %v793, %v796
        %v815 = vsel %vm809, %v802, 920167782
        %v816 = vsel %vm808, %v799, %v815
        %v817 = vsel %vm807, %v814, %v816
        %v818 = vsel %vm806, %v796, %v799
        %v819 = vsel %vm809, %v805, 1326507024
        %v820 = vsel %vm808, %v802, %v819
        %v821 = vsel %vm807, %v818, %v820
        %v822 = vshll.u32 %v782, 8
        %v823 = vmul.u32.u64.compose %v822, %v821
        %v824 = vextract.low.u32 %v823
        %v825 = vextract.high.u32 %v823
        %v826 = vmul.u32.u64.compose %v822, %v817
        %v827 = vextract.low.u32 %v826
        %v828 = vextract.high.u32 %v826
        %v829 = vmul.u32 %v822, %v813
        %v830 = vadd.s32 %v825, %v827
        %vm831 = vc.u32 %v825, %v827
        %v832 = vadd.s32 %v828, 1
        %v833 = vsel %vm831, %v832, %v828
        %v834 = vadd.s32 %v829, %v833
        %v835 = vadd.s32 %v834, 536870912
        %v836 = vshrl.u32 %v835, 30
        %v837 = vshll.u32 %v836, 30
        %v838 = vsub.s32 %v834, %v837
        %vm839 = vcmp.lt.s32.totalorder %v838, 0
        %v840 = vsub.s32 0, %v838
        %v841 = vsel %vm839, %v840, %v838
        %v842 = vclz %v841
        %v843 = vsub.s32 %v842, 2
        %vm844 = vcmp.gt.s32.totalorder 0, %v843
        %v845 = vsel %vm844, 0, %v843
        %v846 = vsub.s32 32, %v845
        %v847 = vshll.u32 %v838, %v845
        %v848 = vshrl.u32 %v830, %v846
        %v849 = vor.u32 %v847, %v848
        %v850 = vsub.s32 4294967266, %v845
        %v851 = vadd.s32 %v850, 127
        %v852 = vshll.u32 %v851, 23
        %v853 = vor.u32 4788187, %v852
        %v854 = vand.u32 2147483647, %v853
        %v856 = vcvt.s32.f32 %v849
        %v857 = vmul.f32 %v856, %v854
        %v858 = vxor.u32 %v857, 2147483648
        %v859 = vsel %vm776, %v858, %v857
        %v860 = vsub.s32 4, %v836
        %v861 = vsel %vm776, %v860, %v836
        %v862 = vsel %vm775, %v424, %v859
        %v863 = vsel %vm775, 0, %v861
        %v864 = vcosq.f32.pop %v862
        %v865 = vsinq.f32.pop %v862
        %vm866 = vweird.f32 %v424
        %v867 = vadd.s32 %v863, 3
        %v868 = vand.u32 %v867, 3
        %vm869 = vcmp.lt.s32.totalorder %v868, 2
        %vm870 = vcmp.eq.s32.totalorder %v868, 0
        %v871 = vxor.u32 %v865, 2147483648
        %v872 = vsel %vm870, %v864, %v871
        %vm873 = vcmp.eq.s32.totalorder %v868, 2
        %v874 = vxor.u32 %v864, 2147483648
        %v875 = vsel %vm873, %v874, %v865
        %v876 = vsel %vm869, %v872, %v875
        %v877 = vsel %vm866, nan, %v876
        %v878 = vand.u32 2147483647, %v428
        %vm879 = vcmp.le.f32.partialorder %v878, 0.7853982
        %vm880 = vcmp.lt.s32.totalorder %v428, 0
        %v881 = vand.u32 %v428, 2139095040
        %v882 = vshrl.u32 %v881, 23
        %v883 = vsub.s32 %v882, 127
        %v884 = vand.u32 2147483647, %v428
        %v885 = vand.u32 %v884, 8388607
        %v886 = vor.u32 %v885, 8388608
        %v887 = vsub.s32 0, %v886
        %v888 = vadd.s32 %v883, 1
        %vm889 = vcmp.gt.s32.totalorder %v888, 0
        %v890 = vsel %vm889, %v888, 0
        %v891 = vshrl.u32 %v890, 5
        %v892 = vand.u32 %v890, 31
        %v893 = vsub.s32 32, %v892
        %v894 = vshrl.u32 683565275, %v893
        %v895 = vshll.u32 683565275, %v892
        %v896 = vshrl.u32 2475754826, %v893
        %v897 = vor.u32 %v895, %v896
        %v898 = vshll.u32 2475754826, %v892
        %v899 = vshrl.u32 2131351028, %v893
        %v900 = vor.u32 %v898, %v899
        %v901 = vshll.u32 2131351028, %v892
        %v902 = vshrl.u32 2102212464, %v893
        %v903 = vor.u32 %v901, %v902
        %v904 = vshll.u32 2102212464, %v892
        %v905 = vshrl.u32 920167782, %v893
        %v906 = vor.u32 %v904, %v905
        %v907 = vshll.u32 920167782, %v892
        %v908 = vshrl.u32 1326507024, %v893
        %v909 = vor.u32 %v907, %v908
        %vm910 = vcmp.lt.s32.totalorder %v891, 1
        %vm911 = vcmp.lt.s32.totalorder %v891, 2
        %vm912 = vcmp.lt.s32.totalorder %v891, 3
        %vm913 = vcmp.lt.s32.totalorder %v891, 4
        %v914 = vsel %vm910, %v894, %v897
        %v915 = vsel %vm913, %v903, 2102212464
        %v916 = vsel %vm912, %v900, %v915
        %v917 = vsel %vm911, %v914, %v916
        %v918 = vsel %vm910, %v897, %v900
        %v919 = vsel %vm913, %v906, 920167782
        %v920 = vsel %vm912, %v903, %v919
        %v921 = vsel %vm911, %v918, %v920
        %v922 = vsel %vm910, %v900, %v903
        %v923 = vsel %vm913, %v909, 1326507024
        %v924 = vsel %vm912, %v906, %v923
        %v925 = vsel %vm911, %v922, %v924
        %v926 = vshll.u32 %v886, 8
        %v927 = vmul.u32.u64.compose %v926, %v925
        %v928 = vextract.low.u32 %v927
        %v929 = vextract.high.u32 %v927
        %v930 = vmul.u32.u64.compose %v926, %v921
        %v931 = vextract.low.u32 %v930
        %v932 = vextract.high.u32 %v930
        %v933 = vmul.u32 %v926, %v917
        %v934 = vadd.s32 %v929, %v931
        %vm935 = vc.u32 %v929, %v931
        %v936 = vadd.s32 %v932, 1
        %v937 = vsel %vm935, %v936, %v932
        %v938 = vadd.s32 %v933, %v937
        %v939 = vadd.s32 %v938, 536870912
        %v940 = vshrl.u32 %v939, 30
        %v941 = vshll.u32 %v940, 30
        %v942 = vsub.s32 %v938, %v941
        %vm943 = vcmp.lt.s32.totalorder %v942, 0
        %v944 = vsub.s32 0, %v942
        %v945 = vsel %vm943, %v944, %v942
        %v946 = vclz %v945
        %v947 = vsub.s32 %v946, 2
        %vm948 = vcmp.gt.s32.totalorder 0, %v947
        %v949 = vsel %vm948, 0, %v947
        %v950 = vsub.s32 32, %v949
        %v951 = vshll.u32 %v942, %v949
        %v952 = vshrl.u32 %v934, %v950
        %v953 = vor.u32 %v951, %v952
        %v954 = vsub.s32 4294967266, %v949
        %v955 = vadd.s32 %v954, 127
        %v956 = vshll.u32 %v955, 23
        %v957 = vor.u32 4788187, %v956
        %v958 = vand.u32 2147483647, %v957
        %v960 = vcvt.s32.f32 %v953
        %v961 = vmul.f32 %v960, %v958
        %v962 = vxor.u32 %v961, 2147483648
        %v963 = vsel %vm880, %v962, %v961
        %v964 = vsub.s32 4, %v940
        %v965 = vsel %vm880, %v964, %v940
        %v966 = vsel %vm879, %v428, %v963
        %v967 = vsel %vm879, 0, %v965
        %v968 = vcosq.f32.pop %v966
        %v969 = vsinq.f32.pop %v966
        %vm970 = vweird.f32 %v428
        %v971 = vadd.s32 %v967, 3
        %v972 = vand.u32 %v971, 3
        %vm973 = vcmp.lt.s32.totalorder %v972, 2
        %vm974 = vcmp.eq.s32.totalorder %v972, 0
        %v975 = vxor.u32 %v969, 2147483648
        %v976 = vsel %vm974, %v968, %v975
        %vm977 = vcmp.eq.s32.totalorder %v972, 2
        %v978 = vxor.u32 %v968, 2147483648
        %v979 = vsel %vm977, %v978, %v969
        %v980 = vsel %vm973, %v976, %v979
        %v981 = vsel %vm970, nan, %v980
        %v982 = vand.u32 2147483647, %v430
        %vm983 = vcmp.le.f32.partialorder %v982, 0.7853982
        %vm984 = vcmp.lt.s32.totalorder %v430, 0
        %v985 = vand.u32 %v430, 2139095040
        %v986 = vshrl.u32 %v985, 23
        %v987 = vsub.s32 %v986, 127
        %v988 = vand.u32 2147483647, %v430
        %v989 = vand.u32 %v988, 8388607
        %v990 = vor.u32 %v989, 8388608
        %v991 = vsub.s32 0, %v990
        %v992 = vadd.s32 %v987, 1
        %vm993 = vcmp.gt.s32.totalorder %v992, 0
        %v994 = vsel %vm993, %v992, 0
        %v995 = vshrl.u32 %v994, 5
        %v996 = vand.u32 %v994, 31
        %v997 = vsub.s32 32, %v996
        %v998 = vshrl.u32 683565275, %v997
        %v999 = vshll.u32 683565275, %v996
        %v1000 = vshrl.u32 2475754826, %v997
        %v1001 = vor.u32 %v999, %v1000
        %v1002 = vshll.u32 2475754826, %v996
        %v1003 = vshrl.u32 2131351028, %v997
        %v1004 = vor.u32 %v1002, %v1003
        %v1005 = vshll.u32 2131351028, %v996
        %v1006 = vshrl.u32 2102212464, %v997
        %v1007 = vor.u32 %v1005, %v1006
        %v1008 = vshll.u32 2102212464, %v996
        %v1009 = vshrl.u32 920167782, %v997
        %v1010 = vor.u32 %v1008, %v1009
        %v1011 = vshll.u32 920167782, %v996
        %v1012 = vshrl.u32 1326507024, %v997
        %v1013 = vor.u32 %v1011, %v1012
        %vm1014 = vcmp.lt.s32.totalorder %v995, 1
        %vm1015 = vcmp.lt.s32.totalorder %v995, 2
        %vm1016 = vcmp.lt.s32.totalorder %v995, 3
        %vm1017 = vcmp.lt.s32.totalorder %v995, 4
        %v1018 = vsel %vm1014, %v998, %v1001
        %v1019 = vsel %vm1017, %v1007, 2102212464
        %v1020 = vsel %vm1016, %v1004, %v1019
        %v1021 = vsel %vm1015, %v1018, %v1020
        %v1022 = vsel %vm1014, %v1001, %v1004
        %v1023 = vsel %vm1017, %v1010, 920167782
        %v1024 = vsel %vm1016, %v1007, %v1023
        %v1025 = vsel %vm1015, %v1022, %v1024
        %v1026 = vsel %vm1014, %v1004, %v1007
        %v1027 = vsel %vm1017, %v1013, 1326507024
        %v1028 = vsel %vm1016, %v1010, %v1027
        %v1029 = vsel %vm1015, %v1026, %v1028
        %v1030 = vshll.u32 %v990, 8
        %v1031 = vmul.u32.u64.compose %v1030, %v1029
        %v1032 = vextract.low.u32 %v1031
        %v1033 = vextract.high.u32 %v1031
        %v1034 = vmul.u32.u64.compose %v1030, %v1025
        %v1035 = vextract.low.u32 %v1034
        %v1036 = vextract.high.u32 %v1034
        %v1037 = vmul.u32 %v1030, %v1021
        %v1038 = vadd.s32 %v1033, %v1035
        %vm1039 = vc.u32 %v1033, %v1035
        %v1040 = vadd.s32 %v1036, 1
        %v1041 = vsel %vm1039, %v1040, %v1036
        %v1042 = vadd.s32 %v1037, %v1041
        %v1043 = vadd.s32 %v1042, 536870912
        %v1044 = vshrl.u32 %v1043, 30
        %v1045 = vshll.u32 %v1044, 30
        %v1046 = vsub.s32 %v1042, %v1045
        %vm1047 = vcmp.lt.s32.totalorder %v1046, 0
        %v1048 = vsub.s32 0, %v1046
        %v1049 = vsel %vm1047, %v1048, %v1046
        %v1050 = vclz %v1049
        %v1051 = vsub.s32 %v1050, 2
        %vm1052 = vcmp.gt.s32.totalorder 0, %v1051
        %v1053 = vsel %vm1052, 0, %v1051
        %v1054 = vsub.s32 32, %v1053
        %v1055 = vshll.u32 %v1046, %v1053
        %v1056 = vshrl.u32 %v1038, %v1054
        %v1057 = vor.u32 %v1055, %v1056
        %v1058 = vsub.s32 4294967266, %v1053
        %v1059 = vadd.s32 %v1058, 127
        %v1060 = vshll.u32 %v1059, 23
        %v1061 = vor.u32 4788187, %v1060
        %v1062 = vand.u32 2147483647, %v1061
        %v1064 = vcvt.s32.f32 %v1057
        %v1065 = vmul.f32 %v1064, %v1062
        %v1066 = vxor.u32 %v1065, 2147483648
        %v1067 = vsel %vm984, %v1066, %v1065
        %v1068 = vsub.s32 4, %v1044
        %v1069 = vsel %vm984, %v1068, %v1044
        %v1070 = vsel %vm983, %v430, %v1067
        %v1071 = vsel %vm983, 0, %v1069
        %v1072 = vcosq.f32.pop %v1070
        %v1073 = vsinq.f32.pop %v1070
        %vm1074 = vweird.f32 %v430
        %v1075 = vadd.s32 %v1071, 3
        %v1076 = vand.u32 %v1075, 3
        %vm1077 = vcmp.lt.s32.totalorder %v1076, 2
        %vm1078 = vcmp.eq.s32.totalorder %v1076, 0
        %v1079 = vxor.u32 %v1073, 2147483648
        %v1080 = vsel %vm1078, %v1072, %v1079
        %vm1081 = vcmp.eq.s32.totalorder %v1076, 2
        %v1082 = vxor.u32 %v1072, 2147483648
        %v1083 = vsel %vm1081, %v1082, %v1073
        %v1084 = vsel %vm1077, %v1080, %v1083
        %v1085 = vsel %vm1074, nan, %v1084
        %v1086 = vand.u32 2147483647, %v434
        %vm1087 = vcmp.le.f32.partialorder %v1086, 0.7853982
        %vm1088 = vcmp.lt.s32.totalorder %v434, 0
        %v1089 = vand.u32 %v434, 2139095040
        %v1090 = vshrl.u32 %v1089, 23
        %v1091 = vsub.s32 %v1090, 127
        %v1092 = vand.u32 2147483647, %v434
        %v1093 = vand.u32 %v1092, 8388607
        %v1094 = vor.u32 %v1093, 8388608
        %v1095 = vsub.s32 0, %v1094
        %v1096 = vadd.s32 %v1091, 1
        %vm1097 = vcmp.gt.s32.totalorder %v1096, 0
        %v1098 = vsel %vm1097, %v1096, 0
        %v1099 = vshrl.u32 %v1098, 5
        %v1100 = vand.u32 %v1098, 31
        %v1101 = vsub.s32 32, %v1100
        %v1102 = vshrl.u32 683565275, %v1101
        %v1103 = vshll.u32 683565275, %v1100
        %v1104 = vshrl.u32 2475754826, %v1101
        %v1105 = vor.u32 %v1103, %v1104
        %v1106 = vshll.u32 2475754826, %v1100
        %v1107 = vshrl.u32 2131351028, %v1101
        %v1108 = vor.u32 %v1106, %v1107
        %v1109 = vshll.u32 2131351028, %v1100
        %v1110 = vshrl.u32 2102212464, %v1101
        %v1111 = vor.u32 %v1109, %v1110
        %v1112 = vshll.u32 2102212464, %v1100
        %v1113 = vshrl.u32 920167782, %v1101
        %v1114 = vor.u32 %v1112, %v1113
        %v1115 = vshll.u32 920167782, %v1100
        %v1116 = vshrl.u32 1326507024, %v1101
        %v1117 = vor.u32 %v1115, %v1116
        %vm1118 = vcmp.lt.s32.totalorder %v1099, 1
        %vm1119 = vcmp.lt.s32.totalorder %v1099, 2
        %vm1120 = vcmp.lt.s32.totalorder %v1099, 3
        %vm1121 = vcmp.lt.s32.totalorder %v1099, 4
        %v1122 = vsel %vm1118, %v1102, %v1105
        %v1123 = vsel %vm1121, %v1111, 2102212464
        %v1124 = vsel %vm1120, %v1108, %v1123
        %v1125 = vsel %vm1119, %v1122, %v1124
        %v1126 = vsel %vm1118, %v1105, %v1108
        %v1127 = vsel %vm1121, %v1114, 920167782
        %v1128 = vsel %vm1120, %v1111, %v1127
        %v1129 = vsel %vm1119, %v1126, %v1128
        %v1130 = vsel %vm1118, %v1108, %v1111
        %v1131 = vsel %vm1121, %v1117, 1326507024
        %v1132 = vsel %vm1120, %v1114, %v1131
        %v1133 = vsel %vm1119, %v1130, %v1132
        %v1134 = vshll.u32 %v1094, 8
        %v1135 = vmul.u32.u64.compose %v1134, %v1133
        %v1136 = vextract.low.u32 %v1135
        %v1137 = vextract.high.u32 %v1135
        %v1138 = vmul.u32.u64.compose %v1134, %v1129
        %v1139 = vextract.low.u32 %v1138
        %v1140 = vextract.high.u32 %v1138
        %v1141 = vmul.u32 %v1134, %v1125
        %v1142 = vadd.s32 %v1137, %v1139
        %vm1143 = vc.u32 %v1137, %v1139
        %v1144 = vadd.s32 %v1140, 1
        %v1145 = vsel %vm1143, %v1144, %v1140
        %v1146 = vadd.s32 %v1141, %v1145
        %v1147 = vadd.s32 %v1146, 536870912
        %v1148 = vshrl.u32 %v1147, 30
        %v1149 = vshll.u32 %v1148, 30
        %v1150 = vsub.s32 %v1146, %v1149
        %vm1151 = vcmp.lt.s32.totalorder %v1150, 0
        %v1152 = vsub.s32 0, %v1150
        %v1153 = vsel %vm1151, %v1152, %v1150
        %v1154 = vclz %v1153
        %v1155 = vsub.s32 %v1154, 2
        %vm1156 = vcmp.gt.s32.totalorder 0, %v1155
        %v1157 = vsel %vm1156, 0, %v1155
        %v1158 = vsub.s32 32, %v1157
        %v1159 = vshll.u32 %v1150, %v1157
        %v1160 = vshrl.u32 %v1142, %v1158
        %v1161 = vor.u32 %v1159, %v1160
        %v1162 = vsub.s32 4294967266, %v1157
        %v1163 = vadd.s32 %v1162, 127
        %v1164 = vshll.u32 %v1163, 23
        %v1165 = vor.u32 4788187, %v1164
        %v1166 = vand.u32 2147483647, %v1165
        %v1168 = vcvt.s32.f32 %v1161
        %v1169 = vmul.f32 %v1168, %v1166
        %v1170 = vxor.u32 %v1169, 2147483648
        %v1171 = vsel %vm1088, %v1170, %v1169
        %v1172 = vsub.s32 4, %v1148
        %v1173 = vsel %vm1088, %v1172, %v1148
        %v1174 = vsel %vm1087, %v434, %v1171
        %v1175 = vsel %vm1087, 0, %v1173
        %v1176 = vcosq.f32.pop %v1174
        %v1177 = vsinq.f32.pop %v1174
        %vm1178 = vweird.f32 %v434
        %v1179 = vadd.s32 %v1175, 3
        %v1180 = vand.u32 %v1179, 3
        %vm1181 = vcmp.lt.s32.totalorder %v1180, 2
        %vm1182 = vcmp.eq.s32.totalorder %v1180, 0
        %v1183 = vxor.u32 %v1177, 2147483648
        %v1184 = vsel %vm1182, %v1176, %v1183
        %vm1185 = vcmp.eq.s32.totalorder %v1180, 2
        %v1186 = vxor.u32 %v1176, 2147483648
        %v1187 = vsel %vm1185, %v1186, %v1177
        %v1188 = vsel %vm1181, %v1184, %v1187
        %v1189 = vsel %vm1178, nan, %v1188
        %v1190 = vand.u32 2147483647, %v436
        %vm1191 = vcmp.le.f32.partialorder %v1190, 0.7853982
        %vm1192 = vcmp.lt.s32.totalorder %v436, 0
        %v1193 = vand.u32 %v436, 2139095040
        %v1194 = vshrl.u32 %v1193, 23
        %v1195 = vsub.s32 %v1194, 127
        %v1196 = vand.u32 2147483647, %v436
        %v1197 = vand.u32 %v1196, 8388607
        %v1198 = vor.u32 %v1197, 8388608
        %v1199 = vsub.s32 0, %v1198
        %v1200 = vadd.s32 %v1195, 1
        %vm1201 = vcmp.gt.s32.totalorder %v1200, 0
        %v1202 = vsel %vm1201, %v1200, 0
        %v1203 = vshrl.u32 %v1202, 5
        %v1204 = vand.u32 %v1202, 31
        %v1205 = vsub.s32 32, %v1204
        %v1206 = vshrl.u32 683565275, %v1205
        %v1207 = vshll.u32 683565275, %v1204
        %v1208 = vshrl.u32 2475754826, %v1205
        %v1209 = vor.u32 %v1207, %v1208
        %v1210 = vshll.u32 2475754826, %v1204
        %v1211 = vshrl.u32 2131351028, %v1205
        %v1212 = vor.u32 %v1210, %v1211
        %v1213 = vshll.u32 2131351028, %v1204
        %v1214 = vshrl.u32 2102212464, %v1205
        %v1215 = vor.u32 %v1213, %v1214
        %v1216 = vshll.u32 2102212464, %v1204
        %v1217 = vshrl.u32 920167782, %v1205
        %v1218 = vor.u32 %v1216, %v1217
        %v1219 = vshll.u32 920167782, %v1204
        %v1220 = vshrl.u32 1326507024, %v1205
        %v1221 = vor.u32 %v1219, %v1220
        %vm1222 = vcmp.lt.s32.totalorder %v1203, 1
        %vm1223 = vcmp.lt.s32.totalorder %v1203, 2
        %vm1224 = vcmp.lt.s32.totalorder %v1203, 3
        %vm1225 = vcmp.lt.s32.totalorder %v1203, 4
        %v1226 = vsel %vm1222, %v1206, %v1209
        %v1227 = vsel %vm1225, %v1215, 2102212464
        %v1228 = vsel %vm1224, %v1212, %v1227
        %v1229 = vsel %vm1223, %v1226, %v1228
        %v1230 = vsel %vm1222, %v1209, %v1212
        %v1231 = vsel %vm1225, %v1218, 920167782
        %v1232 = vsel %vm1224, %v1215, %v1231
        %v1233 = vsel %vm1223, %v1230, %v1232
        %v1234 = vsel %vm1222, %v1212, %v1215
        %v1235 = vsel %vm1225, %v1221, 1326507024
        %v1236 = vsel %vm1224, %v1218, %v1235
        %v1237 = vsel %vm1223, %v1234, %v1236
        %v1238 = vshll.u32 %v1198, 8
        %v1239 = vmul.u32.u64.compose %v1238, %v1237
        %v1240 = vextract.low.u32 %v1239
        %v1241 = vextract.high.u32 %v1239
        %v1242 = vmul.u32.u64.compose %v1238, %v1233
        %v1243 = vextract.low.u32 %v1242
        %v1244 = vextract.high.u32 %v1242
        %v1245 = vmul.u32 %v1238, %v1229
        %v1246 = vadd.s32 %v1241, %v1243
        %vm1247 = vc.u32 %v1241, %v1243
        %v1248 = vadd.s32 %v1244, 1
        %v1249 = vsel %vm1247, %v1248, %v1244
        %v1250 = vadd.s32 %v1245, %v1249
        %v1251 = vadd.s32 %v1250, 536870912
        %v1252 = vshrl.u32 %v1251, 30
        %v1253 = vshll.u32 %v1252, 30
        %v1254 = vsub.s32 %v1250, %v1253
        %vm1255 = vcmp.lt.s32.totalorder %v1254, 0
        %v1256 = vsub.s32 0, %v1254
        %v1257 = vsel %vm1255, %v1256, %v1254
        %v1258 = vclz %v1257
        %v1259 = vsub.s32 %v1258, 2
        %vm1260 = vcmp.gt.s32.totalorder 0, %v1259
        %v1261 = vsel %vm1260, 0, %v1259
        %v1262 = vsub.s32 32, %v1261
        %v1263 = vshll.u32 %v1254, %v1261
        %v1264 = vshrl.u32 %v1246, %v1262
        %v1265 = vor.u32 %v1263, %v1264
        %v1266 = vsub.s32 4294967266, %v1261
        %v1267 = vadd.s32 %v1266, 127
        %v1268 = vshll.u32 %v1267, 23
        %v1269 = vor.u32 4788187, %v1268
        %v1270 = vand.u32 2147483647, %v1269
        %v1272 = vcvt.s32.f32 %v1265
        %v1273 = vmul.f32 %v1272, %v1270
        %v1274 = vxor.u32 %v1273, 2147483648
        %v1275 = vsel %vm1192, %v1274, %v1273
        %v1276 = vsub.s32 4, %v1252
        %v1277 = vsel %vm1192, %v1276, %v1252
        %v1278 = vsel %vm1191, %v436, %v1275
        %v1279 = vsel %vm1191, 0, %v1277
        %v1280 = vcosq.f32.pop %v1278
        %v1281 = vsinq.f32.pop %v1278
        %vm1282 = vweird.f32 %v436
        %v1283 = vadd.s32 %v1279, 3
        %v1284 = vand.u32 %v1283, 3
        %vm1285 = vcmp.lt.s32.totalorder %v1284, 2
        %vm1286 = vcmp.eq.s32.totalorder %v1284, 0
        %v1287 = vxor.u32 %v1281, 2147483648
        %v1288 = vsel %vm1286, %v1280, %v1287
        %vm1289 = vcmp.eq.s32.totalorder %v1284, 2
        %v1290 = vxor.u32 %v1280, 2147483648
        %v1291 = vsel %vm1289, %v1290, %v1281
        %v1292 = vsel %vm1285, %v1288, %v1291
        %v1293 = vsel %vm1282, nan, %v1292
        %v1294 = vand.u32 2147483647, %v440
        %vm1295 = vcmp.le.f32.partialorder %v1294, 0.7853982
        %vm1296 = vcmp.lt.s32.totalorder %v440, 0
        %v1297 = vand.u32 %v440, 2139095040
        %v1298 = vshrl.u32 %v1297, 23
        %v1299 = vsub.s32 %v1298, 127
        %v1300 = vand.u32 2147483647, %v440
        %v1301 = vand.u32 %v1300, 8388607
        %v1302 = vor.u32 %v1301, 8388608
        %v1303 = vsub.s32 0, %v1302
        %v1304 = vadd.s32 %v1299, 1
        %vm1305 = vcmp.gt.s32.totalorder %v1304, 0
        %v1306 = vsel %vm1305, %v1304, 0
        %v1307 = vshrl.u32 %v1306, 5
        %v1308 = vand.u32 %v1306, 31
        %v1309 = vsub.s32 32, %v1308
        %v1310 = vshrl.u32 683565275, %v1309
        %v1311 = vshll.u32 683565275, %v1308
        %v1312 = vshrl.u32 2475754826, %v1309
        %v1313 = vor.u32 %v1311, %v1312
        %v1314 = vshll.u32 2475754826, %v1308
        %v1315 = vshrl.u32 2131351028, %v1309
        %v1316 = vor.u32 %v1314, %v1315
        %v1317 = vshll.u32 2131351028, %v1308
        %v1318 = vshrl.u32 2102212464, %v1309
        %v1319 = vor.u32 %v1317, %v1318
        %v1320 = vshll.u32 2102212464, %v1308
        %v1321 = vshrl.u32 920167782, %v1309
        %v1322 = vor.u32 %v1320, %v1321
        %v1323 = vshll.u32 920167782, %v1308
        %v1324 = vshrl.u32 1326507024, %v1309
        %v1325 = vor.u32 %v1323, %v1324
        %vm1326 = vcmp.lt.s32.totalorder %v1307, 1
        %vm1327 = vcmp.lt.s32.totalorder %v1307, 2
        %vm1328 = vcmp.lt.s32.totalorder %v1307, 3
        %vm1329 = vcmp.lt.s32.totalorder %v1307, 4
        %v1330 = vsel %vm1326, %v1310, %v1313
        %v1331 = vsel %vm1329, %v1319, 2102212464
        %v1332 = vsel %vm1328, %v1316, %v1331
        %v1333 = vsel %vm1327, %v1330, %v1332
        %v1334 = vsel %vm1326, %v1313, %v1316
        %v1335 = vsel %vm1329, %v1322, 920167782
        %v1336 = vsel %vm1328, %v1319, %v1335
        %v1337 = vsel %vm1327, %v1334, %v1336
        %v1338 = vsel %vm1326, %v1316, %v1319
        %v1339 = vsel %vm1329, %v1325, 1326507024
        %v1340 = vsel %vm1328, %v1322, %v1339
        %v1341 = vsel %vm1327, %v1338, %v1340
        %v1342 = vshll.u32 %v1302, 8
        %v1343 = vmul.u32.u64.compose %v1342, %v1341
        %v1344 = vextract.low.u32 %v1343
        %v1345 = vextract.high.u32 %v1343
        %v1346 = vmul.u32.u64.compose %v1342, %v1337
        %v1347 = vextract.low.u32 %v1346
        %v1348 = vextract.high.u32 %v1346
        %v1349 = vmul.u32 %v1342, %v1333
        %v1350 = vadd.s32 %v1345, %v1347
        %vm1351 = vc.u32 %v1345, %v1347
        %v1352 = vadd.s32 %v1348, 1
        %v1353 = vsel %vm1351, %v1352, %v1348
        %v1354 = vadd.s32 %v1349, %v1353
        %v1355 = vadd.s32 %v1354, 536870912
        %v1356 = vshrl.u32 %v1355, 30
        %v1357 = vshll.u32 %v1356, 30
        %v1358 = vsub.s32 %v1354, %v1357
        %vm1359 = vcmp.lt.s32.totalorder %v1358, 0
        %v1360 = vsub.s32 0, %v1358
        %v1361 = vsel %vm1359, %v1360, %v1358
        %v1362 = vclz %v1361
        %v1363 = vsub.s32 %v1362, 2
        %vm1364 = vcmp.gt.s32.totalorder 0, %v1363
        %v1365 = vsel %vm1364, 0, %v1363
        %v1366 = vsub.s32 32, %v1365
        %v1367 = vshll.u32 %v1358, %v1365
        %v1368 = vshrl.u32 %v1350, %v1366
        %v1369 = vor.u32 %v1367, %v1368
        %v1370 = vsub.s32 4294967266, %v1365
        %v1371 = vadd.s32 %v1370, 127
        %v1372 = vshll.u32 %v1371, 23
        %v1373 = vor.u32 4788187, %v1372
        %v1374 = vand.u32 2147483647, %v1373
        %v1376 = vcvt.s32.f32 %v1369
        %v1377 = vmul.f32 %v1376, %v1374
        %v1378 = vxor.u32 %v1377, 2147483648
        %v1379 = vsel %vm1296, %v1378, %v1377
        %v1380 = vsub.s32 4, %v1356
        %v1381 = vsel %vm1296, %v1380, %v1356
        %v1382 = vsel %vm1295, %v440, %v1379
        %v1383 = vsel %vm1295, 0, %v1381
        %v1384 = vcosq.f32.pop %v1382
        %v1385 = vsinq.f32.pop %v1382
        %vm1386 = vweird.f32 %v440
        %v1387 = vadd.s32 %v1383, 3
        %v1388 = vand.u32 %v1387, 3
        %vm1389 = vcmp.lt.s32.totalorder %v1388, 2
        %vm1390 = vcmp.eq.s32.totalorder %v1388, 0
        %v1391 = vxor.u32 %v1385, 2147483648
        %v1392 = vsel %vm1390, %v1384, %v1391
        %vm1393 = vcmp.eq.s32.totalorder %v1388, 2
        %v1394 = vxor.u32 %v1384, 2147483648
        %v1395 = vsel %vm1393, %v1394, %v1385
        %v1396 = vsel %vm1389, %v1392, %v1395
        %v1397 = vsel %vm1386, nan, %v1396
        %v1398 = vand.u32 2147483647, %v442
        %vm1399 = vcmp.le.f32.partialorder %v1398, 0.7853982
        %vm1400 = vcmp.lt.s32.totalorder %v442, 0
        %v1401 = vand.u32 %v442, 2139095040
        %v1402 = vshrl.u32 %v1401, 23
        %v1403 = vsub.s32 %v1402, 127
        %v1404 = vand.u32 2147483647, %v442
        %v1405 = vand.u32 %v1404, 8388607
        %v1406 = vor.u32 %v1405, 8388608
        %v1407 = vsub.s32 0, %v1406
        %v1408 = vadd.s32 %v1403, 1
        %vm1409 = vcmp.gt.s32.totalorder %v1408, 0
        %v1410 = vsel %vm1409, %v1408, 0
        %v1411 = vshrl.u32 %v1410, 5
        %v1412 = vand.u32 %v1410, 31
        %v1413 = vsub.s32 32, %v1412
        %v1414 = vshrl.u32 683565275, %v1413
        %v1415 = vshll.u32 683565275, %v1412
        %v1416 = vshrl.u32 2475754826, %v1413
        %v1417 = vor.u32 %v1415, %v1416
        %v1418 = vshll.u32 2475754826, %v1412
        %v1419 = vshrl.u32 2131351028, %v1413
        %v1420 = vor.u32 %v1418, %v1419
        %v1421 = vshll.u32 2131351028, %v1412
        %v1422 = vshrl.u32 2102212464, %v1413
        %v1423 = vor.u32 %v1421, %v1422
        %v1424 = vshll.u32 2102212464, %v1412
        %v1425 = vshrl.u32 920167782, %v1413
        %v1426 = vor.u32 %v1424, %v1425
        %v1427 = vshll.u32 920167782, %v1412
        %v1428 = vshrl.u32 1326507024, %v1413
        %v1429 = vor.u32 %v1427, %v1428
        %vm1430 = vcmp.lt.s32.totalorder %v1411, 1
        %vm1431 = vcmp.lt.s32.totalorder %v1411, 2
        %vm1432 = vcmp.lt.s32.totalorder %v1411, 3
        %vm1433 = vcmp.lt.s32.totalorder %v1411, 4
        %v1434 = vsel %vm1430, %v1414, %v1417
        %v1435 = vsel %vm1433, %v1423, 2102212464
        %v1436 = vsel %vm1432, %v1420, %v1435
        %v1437 = vsel %vm1431, %v1434, %v1436
        %v1438 = vsel %vm1430, %v1417, %v1420
        %v1439 = vsel %vm1433, %v1426, 920167782
        %v1440 = vsel %vm1432, %v1423, %v1439
        %v1441 = vsel %vm1431, %v1438, %v1440
        %v1442 = vsel %vm1430, %v1420, %v1423
        %v1443 = vsel %vm1433, %v1429, 1326507024
        %v1444 = vsel %vm1432, %v1426, %v1443
        %v1445 = vsel %vm1431, %v1442, %v1444
        %v1446 = vshll.u32 %v1406, 8
        %v1447 = vmul.u32.u64.compose %v1446, %v1445
        %v1448 = vextract.low.u32 %v1447
        %v1449 = vextract.high.u32 %v1447
        %v1450 = vmul.u32.u64.compose %v1446, %v1441
        %v1451 = vextract.low.u32 %v1450
        %v1452 = vextract.high.u32 %v1450
        %v1453 = vmul.u32 %v1446, %v1437
        %v1454 = vadd.s32 %v1449, %v1451
        %vm1455 = vc.u32 %v1449, %v1451
        %v1456 = vadd.s32 %v1452, 1
        %v1457 = vsel %vm1455, %v1456, %v1452
        %v1458 = vadd.s32 %v1453, %v1457
        %v1459 = vadd.s32 %v1458, 536870912
        %v1460 = vshrl.u32 %v1459, 30
        %v1461 = vshll.u32 %v1460, 30
        %v1462 = vsub.s32 %v1458, %v1461
        %vm1463 = vcmp.lt.s32.totalorder %v1462, 0
        %v1464 = vsub.s32 0, %v1462
        %v1465 = vsel %vm1463, %v1464, %v1462
        %v1466 = vclz %v1465
        %v1467 = vsub.s32 %v1466, 2
        %vm1468 = vcmp.gt.s32.totalorder 0, %v1467
        %v1469 = vsel %vm1468, 0, %v1467
        %v1470 = vsub.s32 32, %v1469
        %v1471 = vshll.u32 %v1462, %v1469
        %v1472 = vshrl.u32 %v1454, %v1470
        %v1473 = vor.u32 %v1471, %v1472
        %v1474 = vsub.s32 4294967266, %v1469
        %v1475 = vadd.s32 %v1474, 127
        %v1476 = vshll.u32 %v1475, 23
        %v1477 = vor.u32 4788187, %v1476
        %v1478 = vand.u32 2147483647, %v1477
        %v1480 = vcvt.s32.f32 %v1473
        %v1481 = vmul.f32 %v1480, %v1478
        %v1482 = vxor.u32 %v1481, 2147483648
        %v1483 = vsel %vm1400, %v1482, %v1481
        %v1484 = vsub.s32 4, %v1460
        %v1485 = vsel %vm1400, %v1484, %v1460
        %v1486 = vsel %vm1399, %v442, %v1483
        %v1487 = vsel %vm1399, 0, %v1485
        %v1488 = vcosq.f32.pop %v1486
        %v1489 = vsinq.f32.pop %v1486
        %vm1490 = vweird.f32 %v442
        %v1491 = vadd.s32 %v1487, 3
        %v1492 = vand.u32 %v1491, 3
        %vm1493 = vcmp.lt.s32.totalorder %v1492, 2
        %vm1494 = vcmp.eq.s32.totalorder %v1492, 0
        %v1495 = vxor.u32 %v1489, 2147483648
        %v1496 = vsel %vm1494, %v1488, %v1495
        %vm1497 = vcmp.eq.s32.totalorder %v1492, 2
        %v1498 = vxor.u32 %v1488, 2147483648
        %v1499 = vsel %vm1497, %v1498, %v1489
        %v1500 = vsel %vm1493, %v1496, %v1499
        %v1501 = vsel %vm1490, nan, %v1500
        %v1502 = vand.u32 2147483647, %v446
        %vm1503 = vcmp.le.f32.partialorder %v1502, 0.7853982
        %vm1504 = vcmp.lt.s32.totalorder %v446, 0
        %v1505 = vand.u32 %v446, 2139095040
        %v1506 = vshrl.u32 %v1505, 23
        %v1507 = vsub.s32 %v1506, 127
        %v1508 = vand.u32 2147483647, %v446
        %v1509 = vand.u32 %v1508, 8388607
        %v1510 = vor.u32 %v1509, 8388608
        %v1511 = vsub.s32 0, %v1510
        %v1512 = vadd.s32 %v1507, 1
        %vm1513 = vcmp.gt.s32.totalorder %v1512, 0
        %v1514 = vsel %vm1513, %v1512, 0
        %v1515 = vshrl.u32 %v1514, 5
        %v1516 = vand.u32 %v1514, 31
        %v1517 = vsub.s32 32, %v1516
        %v1518 = vshrl.u32 683565275, %v1517
        %v1519 = vshll.u32 683565275, %v1516
        %v1520 = vshrl.u32 2475754826, %v1517
        %v1521 = vor.u32 %v1519, %v1520
        %v1522 = vshll.u32 2475754826, %v1516
        %v1523 = vshrl.u32 2131351028, %v1517
        %v1524 = vor.u32 %v1522, %v1523
        %v1525 = vshll.u32 2131351028, %v1516
        %v1526 = vshrl.u32 2102212464, %v1517
        %v1527 = vor.u32 %v1525, %v1526
        %v1528 = vshll.u32 2102212464, %v1516
        %v1529 = vshrl.u32 920167782, %v1517
        %v1530 = vor.u32 %v1528, %v1529
        %v1531 = vshll.u32 920167782, %v1516
        %v1532 = vshrl.u32 1326507024, %v1517
        %v1533 = vor.u32 %v1531, %v1532
        %vm1534 = vcmp.lt.s32.totalorder %v1515, 1
        %vm1535 = vcmp.lt.s32.totalorder %v1515, 2
        %vm1536 = vcmp.lt.s32.totalorder %v1515, 3
        %vm1537 = vcmp.lt.s32.totalorder %v1515, 4
        %v1538 = vsel %vm1534, %v1518, %v1521
        %v1539 = vsel %vm1537, %v1527, 2102212464
        %v1540 = vsel %vm1536, %v1524, %v1539
        %v1541 = vsel %vm1535, %v1538, %v1540
        %v1542 = vsel %vm1534, %v1521, %v1524
        %v1543 = vsel %vm1537, %v1530, 920167782
        %v1544 = vsel %vm1536, %v1527, %v1543
        %v1545 = vsel %vm1535, %v1542, %v1544
        %v1546 = vsel %vm1534, %v1524, %v1527
        %v1547 = vsel %vm1537, %v1533, 1326507024
        %v1548 = vsel %vm1536, %v1530, %v1547
        %v1549 = vsel %vm1535, %v1546, %v1548
        %v1550 = vshll.u32 %v1510, 8
        %v1551 = vmul.u32.u64.compose %v1550, %v1549
        %v1552 = vextract.low.u32 %v1551
        %v1553 = vextract.high.u32 %v1551
        %v1554 = vmul.u32.u64.compose %v1550, %v1545
        %v1555 = vextract.low.u32 %v1554
        %v1556 = vextract.high.u32 %v1554
        %v1557 = vmul.u32 %v1550, %v1541
        %v1558 = vadd.s32 %v1553, %v1555
        %vm1559 = vc.u32 %v1553, %v1555
        %v1560 = vadd.s32 %v1556, 1
        %v1561 = vsel %vm1559, %v1560, %v1556
        %v1562 = vadd.s32 %v1557, %v1561
        %v1563 = vadd.s32 %v1562, 536870912
        %v1564 = vshrl.u32 %v1563, 30
        %v1565 = vshll.u32 %v1564, 30
        %v1566 = vsub.s32 %v1562, %v1565
        %vm1567 = vcmp.lt.s32.totalorder %v1566, 0
        %v1568 = vsub.s32 0, %v1566
        %v1569 = vsel %vm1567, %v1568, %v1566
        %v1570 = vclz %v1569
        %v1571 = vsub.s32 %v1570, 2
        %vm1572 = vcmp.gt.s32.totalorder 0, %v1571
        %v1573 = vsel %vm1572, 0, %v1571
        %v1574 = vsub.s32 32, %v1573
        %v1575 = vshll.u32 %v1566, %v1573
        %v1576 = vshrl.u32 %v1558, %v1574
        %v1577 = vor.u32 %v1575, %v1576
        %v1578 = vsub.s32 4294967266, %v1573
        %v1579 = vadd.s32 %v1578, 127
        %v1580 = vshll.u32 %v1579, 23
        %v1581 = vor.u32 4788187, %v1580
        %v1582 = vand.u32 2147483647, %v1581
        %v1584 = vcvt.s32.f32 %v1577
        %v1585 = vmul.f32 %v1584, %v1582
        %v1586 = vxor.u32 %v1585, 2147483648
        %v1587 = vsel %vm1504, %v1586, %v1585
        %v1588 = vsub.s32 4, %v1564
        %v1589 = vsel %vm1504, %v1588, %v1564
        %v1590 = vsel %vm1503, %v446, %v1587
        %v1591 = vsel %vm1503, 0, %v1589
        %v1592 = vcosq.f32.pop %v1590
        %v1593 = vsinq.f32.pop %v1590
        %vm1594 = vweird.f32 %v446
        %v1595 = vadd.s32 %v1591, 3
        %v1596 = vand.u32 %v1595, 3
        %vm1597 = vcmp.lt.s32.totalorder %v1596, 2
        %vm1598 = vcmp.eq.s32.totalorder %v1596, 0
        %v1599 = vxor.u32 %v1593, 2147483648
        %v1600 = vsel %vm1598, %v1592, %v1599
        %vm1601 = vcmp.eq.s32.totalorder %v1596, 2
        %v1602 = vxor.u32 %v1592, 2147483648
        %v1603 = vsel %vm1601, %v1602, %v1593
        %v1604 = vsel %vm1597, %v1600, %v1603
        %v1605 = vsel %vm1594, nan, %v1604
        %v1606 = vand.u32 2147483647, %v448
        %vm1607 = vcmp.le.f32.partialorder %v1606, 0.7853982
        %vm1608 = vcmp.lt.s32.totalorder %v448, 0
        %v1609 = vand.u32 %v448, 2139095040
        %v1610 = vshrl.u32 %v1609, 23
        %v1611 = vsub.s32 %v1610, 127
        %v1612 = vand.u32 2147483647, %v448
        %v1613 = vand.u32 %v1612, 8388607
        %v1614 = vor.u32 %v1613, 8388608
        %v1615 = vsub.s32 0, %v1614
        %v1616 = vadd.s32 %v1611, 1
        %vm1617 = vcmp.gt.s32.totalorder %v1616, 0
        %v1618 = vsel %vm1617, %v1616, 0
        %v1619 = vshrl.u32 %v1618, 5
        %v1620 = vand.u32 %v1618, 31
        %v1621 = vsub.s32 32, %v1620
        %v1622 = vshrl.u32 683565275, %v1621
        %v1623 = vshll.u32 683565275, %v1620
        %v1624 = vshrl.u32 2475754826, %v1621
        %v1625 = vor.u32 %v1623, %v1624
        %v1626 = vshll.u32 2475754826, %v1620
        %v1627 = vshrl.u32 2131351028, %v1621
        %v1628 = vor.u32 %v1626, %v1627
        %v1629 = vshll.u32 2131351028, %v1620
        %v1630 = vshrl.u32 2102212464, %v1621
        %v1631 = vor.u32 %v1629, %v1630
        %v1632 = vshll.u32 2102212464, %v1620
        %v1633 = vshrl.u32 920167782, %v1621
        %v1634 = vor.u32 %v1632, %v1633
        %v1635 = vshll.u32 920167782, %v1620
        %v1636 = vshrl.u32 1326507024, %v1621
        %v1637 = vor.u32 %v1635, %v1636
        %vm1638 = vcmp.lt.s32.totalorder %v1619, 1
        %vm1639 = vcmp.lt.s32.totalorder %v1619, 2
        %vm1640 = vcmp.lt.s32.totalorder %v1619, 3
        %vm1641 = vcmp.lt.s32.totalorder %v1619, 4
        %v1642 = vsel %vm1638, %v1622, %v1625
        %v1643 = vsel %vm1641, %v1631, 2102212464
        %v1644 = vsel %vm1640, %v1628, %v1643
        %v1645 = vsel %vm1639, %v1642, %v1644
        %v1646 = vsel %vm1638, %v1625, %v1628
        %v1647 = vsel %vm1641, %v1634, 920167782
        %v1648 = vsel %vm1640, %v1631, %v1647
        %v1649 = vsel %vm1639, %v1646, %v1648
        %v1650 = vsel %vm1638, %v1628, %v1631
        %v1651 = vsel %vm1641, %v1637, 1326507024
        %v1652 = vsel %vm1640, %v1634, %v1651
        %v1653 = vsel %vm1639, %v1650, %v1652
        %v1654 = vshll.u32 %v1614, 8
        %v1655 = vmul.u32.u64.compose %v1654, %v1653
        %v1656 = vextract.low.u32 %v1655
        %v1657 = vextract.high.u32 %v1655
        %v1658 = vmul.u32.u64.compose %v1654, %v1649
        %v1659 = vextract.low.u32 %v1658
        %v1660 = vextract.high.u32 %v1658
        %v1661 = vmul.u32 %v1654, %v1645
        %v1662 = vadd.s32 %v1657, %v1659
        %vm1663 = vc.u32 %v1657, %v1659
        %v1664 = vadd.s32 %v1660, 1
        %v1665 = vsel %vm1663, %v1664, %v1660
        %v1666 = vadd.s32 %v1661, %v1665
        %v1667 = vadd.s32 %v1666, 536870912
        %v1668 = vshrl.u32 %v1667, 30
        %v1669 = vshll.u32 %v1668, 30
        %v1670 = vsub.s32 %v1666, %v1669
        %vm1671 = vcmp.lt.s32.totalorder %v1670, 0
        %v1672 = vsub.s32 0, %v1670
        %v1673 = vsel %vm1671, %v1672, %v1670
        %v1674 = vclz %v1673
        %v1675 = vsub.s32 %v1674, 2
        %vm1676 = vcmp.gt.s32.totalorder 0, %v1675
        %v1677 = vsel %vm1676, 0, %v1675
        %v1678 = vsub.s32 32, %v1677
        %v1679 = vshll.u32 %v1670, %v1677
        %v1680 = vshrl.u32 %v1662, %v1678
        %v1681 = vor.u32 %v1679, %v1680
        %v1682 = vsub.s32 4294967266, %v1677
        %v1683 = vadd.s32 %v1682, 127
        %v1684 = vshll.u32 %v1683, 23
        %v1685 = vor.u32 4788187, %v1684
        %v1686 = vand.u32 2147483647, %v1685
        %v1688 = vcvt.s32.f32 %v1681
        %v1689 = vmul.f32 %v1688, %v1686
        %v1690 = vxor.u32 %v1689, 2147483648
        %v1691 = vsel %vm1608, %v1690, %v1689
        %v1692 = vsub.s32 4, %v1668
        %v1693 = vsel %vm1608, %v1692, %v1668
        %v1694 = vsel %vm1607, %v448, %v1691
        %v1695 = vsel %vm1607, 0, %v1693
        %v1696 = vcosq.f32.pop %v1694
        %v1697 = vsinq.f32.pop %v1694
        %vm1698 = vweird.f32 %v448
        %v1699 = vadd.s32 %v1695, 3
        %v1700 = vand.u32 %v1699, 3
        %vm1701 = vcmp.lt.s32.totalorder %v1700, 2
        %vm1702 = vcmp.eq.s32.totalorder %v1700, 0
        %v1703 = vxor.u32 %v1697, 2147483648
        %v1704 = vsel %vm1702, %v1696, %v1703
        %vm1705 = vcmp.eq.s32.totalorder %v1700, 2
        %v1706 = vxor.u32 %v1696, 2147483648
        %v1707 = vsel %vm1705, %v1706, %v1697
        %v1708 = vsel %vm1701, %v1704, %v1707
        %v1709 = vsel %vm1698, nan, %v1708
        %v1710 = vand.u32 2147483647, %v452
        %vm1711 = vcmp.le.f32.partialorder %v1710, 0.7853982
        %vm1712 = vcmp.lt.s32.totalorder %v452, 0
        %v1713 = vand.u32 %v452, 2139095040
        %v1714 = vshrl.u32 %v1713, 23
        %v1715 = vsub.s32 %v1714, 127
        %v1716 = vand.u32 2147483647, %v452
        %v1717 = vand.u32 %v1716, 8388607
        %v1718 = vor.u32 %v1717, 8388608
        %v1719 = vsub.s32 0, %v1718
        %v1720 = vadd.s32 %v1715, 1
        %vm1721 = vcmp.gt.s32.totalorder %v1720, 0
        %v1722 = vsel %vm1721, %v1720, 0
        %v1723 = vshrl.u32 %v1722, 5
        %v1724 = vand.u32 %v1722, 31
        %v1725 = vsub.s32 32, %v1724
        %v1726 = vshrl.u32 683565275, %v1725
        %v1727 = vshll.u32 683565275, %v1724
        %v1728 = vshrl.u32 2475754826, %v1725
        %v1729 = vor.u32 %v1727, %v1728
        %v1730 = vshll.u32 2475754826, %v1724
        %v1731 = vshrl.u32 2131351028, %v1725
        %v1732 = vor.u32 %v1730, %v1731
        %v1733 = vshll.u32 2131351028, %v1724
        %v1734 = vshrl.u32 2102212464, %v1725
        %v1735 = vor.u32 %v1733, %v1734
        %v1736 = vshll.u32 2102212464, %v1724
        %v1737 = vshrl.u32 920167782, %v1725
        %v1738 = vor.u32 %v1736, %v1737
        %v1739 = vshll.u32 920167782, %v1724
        %v1740 = vshrl.u32 1326507024, %v1725
        %v1741 = vor.u32 %v1739, %v1740
        %vm1742 = vcmp.lt.s32.totalorder %v1723, 1
        %vm1743 = vcmp.lt.s32.totalorder %v1723, 2
        %vm1744 = vcmp.lt.s32.totalorder %v1723, 3
        %vm1745 = vcmp.lt.s32.totalorder %v1723, 4
        %v1746 = vsel %vm1742, %v1726, %v1729
        %v1747 = vsel %vm1745, %v1735, 2102212464
        %v1748 = vsel %vm1744, %v1732, %v1747
        %v1749 = vsel %vm1743, %v1746, %v1748
        %v1750 = vsel %vm1742, %v1729, %v1732
        %v1751 = vsel %vm1745, %v1738, 920167782
        %v1752 = vsel %vm1744, %v1735, %v1751
        %v1753 = vsel %vm1743, %v1750, %v1752
        %v1754 = vsel %vm1742, %v1732, %v1735
        %v1755 = vsel %vm1745, %v1741, 1326507024
        %v1756 = vsel %vm1744, %v1738, %v1755
        %v1757 = vsel %vm1743, %v1754, %v1756
        %v1758 = vshll.u32 %v1718, 8
        %v1759 = vmul.u32.u64.compose %v1758, %v1757
        %v1760 = vextract.low.u32 %v1759
        %v1761 = vextract.high.u32 %v1759
        %v1762 = vmul.u32.u64.compose %v1758, %v1753
        %v1763 = vextract.low.u32 %v1762
        %v1764 = vextract.high.u32 %v1762
        %v1765 = vmul.u32 %v1758, %v1749
        %v1766 = vadd.s32 %v1761, %v1763
        %vm1767 = vc.u32 %v1761, %v1763
        %v1768 = vadd.s32 %v1764, 1
        %v1769 = vsel %vm1767, %v1768, %v1764
        %v1770 = vadd.s32 %v1765, %v1769
        %v1771 = vadd.s32 %v1770, 536870912
        %v1772 = vshrl.u32 %v1771, 30
        %v1773 = vshll.u32 %v1772, 30
        %v1774 = vsub.s32 %v1770, %v1773
        %vm1775 = vcmp.lt.s32.totalorder %v1774, 0
        %v1776 = vsub.s32 0, %v1774
        %v1777 = vsel %vm1775, %v1776, %v1774
        %v1778 = vclz %v1777
        %v1779 = vsub.s32 %v1778, 2
        %vm1780 = vcmp.gt.s32.totalorder 0, %v1779
        %v1781 = vsel %vm1780, 0, %v1779
        %v1782 = vsub.s32 32, %v1781
        %v1783 = vshll.u32 %v1774, %v1781
        %v1784 = vshrl.u32 %v1766, %v1782
        %v1785 = vor.u32 %v1783, %v1784
        %v1786 = vsub.s32 4294967266, %v1781
        %v1787 = vadd.s32 %v1786, 127
        %v1788 = vshll.u32 %v1787, 23
        %v1789 = vor.u32 4788187, %v1788
        %v1790 = vand.u32 2147483647, %v1789
        %v1792 = vcvt.s32.f32 %v1785
        %v1793 = vmul.f32 %v1792, %v1790
        %v1794 = vxor.u32 %v1793, 2147483648
        %v1795 = vsel %vm1712, %v1794, %v1793
        %v1796 = vsub.s32 4, %v1772
        %v1797 = vsel %vm1712, %v1796, %v1772
        %v1798 = vsel %vm1711, %v452, %v1795
        %v1799 = vsel %vm1711, 0, %v1797
        %v1800 = vcosq.f32.pop %v1798
        %v1801 = vsinq.f32.pop %v1798
        %vm1802 = vweird.f32 %v452
        %v1803 = vadd.s32 %v1799, 3
        %v1804 = vand.u32 %v1803, 3
        %vm1805 = vcmp.lt.s32.totalorder %v1804, 2
        %vm1806 = vcmp.eq.s32.totalorder %v1804, 0
        %v1807 = vxor.u32 %v1801, 2147483648
        %v1808 = vsel %vm1806, %v1800, %v1807
        %vm1809 = vcmp.eq.s32.totalorder %v1804, 2
        %v1810 = vxor.u32 %v1800, 2147483648
        %v1811 = vsel %vm1809, %v1810, %v1801
        %v1812 = vsel %vm1805, %v1808, %v1811
        %v1813 = vsel %vm1802, nan, %v1812
        %v1814 = vand.u32 2147483647, %v454
        %vm1815 = vcmp.le.f32.partialorder %v1814, 0.7853982
        %vm1816 = vcmp.lt.s32.totalorder %v454, 0
        %v1817 = vand.u32 %v454, 2139095040
        %v1818 = vshrl.u32 %v1817, 23
        %v1819 = vsub.s32 %v1818, 127
        %v1820 = vand.u32 2147483647, %v454
        %v1821 = vand.u32 %v1820, 8388607
        %v1822 = vor.u32 %v1821, 8388608
        %v1823 = vsub.s32 0, %v1822
        %v1824 = vadd.s32 %v1819, 1
        %vm1825 = vcmp.gt.s32.totalorder %v1824, 0
        %v1826 = vsel %vm1825, %v1824, 0
        %v1827 = vshrl.u32 %v1826, 5
        %v1828 = vand.u32 %v1826, 31
        %v1829 = vsub.s32 32, %v1828
        %v1830 = vshrl.u32 683565275, %v1829
        %v1831 = vshll.u32 683565275, %v1828
        %v1832 = vshrl.u32 2475754826, %v1829
        %v1833 = vor.u32 %v1831, %v1832
        %v1834 = vshll.u32 2475754826, %v1828
        %v1835 = vshrl.u32 2131351028, %v1829
        %v1836 = vor.u32 %v1834, %v1835
        %v1837 = vshll.u32 2131351028, %v1828
        %v1838 = vshrl.u32 2102212464, %v1829
        %v1839 = vor.u32 %v1837, %v1838
        %v1840 = vshll.u32 2102212464, %v1828
        %v1841 = vshrl.u32 920167782, %v1829
        %v1842 = vor.u32 %v1840, %v1841
        %v1843 = vshll.u32 920167782, %v1828
        %v1844 = vshrl.u32 1326507024, %v1829
        %v1845 = vor.u32 %v1843, %v1844
        %vm1846 = vcmp.lt.s32.totalorder %v1827, 1
        %vm1847 = vcmp.lt.s32.totalorder %v1827, 2
        %vm1848 = vcmp.lt.s32.totalorder %v1827, 3
        %vm1849 = vcmp.lt.s32.totalorder %v1827, 4
        %v1850 = vsel %vm1846, %v1830, %v1833
        %v1851 = vsel %vm1849, %v1839, 2102212464
        %v1852 = vsel %vm1848, %v1836, %v1851
        %v1853 = vsel %vm1847, %v1850, %v1852
        %v1854 = vsel %vm1846, %v1833, %v1836
        %v1855 = vsel %vm1849, %v1842, 920167782
        %v1856 = vsel %vm1848, %v1839, %v1855
        %v1857 = vsel %vm1847, %v1854, %v1856
        %v1858 = vsel %vm1846, %v1836, %v1839
        %v1859 = vsel %vm1849, %v1845, 1326507024
        %v1860 = vsel %vm1848, %v1842, %v1859
        %v1861 = vsel %vm1847, %v1858, %v1860
        %v1862 = vshll.u32 %v1822, 8
        %v1863 = vmul.u32.u64.compose %v1862, %v1861
        %v1864 = vextract.low.u32 %v1863
        %v1865 = vextract.high.u32 %v1863
        %v1866 = vmul.u32.u64.compose %v1862, %v1857
        %v1867 = vextract.low.u32 %v1866
        %v1868 = vextract.high.u32 %v1866
        %v1869 = vmul.u32 %v1862, %v1853
        %v1870 = vadd.s32 %v1865, %v1867
        %vm1871 = vc.u32 %v1865, %v1867
        %v1872 = vadd.s32 %v1868, 1
        %v1873 = vsel %vm1871, %v1872, %v1868
        %v1874 = vadd.s32 %v1869, %v1873
        %v1875 = vadd.s32 %v1874, 536870912
        %v1876 = vshrl.u32 %v1875, 30
        %v1877 = vshll.u32 %v1876, 30
        %v1878 = vsub.s32 %v1874, %v1877
        %vm1879 = vcmp.lt.s32.totalorder %v1878, 0
        %v1880 = vsub.s32 0, %v1878
        %v1881 = vsel %vm1879, %v1880, %v1878
        %v1882 = vclz %v1881
        %v1883 = vsub.s32 %v1882, 2
        %vm1884 = vcmp.gt.s32.totalorder 0, %v1883
        %v1885 = vsel %vm1884, 0, %v1883
        %v1886 = vsub.s32 32, %v1885
        %v1887 = vshll.u32 %v1878, %v1885
        %v1888 = vshrl.u32 %v1870, %v1886
        %v1889 = vor.u32 %v1887, %v1888
        %v1890 = vsub.s32 4294967266, %v1885
        %v1891 = vadd.s32 %v1890, 127
        %v1892 = vshll.u32 %v1891, 23
        %v1893 = vor.u32 4788187, %v1892
        %v1894 = vand.u32 2147483647, %v1893
        %v1896 = vcvt.s32.f32 %v1889
        %v1897 = vmul.f32 %v1896, %v1894
        %v1898 = vxor.u32 %v1897, 2147483648
        %v1899 = vsel %vm1816, %v1898, %v1897
        %v1900 = vsub.s32 4, %v1876
        %v1901 = vsel %vm1816, %v1900, %v1876
        %v1902 = vsel %vm1815, %v454, %v1899
        %v1903 = vsel %vm1815, 0, %v1901
        %v1904 = vcosq.f32.pop %v1902
        %v1905 = vsinq.f32.pop %v1902
        %vm1906 = vweird.f32 %v454
        %v1907 = vadd.s32 %v1903, 3
        %v1908 = vand.u32 %v1907, 3
        %vm1909 = vcmp.lt.s32.totalorder %v1908, 2
        %vm1910 = vcmp.eq.s32.totalorder %v1908, 0
        %v1911 = vxor.u32 %v1905, 2147483648
        %v1912 = vsel %vm1910, %v1904, %v1911
        %vm1913 = vcmp.eq.s32.totalorder %v1908, 2
        %v1914 = vxor.u32 %v1904, 2147483648
        %v1915 = vsel %vm1913, %v1914, %v1905
        %v1916 = vsel %vm1909, %v1912, %v1915
        %v1917 = vsel %vm1906, nan, %v1916
        %v1918 = vand.u32 2147483647, %v458
        %vm1919 = vcmp.le.f32.partialorder %v1918, 0.7853982
        %vm1920 = vcmp.lt.s32.totalorder %v458, 0
        %v1921 = vand.u32 %v458, 2139095040
        %v1922 = vshrl.u32 %v1921, 23
        %v1923 = vsub.s32 %v1922, 127
        %v1924 = vand.u32 2147483647, %v458
        %v1925 = vand.u32 %v1924, 8388607
        %v1926 = vor.u32 %v1925, 8388608
        %v1927 = vsub.s32 0, %v1926
        %v1928 = vadd.s32 %v1923, 1
        %vm1929 = vcmp.gt.s32.totalorder %v1928, 0
        %v1930 = vsel %vm1929, %v1928, 0
        %v1931 = vshrl.u32 %v1930, 5
        %v1932 = vand.u32 %v1930, 31
        %v1933 = vsub.s32 32, %v1932
        %v1934 = vshrl.u32 683565275, %v1933
        %v1935 = vshll.u32 683565275, %v1932
        %v1936 = vshrl.u32 2475754826, %v1933
        %v1937 = vor.u32 %v1935, %v1936
        %v1938 = vshll.u32 2475754826, %v1932
        %v1939 = vshrl.u32 2131351028, %v1933
        %v1940 = vor.u32 %v1938, %v1939
        %v1941 = vshll.u32 2131351028, %v1932
        %v1942 = vshrl.u32 2102212464, %v1933
        %v1943 = vor.u32 %v1941, %v1942
        %v1944 = vshll.u32 2102212464, %v1932
        %v1945 = vshrl.u32 920167782, %v1933
        %v1946 = vor.u32 %v1944, %v1945
        %v1947 = vshll.u32 920167782, %v1932
        %v1948 = vshrl.u32 1326507024, %v1933
        %v1949 = vor.u32 %v1947, %v1948
        %vm1950 = vcmp.lt.s32.totalorder %v1931, 1
        %vm1951 = vcmp.lt.s32.totalorder %v1931, 2
        %vm1952 = vcmp.lt.s32.totalorder %v1931, 3
        %vm1953 = vcmp.lt.s32.totalorder %v1931, 4
        %v1954 = vsel %vm1950, %v1934, %v1937
        %v1955 = vsel %vm1953, %v1943, 2102212464
        %v1956 = vsel %vm1952, %v1940, %v1955
        %v1957 = vsel %vm1951, %v1954, %v1956
        %v1958 = vsel %vm1950, %v1937, %v1940
        %v1959 = vsel %vm1953, %v1946, 920167782
        %v1960 = vsel %vm1952, %v1943, %v1959
        %v1961 = vsel %vm1951, %v1958, %v1960
        %v1962 = vsel %vm1950, %v1940, %v1943
        %v1963 = vsel %vm1953, %v1949, 1326507024
        %v1964 = vsel %vm1952, %v1946, %v1963
        %v1965 = vsel %vm1951, %v1962, %v1964
        %v1966 = vshll.u32 %v1926, 8
        %v1967 = vmul.u32.u64.compose %v1966, %v1965
        %v1968 = vextract.low.u32 %v1967
        %v1969 = vextract.high.u32 %v1967
        %v1970 = vmul.u32.u64.compose %v1966, %v1961
        %v1971 = vextract.low.u32 %v1970
        %v1972 = vextract.high.u32 %v1970
        %v1973 = vmul.u32 %v1966, %v1957
        %v1974 = vadd.s32 %v1969, %v1971
        %vm1975 = vc.u32 %v1969, %v1971
        %v1976 = vadd.s32 %v1972, 1
        %v1977 = vsel %vm1975, %v1976, %v1972
        %v1978 = vadd.s32 %v1973, %v1977
        %v1979 = vadd.s32 %v1978, 536870912
        %v1980 = vshrl.u32 %v1979, 30
        %v1981 = vshll.u32 %v1980, 30
        %v1982 = vsub.s32 %v1978, %v1981
        %vm1983 = vcmp.lt.s32.totalorder %v1982, 0
        %v1984 = vsub.s32 0, %v1982
        %v1985 = vsel %vm1983, %v1984, %v1982
        %v1986 = vclz %v1985
        %v1987 = vsub.s32 %v1986, 2
        %vm1988 = vcmp.gt.s32.totalorder 0, %v1987
        %v1989 = vsel %vm1988, 0, %v1987
        %v1990 = vsub.s32 32, %v1989
        %v1991 = vshll.u32 %v1982, %v1989
        %v1992 = vshrl.u32 %v1974, %v1990
        %v1993 = vor.u32 %v1991, %v1992
        %v1994 = vsub.s32 4294967266, %v1989
        %v1995 = vadd.s32 %v1994, 127
        %v1996 = vshll.u32 %v1995, 23
        %v1997 = vor.u32 4788187, %v1996
        %v1998 = vand.u32 2147483647, %v1997
        %v2000 = vcvt.s32.f32 %v1993
        %v2001 = vmul.f32 %v2000, %v1998
        %v2002 = vxor.u32 %v2001, 2147483648
        %v2003 = vsel %vm1920, %v2002, %v2001
        %v2004 = vsub.s32 4, %v1980
        %v2005 = vsel %vm1920, %v2004, %v1980
        %v2006 = vsel %vm1919, %v458, %v2003
        %v2007 = vsel %vm1919, 0, %v2005
        %v2008 = vcosq.f32.pop %v2006
        %v2009 = vsinq.f32.pop %v2006
        %vm2010 = vweird.f32 %v458
        %v2011 = vadd.s32 %v2007, 3
        %v2012 = vand.u32 %v2011, 3
        %vm2013 = vcmp.lt.s32.totalorder %v2012, 2
        %vm2014 = vcmp.eq.s32.totalorder %v2012, 0
        %v2015 = vxor.u32 %v2009, 2147483648
        %v2016 = vsel %vm2014, %v2008, %v2015
        %vm2017 = vcmp.eq.s32.totalorder %v2012, 2
        %v2018 = vxor.u32 %v2008, 2147483648
        %v2019 = vsel %vm2017, %v2018, %v2009
        %v2020 = vsel %vm2013, %v2016, %v2019
        %v2021 = vsel %vm2010, nan, %v2020
        %v2022 = vand.u32 2147483647, %v460
        %vm2023 = vcmp.le.f32.partialorder %v2022, 0.7853982
        %vm2024 = vcmp.lt.s32.totalorder %v460, 0
        %v2025 = vand.u32 %v460, 2139095040
        %v2026 = vshrl.u32 %v2025, 23
        %v2027 = vsub.s32 %v2026, 127
        %v2028 = vand.u32 2147483647, %v460
        %v2029 = vand.u32 %v2028, 8388607
        %v2030 = vor.u32 %v2029, 8388608
        %v2031 = vsub.s32 0, %v2030
        %v2032 = vadd.s32 %v2027, 1
        %vm2033 = vcmp.gt.s32.totalorder %v2032, 0
        %v2034 = vsel %vm2033, %v2032, 0
        %v2035 = vshrl.u32 %v2034, 5
        %v2036 = vand.u32 %v2034, 31
        %v2037 = vsub.s32 32, %v2036
        %v2038 = vshrl.u32 683565275, %v2037
        %v2039 = vshll.u32 683565275, %v2036
        %v2040 = vshrl.u32 2475754826, %v2037
        %v2041 = vor.u32 %v2039, %v2040
        %v2042 = vshll.u32 2475754826, %v2036
        %v2043 = vshrl.u32 2131351028, %v2037
        %v2044 = vor.u32 %v2042, %v2043
        %v2045 = vshll.u32 2131351028, %v2036
        %v2046 = vshrl.u32 2102212464, %v2037
        %v2047 = vor.u32 %v2045, %v2046
        %v2048 = vshll.u32 2102212464, %v2036
        %v2049 = vshrl.u32 920167782, %v2037
        %v2050 = vor.u32 %v2048, %v2049
        %v2051 = vshll.u32 920167782, %v2036
        %v2052 = vshrl.u32 1326507024, %v2037
        %v2053 = vor.u32 %v2051, %v2052
        %vm2054 = vcmp.lt.s32.totalorder %v2035, 1
        %vm2055 = vcmp.lt.s32.totalorder %v2035, 2
        %vm2056 = vcmp.lt.s32.totalorder %v2035, 3
        %vm2057 = vcmp.lt.s32.totalorder %v2035, 4
        %v2058 = vsel %vm2054, %v2038, %v2041
        %v2059 = vsel %vm2057, %v2047, 2102212464
        %v2060 = vsel %vm2056, %v2044, %v2059
        %v2061 = vsel %vm2055, %v2058, %v2060
        %v2062 = vsel %vm2054, %v2041, %v2044
        %v2063 = vsel %vm2057, %v2050, 920167782
        %v2064 = vsel %vm2056, %v2047, %v2063
        %v2065 = vsel %vm2055, %v2062, %v2064
        %v2066 = vsel %vm2054, %v2044, %v2047
        %v2067 = vsel %vm2057, %v2053, 1326507024
        %v2068 = vsel %vm2056, %v2050, %v2067
        %v2069 = vsel %vm2055, %v2066, %v2068
        %v2070 = vshll.u32 %v2030, 8
        %v2071 = vmul.u32.u64.compose %v2070, %v2069
        %v2072 = vextract.low.u32 %v2071
        %v2073 = vextract.high.u32 %v2071
        %v2074 = vmul.u32.u64.compose %v2070, %v2065
        %v2075 = vextract.low.u32 %v2074
        %v2076 = vextract.high.u32 %v2074
        %v2077 = vmul.u32 %v2070, %v2061
        %v2078 = vadd.s32 %v2073, %v2075
        %vm2079 = vc.u32 %v2073, %v2075
        %v2080 = vadd.s32 %v2076, 1
        %v2081 = vsel %vm2079, %v2080, %v2076
        %v2082 = vadd.s32 %v2077, %v2081
        %v2083 = vadd.s32 %v2082, 536870912
        %v2084 = vshrl.u32 %v2083, 30
        %v2085 = vshll.u32 %v2084, 30
        %v2086 = vsub.s32 %v2082, %v2085
        %vm2087 = vcmp.lt.s32.totalorder %v2086, 0
        %v2088 = vsub.s32 0, %v2086
        %v2089 = vsel %vm2087, %v2088, %v2086
        %v2090 = vclz %v2089
        %v2091 = vsub.s32 %v2090, 2
        %vm2092 = vcmp.gt.s32.totalorder 0, %v2091
        %v2093 = vsel %vm2092, 0, %v2091
        %v2094 = vsub.s32 32, %v2093
        %v2095 = vshll.u32 %v2086, %v2093
        %v2096 = vshrl.u32 %v2078, %v2094
        %v2097 = vor.u32 %v2095, %v2096
        %v2098 = vsub.s32 4294967266, %v2093
        %v2099 = vadd.s32 %v2098, 127
        %v2100 = vshll.u32 %v2099, 23
        %v2101 = vor.u32 4788187, %v2100
        %v2102 = vand.u32 2147483647, %v2101
        %v2104 = vcvt.s32.f32 %v2097
        %v2105 = vmul.f32 %v2104, %v2102
        %v2106 = vxor.u32 %v2105, 2147483648
        %v2107 = vsel %vm2024, %v2106, %v2105
        %v2108 = vsub.s32 4, %v2084
        %v2109 = vsel %vm2024, %v2108, %v2084
        %v2110 = vsel %vm2023, %v460, %v2107
        %v2111 = vsel %vm2023, 0, %v2109
        %v2112 = vcosq.f32.pop %v2110
        %v2113 = vsinq.f32.pop %v2110
        %vm2114 = vweird.f32 %v460
        %v2115 = vadd.s32 %v2111, 3
        %v2116 = vand.u32 %v2115, 3
        %vm2117 = vcmp.lt.s32.totalorder %v2116, 2
        %vm2118 = vcmp.eq.s32.totalorder %v2116, 0
        %v2119 = vxor.u32 %v2113, 2147483648
        %v2120 = vsel %vm2118, %v2112, %v2119
        %vm2121 = vcmp.eq.s32.totalorder %v2116, 2
        %v2122 = vxor.u32 %v2112, 2147483648
        %v2123 = vsel %vm2121, %v2122, %v2113
        %v2124 = vsel %vm2117, %v2120, %v2123
        %v2125 = vsel %vm2114, nan, %v2124
        %v2126 = vand.u32 2147483647, %v416
        %vm2127 = vcmp.le.f32.partialorder %v2126, 0.7853982
        %vm2128 = vcmp.lt.s32.totalorder %v416, 0
        %v2129 = vand.u32 %v416, 2139095040
        %v2130 = vshrl.u32 %v2129, 23
        %v2131 = vsub.s32 %v2130, 127
        %v2132 = vand.u32 2147483647, %v416
        %v2133 = vand.u32 %v2132, 8388607
        %v2134 = vor.u32 %v2133, 8388608
        %v2135 = vsub.s32 0, %v2134
        %v2136 = vadd.s32 %v2131, 1
        %vm2137 = vcmp.gt.s32.totalorder %v2136, 0
        %v2138 = vsel %vm2137, %v2136, 0
        %v2139 = vshrl.u32 %v2138, 5
        %v2140 = vand.u32 %v2138, 31
        %v2141 = vsub.s32 32, %v2140
        %v2142 = vshrl.u32 683565275, %v2141
        %v2143 = vshll.u32 683565275, %v2140
        %v2144 = vshrl.u32 2475754826, %v2141
        %v2145 = vor.u32 %v2143, %v2144
        %v2146 = vshll.u32 2475754826, %v2140
        %v2147 = vshrl.u32 2131351028, %v2141
        %v2148 = vor.u32 %v2146, %v2147
        %v2149 = vshll.u32 2131351028, %v2140
        %v2150 = vshrl.u32 2102212464, %v2141
        %v2151 = vor.u32 %v2149, %v2150
        %v2152 = vshll.u32 2102212464, %v2140
        %v2153 = vshrl.u32 920167782, %v2141
        %v2154 = vor.u32 %v2152, %v2153
        %v2155 = vshll.u32 920167782, %v2140
        %v2156 = vshrl.u32 1326507024, %v2141
        %v2157 = vor.u32 %v2155, %v2156
        %vm2158 = vcmp.lt.s32.totalorder %v2139, 1
        %vm2159 = vcmp.lt.s32.totalorder %v2139, 2
        %vm2160 = vcmp.lt.s32.totalorder %v2139, 3
        %vm2161 = vcmp.lt.s32.totalorder %v2139, 4
        %v2162 = vsel %vm2158, %v2142, %v2145
        %v2163 = vsel %vm2161, %v2151, 2102212464
        %v2164 = vsel %vm2160, %v2148, %v2163
        %v2165 = vsel %vm2159, %v2162, %v2164
        %v2166 = vsel %vm2158, %v2145, %v2148
        %v2167 = vsel %vm2161, %v2154, 920167782
        %v2168 = vsel %vm2160, %v2151, %v2167
        %v2169 = vsel %vm2159, %v2166, %v2168
        %v2170 = vsel %vm2158, %v2148, %v2151
        %v2171 = vsel %vm2161, %v2157, 1326507024
        %v2172 = vsel %vm2160, %v2154, %v2171
        %v2173 = vsel %vm2159, %v2170, %v2172
        %v2174 = vshll.u32 %v2134, 8
        %v2175 = vmul.u32.u64.compose %v2174, %v2173
        %v2176 = vextract.low.u32 %v2175
        %v2177 = vextract.high.u32 %v2175
        %v2178 = vmul.u32.u64.compose %v2174, %v2169
        %v2179 = vextract.low.u32 %v2178
        %v2180 = vextract.high.u32 %v2178
        %v2181 = vmul.u32 %v2174, %v2165
        %v2182 = vadd.s32 %v2177, %v2179
        %vm2183 = vc.u32 %v2177, %v2179
        %v2184 = vadd.s32 %v2180, 1
        %v2185 = vsel %vm2183, %v2184, %v2180
        %v2186 = vadd.s32 %v2181, %v2185
        %v2187 = vadd.s32 %v2186, 536870912
        %v2188 = vshrl.u32 %v2187, 30
        %v2189 = vshll.u32 %v2188, 30
        %v2190 = vsub.s32 %v2186, %v2189
        %vm2191 = vcmp.lt.s32.totalorder %v2190, 0
        %v2192 = vsub.s32 0, %v2190
        %v2193 = vsel %vm2191, %v2192, %v2190
        %v2194 = vclz %v2193
        %v2195 = vsub.s32 %v2194, 2
        %vm2196 = vcmp.gt.s32.totalorder 0, %v2195
        %v2197 = vsel %vm2196, 0, %v2195
        %v2198 = vsub.s32 32, %v2197
        %v2199 = vshll.u32 %v2190, %v2197
        %v2200 = vshrl.u32 %v2182, %v2198
        %v2201 = vor.u32 %v2199, %v2200
        %v2202 = vsub.s32 4294967266, %v2197
        %v2203 = vadd.s32 %v2202, 127
        %v2204 = vshll.u32 %v2203, 23
        %v2205 = vor.u32 4788187, %v2204
        %v2206 = vand.u32 2147483647, %v2205
        %v2208 = vcvt.s32.f32 %v2201
        %v2209 = vmul.f32 %v2208, %v2206
        %v2210 = vxor.u32 %v2209, 2147483648
        %v2211 = vsel %vm2128, %v2210, %v2209
        %v2212 = vsub.s32 4, %v2188
        %v2213 = vsel %vm2128, %v2212, %v2188
        %v2214 = vsel %vm2127, %v416, %v2211
        %v2215 = vsel %vm2127, 0, %v2213
        %v2216 = vcosq.f32.pop %v2214
        %v2217 = vsinq.f32.pop %v2214
        %vm2218 = vweird.f32 %v416
        %v2219 = vand.u32 %v2215, 3
        %vm2220 = vcmp.lt.s32.totalorder %v2219, 2
        %vm2221 = vcmp.eq.s32.totalorder %v2219, 0
        %v2222 = vxor.u32 %v2217, 2147483648
        %v2223 = vsel %vm2221, %v2216, %v2222
        %vm2224 = vcmp.eq.s32.totalorder %v2219, 2
        %v2225 = vxor.u32 %v2216, 2147483648
        %v2226 = vsel %vm2224, %v2225, %v2217
        %v2227 = vsel %vm2220, %v2223, %v2226
        %v2228 = vsel %vm2218, nan, %v2227
        %v2229 = vand.u32 2147483647, %v418
        %vm2230 = vcmp.le.f32.partialorder %v2229, 0.7853982
        %vm2231 = vcmp.lt.s32.totalorder %v418, 0
        %v2232 = vand.u32 %v418, 2139095040
        %v2233 = vshrl.u32 %v2232, 23
        %v2234 = vsub.s32 %v2233, 127
        %v2235 = vand.u32 2147483647, %v418
        %v2236 = vand.u32 %v2235, 8388607
        %v2237 = vor.u32 %v2236, 8388608
        %v2238 = vsub.s32 0, %v2237
        %v2239 = vadd.s32 %v2234, 1
        %vm2240 = vcmp.gt.s32.totalorder %v2239, 0
        %v2241 = vsel %vm2240, %v2239, 0
        %v2242 = vshrl.u32 %v2241, 5
        %v2243 = vand.u32 %v2241, 31
        %v2244 = vsub.s32 32, %v2243
        %v2245 = vshrl.u32 683565275, %v2244
        %v2246 = vshll.u32 683565275, %v2243
        %v2247 = vshrl.u32 2475754826, %v2244
        %v2248 = vor.u32 %v2246, %v2247
        %v2249 = vshll.u32 2475754826, %v2243
        %v2250 = vshrl.u32 2131351028, %v2244
        %v2251 = vor.u32 %v2249, %v2250
        %v2252 = vshll.u32 2131351028, %v2243
        %v2253 = vshrl.u32 2102212464, %v2244
        %v2254 = vor.u32 %v2252, %v2253
        %v2255 = vshll.u32 2102212464, %v2243
        %v2256 = vshrl.u32 920167782, %v2244
        %v2257 = vor.u32 %v2255, %v2256
        %v2258 = vshll.u32 920167782, %v2243
        %v2259 = vshrl.u32 1326507024, %v2244
        %v2260 = vor.u32 %v2258, %v2259
        %vm2261 = vcmp.lt.s32.totalorder %v2242, 1
        %vm2262 = vcmp.lt.s32.totalorder %v2242, 2
        %vm2263 = vcmp.lt.s32.totalorder %v2242, 3
        %vm2264 = vcmp.lt.s32.totalorder %v2242, 4
        %v2265 = vsel %vm2261, %v2245, %v2248
        %v2266 = vsel %vm2264, %v2254, 2102212464
        %v2267 = vsel %vm2263, %v2251, %v2266
        %v2268 = vsel %vm2262, %v2265, %v2267
        %v2269 = vsel %vm2261, %v2248, %v2251
        %v2270 = vsel %vm2264, %v2257, 920167782
        %v2271 = vsel %vm2263, %v2254, %v2270
        %v2272 = vsel %vm2262, %v2269, %v2271
        %v2273 = vsel %vm2261, %v2251, %v2254
        %v2274 = vsel %vm2264, %v2260, 1326507024
        %v2275 = vsel %vm2263, %v2257, %v2274
        %v2276 = vsel %vm2262, %v2273, %v2275
        %v2277 = vshll.u32 %v2237, 8
        %v2278 = vmul.u32.u64.compose %v2277, %v2276
        %v2279 = vextract.low.u32 %v2278
        %v2280 = vextract.high.u32 %v2278
        %v2281 = vmul.u32.u64.compose %v2277, %v2272
        %v2282 = vextract.low.u32 %v2281
        %v2283 = vextract.high.u32 %v2281
        %v2284 = vmul.u32 %v2277, %v2268
        %v2285 = vadd.s32 %v2280, %v2282
        %vm2286 = vc.u32 %v2280, %v2282
        %v2287 = vadd.s32 %v2283, 1
        %v2288 = vsel %vm2286, %v2287, %v2283
        %v2289 = vadd.s32 %v2284, %v2288
        %v2290 = vadd.s32 %v2289, 536870912
        %v2291 = vshrl.u32 %v2290, 30
        %v2292 = vshll.u32 %v2291, 30
        %v2293 = vsub.s32 %v2289, %v2292
        %vm2294 = vcmp.lt.s32.totalorder %v2293, 0
        %v2295 = vsub.s32 0, %v2293
        %v2296 = vsel %vm2294, %v2295, %v2293
        %v2297 = vclz %v2296
        %v2298 = vsub.s32 %v2297, 2
        %vm2299 = vcmp.gt.s32.totalorder 0, %v2298
        %v2300 = vsel %vm2299, 0, %v2298
        %v2301 = vsub.s32 32, %v2300
        %v2302 = vshll.u32 %v2293, %v2300
        %v2303 = vshrl.u32 %v2285, %v2301
        %v2304 = vor.u32 %v2302, %v2303
        %v2305 = vsub.s32 4294967266, %v2300
        %v2306 = vadd.s32 %v2305, 127
        %v2307 = vshll.u32 %v2306, 23
        %v2308 = vor.u32 4788187, %v2307
        %v2309 = vand.u32 2147483647, %v2308
        %v2311 = vcvt.s32.f32 %v2304
        %v2312 = vmul.f32 %v2311, %v2309
        %v2313 = vxor.u32 %v2312, 2147483648
        %v2314 = vsel %vm2231, %v2313, %v2312
        %v2315 = vsub.s32 4, %v2291
        %v2316 = vsel %vm2231, %v2315, %v2291
        %v2317 = vsel %vm2230, %v418, %v2314
        %v2318 = vsel %vm2230, 0, %v2316
        %v2319 = vcosq.f32.pop %v2317
        %v2320 = vsinq.f32.pop %v2317
        %vm2321 = vweird.f32 %v418
        %v2322 = vand.u32 %v2318, 3
        %vm2323 = vcmp.lt.s32.totalorder %v2322, 2
        %vm2324 = vcmp.eq.s32.totalorder %v2322, 0
        %v2325 = vxor.u32 %v2320, 2147483648
        %v2326 = vsel %vm2324, %v2319, %v2325
        %vm2327 = vcmp.eq.s32.totalorder %v2322, 2
        %v2328 = vxor.u32 %v2319, 2147483648
        %v2329 = vsel %vm2327, %v2328, %v2320
        %v2330 = vsel %vm2323, %v2326, %v2329
        %v2331 = vsel %vm2321, nan, %v2330
        %v2332 = vand.u32 2147483647, %v422
        %vm2333 = vcmp.le.f32.partialorder %v2332, 0.7853982
        %vm2334 = vcmp.lt.s32.totalorder %v422, 0
        %v2335 = vand.u32 %v422, 2139095040
        %v2336 = vshrl.u32 %v2335, 23
        %v2337 = vsub.s32 %v2336, 127
        %v2338 = vand.u32 2147483647, %v422
        %v2339 = vand.u32 %v2338, 8388607
        %v2340 = vor.u32 %v2339, 8388608
        %v2341 = vsub.s32 0, %v2340
        %v2342 = vadd.s32 %v2337, 1
        %vm2343 = vcmp.gt.s32.totalorder %v2342, 0
        %v2344 = vsel %vm2343, %v2342, 0
        %v2345 = vshrl.u32 %v2344, 5
        %v2346 = vand.u32 %v2344, 31
        %v2347 = vsub.s32 32, %v2346
        %v2348 = vshrl.u32 683565275, %v2347
        %v2349 = vshll.u32 683565275, %v2346
        %v2350 = vshrl.u32 2475754826, %v2347
        %v2351 = vor.u32 %v2349, %v2350
        %v2352 = vshll.u32 2475754826, %v2346
        %v2353 = vshrl.u32 2131351028, %v2347
        %v2354 = vor.u32 %v2352, %v2353
        %v2355 = vshll.u32 2131351028, %v2346
        %v2356 = vshrl.u32 2102212464, %v2347
        %v2357 = vor.u32 %v2355, %v2356
        %v2358 = vshll.u32 2102212464, %v2346
        %v2359 = vshrl.u32 920167782, %v2347
        %v2360 = vor.u32 %v2358, %v2359
        %v2361 = vshll.u32 920167782, %v2346
        %v2362 = vshrl.u32 1326507024, %v2347
        %v2363 = vor.u32 %v2361, %v2362
        %vm2364 = vcmp.lt.s32.totalorder %v2345, 1
        %vm2365 = vcmp.lt.s32.totalorder %v2345, 2
        %vm2366 = vcmp.lt.s32.totalorder %v2345, 3
        %vm2367 = vcmp.lt.s32.totalorder %v2345, 4
        %v2368 = vsel %vm2364, %v2348, %v2351
        %v2369 = vsel %vm2367, %v2357, 2102212464
        %v2370 = vsel %vm2366, %v2354, %v2369
        %v2371 = vsel %vm2365, %v2368, %v2370
        %v2372 = vsel %vm2364, %v2351, %v2354
        %v2373 = vsel %vm2367, %v2360, 920167782
        %v2374 = vsel %vm2366, %v2357, %v2373
        %v2375 = vsel %vm2365, %v2372, %v2374
        %v2376 = vsel %vm2364, %v2354, %v2357
        %v2377 = vsel %vm2367, %v2363, 1326507024
        %v2378 = vsel %vm2366, %v2360, %v2377
        %v2379 = vsel %vm2365, %v2376, %v2378
        %v2380 = vshll.u32 %v2340, 8
        %v2381 = vmul.u32.u64.compose %v2380, %v2379
        %v2382 = vextract.low.u32 %v2381
        %v2383 = vextract.high.u32 %v2381
        %v2384 = vmul.u32.u64.compose %v2380, %v2375
        %v2385 = vextract.low.u32 %v2384
        %v2386 = vextract.high.u32 %v2384
        %v2387 = vmul.u32 %v2380, %v2371
        %v2388 = vadd.s32 %v2383, %v2385
        %vm2389 = vc.u32 %v2383, %v2385
        %v2390 = vadd.s32 %v2386, 1
        %v2391 = vsel %vm2389, %v2390, %v2386
        %v2392 = vadd.s32 %v2387, %v2391
        %v2393 = vadd.s32 %v2392, 536870912
        %v2394 = vshrl.u32 %v2393, 30
        %v2395 = vshll.u32 %v2394, 30
        %v2396 = vsub.s32 %v2392, %v2395
        %vm2397 = vcmp.lt.s32.totalorder %v2396, 0
        %v2398 = vsub.s32 0, %v2396
        %v2399 = vsel %vm2397, %v2398, %v2396
        %v2400 = vclz %v2399
        %v2401 = vsub.s32 %v2400, 2
        %vm2402 = vcmp.gt.s32.totalorder 0, %v2401
        %v2403 = vsel %vm2402, 0, %v2401
        %v2404 = vsub.s32 32, %v2403
        %v2405 = vshll.u32 %v2396, %v2403
        %v2406 = vshrl.u32 %v2388, %v2404
        %v2407 = vor.u32 %v2405, %v2406
        %v2408 = vsub.s32 4294967266, %v2403
        %v2409 = vadd.s32 %v2408, 127
        %v2410 = vshll.u32 %v2409, 23
        %v2411 = vor.u32 4788187, %v2410
        %v2412 = vand.u32 2147483647, %v2411
        %v2414 = vcvt.s32.f32 %v2407
        %v2415 = vmul.f32 %v2414, %v2412
        %v2416 = vxor.u32 %v2415, 2147483648
        %v2417 = vsel %vm2334, %v2416, %v2415
        %v2418 = vsub.s32 4, %v2394
        %v2419 = vsel %vm2334, %v2418, %v2394
        %v2420 = vsel %vm2333, %v422, %v2417
        %v2421 = vsel %vm2333, 0, %v2419
        %v2422 = vcosq.f32.pop %v2420
        %v2423 = vsinq.f32.pop %v2420
        %vm2424 = vweird.f32 %v422
        %v2425 = vand.u32 %v2421, 3
        %vm2426 = vcmp.lt.s32.totalorder %v2425, 2
        %vm2427 = vcmp.eq.s32.totalorder %v2425, 0
        %v2428 = vxor.u32 %v2423, 2147483648
        %v2429 = vsel %vm2427, %v2422, %v2428
        %vm2430 = vcmp.eq.s32.totalorder %v2425, 2
        %v2431 = vxor.u32 %v2422, 2147483648
        %v2432 = vsel %vm2430, %v2431, %v2423
        %v2433 = vsel %vm2426, %v2429, %v2432
        %v2434 = vsel %vm2424, nan, %v2433
        %v2435 = vand.u32 2147483647, %v424
        %vm2436 = vcmp.le.f32.partialorder %v2435, 0.7853982
        %vm2437 = vcmp.lt.s32.totalorder %v424, 0
        %v2438 = vand.u32 %v424, 2139095040
        %v2439 = vshrl.u32 %v2438, 23
        %v2440 = vsub.s32 %v2439, 127
        %v2441 = vand.u32 2147483647, %v424
        %v2442 = vand.u32 %v2441, 8388607
        %v2443 = vor.u32 %v2442, 8388608
        %v2444 = vsub.s32 0, %v2443
        %v2445 = vadd.s32 %v2440, 1
        %vm2446 = vcmp.gt.s32.totalorder %v2445, 0
        %v2447 = vsel %vm2446, %v2445, 0
        %v2448 = vshrl.u32 %v2447, 5
        %v2449 = vand.u32 %v2447, 31
        %v2450 = vsub.s32 32, %v2449
        %v2451 = vshrl.u32 683565275, %v2450
        %v2452 = vshll.u32 683565275, %v2449
        %v2453 = vshrl.u32 2475754826, %v2450
        %v2454 = vor.u32 %v2452, %v2453
        %v2455 = vshll.u32 2475754826, %v2449
        %v2456 = vshrl.u32 2131351028, %v2450
        %v2457 = vor.u32 %v2455, %v2456
        %v2458 = vshll.u32 2131351028, %v2449
        %v2459 = vshrl.u32 2102212464, %v2450
        %v2460 = vor.u32 %v2458, %v2459
        %v2461 = vshll.u32 2102212464, %v2449
        %v2462 = vshrl.u32 920167782, %v2450
        %v2463 = vor.u32 %v2461, %v2462
        %v2464 = vshll.u32 920167782, %v2449
        %v2465 = vshrl.u32 1326507024, %v2450
        %v2466 = vor.u32 %v2464, %v2465
        %vm2467 = vcmp.lt.s32.totalorder %v2448, 1
        %vm2468 = vcmp.lt.s32.totalorder %v2448, 2
        %vm2469 = vcmp.lt.s32.totalorder %v2448, 3
        %vm2470 = vcmp.lt.s32.totalorder %v2448, 4
        %v2471 = vsel %vm2467, %v2451, %v2454
        %v2472 = vsel %vm2470, %v2460, 2102212464
        %v2473 = vsel %vm2469, %v2457, %v2472
        %v2474 = vsel %vm2468, %v2471, %v2473
        %v2475 = vsel %vm2467, %v2454, %v2457
        %v2476 = vsel %vm2470, %v2463, 920167782
        %v2477 = vsel %vm2469, %v2460, %v2476
        %v2478 = vsel %vm2468, %v2475, %v2477
        %v2479 = vsel %vm2467, %v2457, %v2460
        %v2480 = vsel %vm2470, %v2466, 1326507024
        %v2481 = vsel %vm2469, %v2463, %v2480
        %v2482 = vsel %vm2468, %v2479, %v2481
        %v2483 = vshll.u32 %v2443, 8
        %v2484 = vmul.u32.u64.compose %v2483, %v2482
        %v2485 = vextract.low.u32 %v2484
        %v2486 = vextract.high.u32 %v2484
        %v2487 = vmul.u32.u64.compose %v2483, %v2478
        %v2488 = vextract.low.u32 %v2487
        %v2489 = vextract.high.u32 %v2487
        %v2490 = vmul.u32 %v2483, %v2474
        %v2491 = vadd.s32 %v2486, %v2488
        %vm2492 = vc.u32 %v2486, %v2488
        %v2493 = vadd.s32 %v2489, 1
        %v2494 = vsel %vm2492, %v2493, %v2489
        %v2495 = vadd.s32 %v2490, %v2494
        %v2496 = vadd.s32 %v2495, 536870912
        %v2497 = vshrl.u32 %v2496, 30
        %v2498 = vshll.u32 %v2497, 30
        %v2499 = vsub.s32 %v2495, %v2498
        %vm2500 = vcmp.lt.s32.totalorder %v2499, 0
        %v2501 = vsub.s32 0, %v2499
        %v2502 = vsel %vm2500, %v2501, %v2499
        %v2503 = vclz %v2502
        %v2504 = vsub.s32 %v2503, 2
        %vm2505 = vcmp.gt.s32.totalorder 0, %v2504
        %v2506 = vsel %vm2505, 0, %v2504
        %v2507 = vsub.s32 32, %v2506
        %v2508 = vshll.u32 %v2499, %v2506
        %v2509 = vshrl.u32 %v2491, %v2507
        %v2510 = vor.u32 %v2508, %v2509
        %v2511 = vsub.s32 4294967266, %v2506
        %v2512 = vadd.s32 %v2511, 127
        %v2513 = vshll.u32 %v2512, 23
        %v2514 = vor.u32 4788187, %v2513
        %v2515 = vand.u32 2147483647, %v2514
        %v2517 = vcvt.s32.f32 %v2510
        %v2518 = vmul.f32 %v2517, %v2515
        %v2519 = vxor.u32 %v2518, 2147483648
        %v2520 = vsel %vm2437, %v2519, %v2518
        %v2521 = vsub.s32 4, %v2497
        %v2522 = vsel %vm2437, %v2521, %v2497
        %v2523 = vsel %vm2436, %v424, %v2520
        %v2524 = vsel %vm2436, 0, %v2522
        %v2525 = vcosq.f32.pop %v2523
        %v2526 = vsinq.f32.pop %v2523
        %vm2527 = vweird.f32 %v424
        %v2528 = vand.u32 %v2524, 3
        %vm2529 = vcmp.lt.s32.totalorder %v2528, 2
        %vm2530 = vcmp.eq.s32.totalorder %v2528, 0
        %v2531 = vxor.u32 %v2526, 2147483648
        %v2532 = vsel %vm2530, %v2525, %v2531
        %vm2533 = vcmp.eq.s32.totalorder %v2528, 2
        %v2534 = vxor.u32 %v2525, 2147483648
        %v2535 = vsel %vm2533, %v2534, %v2526
        %v2536 = vsel %vm2529, %v2532, %v2535
        %v2537 = vsel %vm2527, nan, %v2536
        %v2538 = vand.u32 2147483647, %v428
        %vm2539 = vcmp.le.f32.partialorder %v2538, 0.7853982
        %vm2540 = vcmp.lt.s32.totalorder %v428, 0
        %v2541 = vand.u32 %v428, 2139095040
        %v2542 = vshrl.u32 %v2541, 23
        %v2543 = vsub.s32 %v2542, 127
        %v2544 = vand.u32 2147483647, %v428
        %v2545 = vand.u32 %v2544, 8388607
        %v2546 = vor.u32 %v2545, 8388608
        %v2547 = vsub.s32 0, %v2546
        %v2548 = vadd.s32 %v2543, 1
        %vm2549 = vcmp.gt.s32.totalorder %v2548, 0
        %v2550 = vsel %vm2549, %v2548, 0
        %v2551 = vshrl.u32 %v2550, 5
        %v2552 = vand.u32 %v2550, 31
        %v2553 = vsub.s32 32, %v2552
        %v2554 = vshrl.u32 683565275, %v2553
        %v2555 = vshll.u32 683565275, %v2552
        %v2556 = vshrl.u32 2475754826, %v2553
        %v2557 = vor.u32 %v2555, %v2556
        %v2558 = vshll.u32 2475754826, %v2552
        %v2559 = vshrl.u32 2131351028, %v2553
        %v2560 = vor.u32 %v2558, %v2559
        %v2561 = vshll.u32 2131351028, %v2552
        %v2562 = vshrl.u32 2102212464, %v2553
        %v2563 = vor.u32 %v2561, %v2562
        %v2564 = vshll.u32 2102212464, %v2552
        %v2565 = vshrl.u32 920167782, %v2553
        %v2566 = vor.u32 %v2564, %v2565
        %v2567 = vshll.u32 920167782, %v2552
        %v2568 = vshrl.u32 1326507024, %v2553
        %v2569 = vor.u32 %v2567, %v2568
        %vm2570 = vcmp.lt.s32.totalorder %v2551, 1
        %vm2571 = vcmp.lt.s32.totalorder %v2551, 2
        %vm2572 = vcmp.lt.s32.totalorder %v2551, 3
        %vm2573 = vcmp.lt.s32.totalorder %v2551, 4
        %v2574 = vsel %vm2570, %v2554, %v2557
        %v2575 = vsel %vm2573, %v2563, 2102212464
        %v2576 = vsel %vm2572, %v2560, %v2575
        %v2577 = vsel %vm2571, %v2574, %v2576
        %v2578 = vsel %vm2570, %v2557, %v2560
        %v2579 = vsel %vm2573, %v2566, 920167782
        %v2580 = vsel %vm2572, %v2563, %v2579
        %v2581 = vsel %vm2571, %v2578, %v2580
        %v2582 = vsel %vm2570, %v2560, %v2563
        %v2583 = vsel %vm2573, %v2569, 1326507024
        %v2584 = vsel %vm2572, %v2566, %v2583
        %v2585 = vsel %vm2571, %v2582, %v2584
        %v2586 = vshll.u32 %v2546, 8
        %v2587 = vmul.u32.u64.compose %v2586, %v2585
        %v2588 = vextract.low.u32 %v2587
        %v2589 = vextract.high.u32 %v2587
        %v2590 = vmul.u32.u64.compose %v2586, %v2581
        %v2591 = vextract.low.u32 %v2590
        %v2592 = vextract.high.u32 %v2590
        %v2593 = vmul.u32 %v2586, %v2577
        %v2594 = vadd.s32 %v2589, %v2591
        %vm2595 = vc.u32 %v2589, %v2591
        %v2596 = vadd.s32 %v2592, 1
        %v2597 = vsel %vm2595, %v2596, %v2592
        %v2598 = vadd.s32 %v2593, %v2597
        %v2599 = vadd.s32 %v2598, 536870912
        %v2600 = vshrl.u32 %v2599, 30
        %v2601 = vshll.u32 %v2600, 30
        %v2602 = vsub.s32 %v2598, %v2601
        %vm2603 = vcmp.lt.s32.totalorder %v2602, 0
        %v2604 = vsub.s32 0, %v2602
        %v2605 = vsel %vm2603, %v2604, %v2602
        %v2606 = vclz %v2605
        %v2607 = vsub.s32 %v2606, 2
        %vm2608 = vcmp.gt.s32.totalorder 0, %v2607
        %v2609 = vsel %vm2608, 0, %v2607
        %v2610 = vsub.s32 32, %v2609
        %v2611 = vshll.u32 %v2602, %v2609
        %v2612 = vshrl.u32 %v2594, %v2610
        %v2613 = vor.u32 %v2611, %v2612
        %v2614 = vsub.s32 4294967266, %v2609
        %v2615 = vadd.s32 %v2614, 127
        %v2616 = vshll.u32 %v2615, 23
        %v2617 = vor.u32 4788187, %v2616
        %v2618 = vand.u32 2147483647, %v2617
        %v2620 = vcvt.s32.f32 %v2613
        %v2621 = vmul.f32 %v2620, %v2618
        %v2622 = vxor.u32 %v2621, 2147483648
        %v2623 = vsel %vm2540, %v2622, %v2621
        %v2624 = vsub.s32 4, %v2600
        %v2625 = vsel %vm2540, %v2624, %v2600
        %v2626 = vsel %vm2539, %v428, %v2623
        %v2627 = vsel %vm2539, 0, %v2625
        %v2628 = vcosq.f32.pop %v2626
        %v2629 = vsinq.f32.pop %v2626
        %vm2630 = vweird.f32 %v428
        %v2631 = vand.u32 %v2627, 3
        %vm2632 = vcmp.lt.s32.totalorder %v2631, 2
        %vm2633 = vcmp.eq.s32.totalorder %v2631, 0
        %v2634 = vxor.u32 %v2629, 2147483648
        %v2635 = vsel %vm2633, %v2628, %v2634
        %vm2636 = vcmp.eq.s32.totalorder %v2631, 2
        %v2637 = vxor.u32 %v2628, 2147483648
        %v2638 = vsel %vm2636, %v2637, %v2629
        %v2639 = vsel %vm2632, %v2635, %v2638
        %v2640 = vsel %vm2630, nan, %v2639
        %v2641 = vand.u32 2147483647, %v430
        %vm2642 = vcmp.le.f32.partialorder %v2641, 0.7853982
        %vm2643 = vcmp.lt.s32.totalorder %v430, 0
        %v2644 = vand.u32 %v430, 2139095040
        %v2645 = vshrl.u32 %v2644, 23
        %v2646 = vsub.s32 %v2645, 127
        %v2647 = vand.u32 2147483647, %v430
        %v2648 = vand.u32 %v2647, 8388607
        %v2649 = vor.u32 %v2648, 8388608
        %v2650 = vsub.s32 0, %v2649
        %v2651 = vadd.s32 %v2646, 1
        %vm2652 = vcmp.gt.s32.totalorder %v2651, 0
        %v2653 = vsel %vm2652, %v2651, 0
        %v2654 = vshrl.u32 %v2653, 5
        %v2655 = vand.u32 %v2653, 31
        %v2656 = vsub.s32 32, %v2655
        %v2657 = vshrl.u32 683565275, %v2656
        %v2658 = vshll.u32 683565275, %v2655
        %v2659 = vshrl.u32 2475754826, %v2656
        %v2660 = vor.u32 %v2658, %v2659
        %v2661 = vshll.u32 2475754826, %v2655
        %v2662 = vshrl.u32 2131351028, %v2656
        %v2663 = vor.u32 %v2661, %v2662
        %v2664 = vshll.u32 2131351028, %v2655
        %v2665 = vshrl.u32 2102212464, %v2656
        %v2666 = vor.u32 %v2664, %v2665
        %v2667 = vshll.u32 2102212464, %v2655
        %v2668 = vshrl.u32 920167782, %v2656
        %v2669 = vor.u32 %v2667, %v2668
        %v2670 = vshll.u32 920167782, %v2655
        %v2671 = vshrl.u32 1326507024, %v2656
        %v2672 = vor.u32 %v2670, %v2671
        %vm2673 = vcmp.lt.s32.totalorder %v2654, 1
        %vm2674 = vcmp.lt.s32.totalorder %v2654, 2
        %vm2675 = vcmp.lt.s32.totalorder %v2654, 3
        %vm2676 = vcmp.lt.s32.totalorder %v2654, 4
        %v2677 = vsel %vm2673, %v2657, %v2660
        %v2678 = vsel %vm2676, %v2666, 2102212464
        %v2679 = vsel %vm2675, %v2663, %v2678
        %v2680 = vsel %vm2674, %v2677, %v2679
        %v2681 = vsel %vm2673, %v2660, %v2663
        %v2682 = vsel %vm2676, %v2669, 920167782
        %v2683 = vsel %vm2675, %v2666, %v2682
        %v2684 = vsel %vm2674, %v2681, %v2683
        %v2685 = vsel %vm2673, %v2663, %v2666
        %v2686 = vsel %vm2676, %v2672, 1326507024
        %v2687 = vsel %vm2675, %v2669, %v2686
        %v2688 = vsel %vm2674, %v2685, %v2687
        %v2689 = vshll.u32 %v2649, 8
        %v2690 = vmul.u32.u64.compose %v2689, %v2688
        %v2691 = vextract.low.u32 %v2690
        %v2692 = vextract.high.u32 %v2690
        %v2693 = vmul.u32.u64.compose %v2689, %v2684
        %v2694 = vextract.low.u32 %v2693
        %v2695 = vextract.high.u32 %v2693
        %v2696 = vmul.u32 %v2689, %v2680
        %v2697 = vadd.s32 %v2692, %v2694
        %vm2698 = vc.u32 %v2692, %v2694
        %v2699 = vadd.s32 %v2695, 1
        %v2700 = vsel %vm2698, %v2699, %v2695
        %v2701 = vadd.s32 %v2696, %v2700
        %v2702 = vadd.s32 %v2701, 536870912
        %v2703 = vshrl.u32 %v2702, 30
        %v2704 = vshll.u32 %v2703, 30
        %v2705 = vsub.s32 %v2701, %v2704
        %vm2706 = vcmp.lt.s32.totalorder %v2705, 0
        %v2707 = vsub.s32 0, %v2705
        %v2708 = vsel %vm2706, %v2707, %v2705
        %v2709 = vclz %v2708
        %v2710 = vsub.s32 %v2709, 2
        %vm2711 = vcmp.gt.s32.totalorder 0, %v2710
        %v2712 = vsel %vm2711, 0, %v2710
        %v2713 = vsub.s32 32, %v2712
        %v2714 = vshll.u32 %v2705, %v2712
        %v2715 = vshrl.u32 %v2697, %v2713
        %v2716 = vor.u32 %v2714, %v2715
        %v2717 = vsub.s32 4294967266, %v2712
        %v2718 = vadd.s32 %v2717, 127
        %v2719 = vshll.u32 %v2718, 23
        %v2720 = vor.u32 4788187, %v2719
        %v2721 = vand.u32 2147483647, %v2720
        %v2723 = vcvt.s32.f32 %v2716
        %v2724 = vmul.f32 %v2723, %v2721
        %v2725 = vxor.u32 %v2724, 2147483648
        %v2726 = vsel %vm2643, %v2725, %v2724
        %v2727 = vsub.s32 4, %v2703
        %v2728 = vsel %vm2643, %v2727, %v2703
        %v2729 = vsel %vm2642, %v430, %v2726
        %v2730 = vsel %vm2642, 0, %v2728
        %v2731 = vcosq.f32.pop %v2729
        %v2732 = vsinq.f32.pop %v2729
        %vm2733 = vweird.f32 %v430
        %v2734 = vand.u32 %v2730, 3
        %vm2735 = vcmp.lt.s32.totalorder %v2734, 2
        %vm2736 = vcmp.eq.s32.totalorder %v2734, 0
        %v2737 = vxor.u32 %v2732, 2147483648
        %v2738 = vsel %vm2736, %v2731, %v2737
        %vm2739 = vcmp.eq.s32.totalorder %v2734, 2
        %v2740 = vxor.u32 %v2731, 2147483648
        %v2741 = vsel %vm2739, %v2740, %v2732
        %v2742 = vsel %vm2735, %v2738, %v2741
        %v2743 = vsel %vm2733, nan, %v2742
        %v2744 = vand.u32 2147483647, %v434
        %vm2745 = vcmp.le.f32.partialorder %v2744, 0.7853982
        %vm2746 = vcmp.lt.s32.totalorder %v434, 0
        %v2747 = vand.u32 %v434, 2139095040
        %v2748 = vshrl.u32 %v2747, 23
        %v2749 = vsub.s32 %v2748, 127
        %v2750 = vand.u32 2147483647, %v434
        %v2751 = vand.u32 %v2750, 8388607
        %v2752 = vor.u32 %v2751, 8388608
        %v2753 = vsub.s32 0, %v2752
        %v2754 = vadd.s32 %v2749, 1
        %vm2755 = vcmp.gt.s32.totalorder %v2754, 0
        %v2756 = vsel %vm2755, %v2754, 0
        %v2757 = vshrl.u32 %v2756, 5
        %v2758 = vand.u32 %v2756, 31
        %v2759 = vsub.s32 32, %v2758
        %v2760 = vshrl.u32 683565275, %v2759
        %v2761 = vshll.u32 683565275, %v2758
        %v2762 = vshrl.u32 2475754826, %v2759
        %v2763 = vor.u32 %v2761, %v2762
        %v2764 = vshll.u32 2475754826, %v2758
        %v2765 = vshrl.u32 2131351028, %v2759
        %v2766 = vor.u32 %v2764, %v2765
        %v2767 = vshll.u32 2131351028, %v2758
        %v2768 = vshrl.u32 2102212464, %v2759
        %v2769 = vor.u32 %v2767, %v2768
        %v2770 = vshll.u32 2102212464, %v2758
        %v2771 = vshrl.u32 920167782, %v2759
        %v2772 = vor.u32 %v2770, %v2771
        %v2773 = vshll.u32 920167782, %v2758
        %v2774 = vshrl.u32 1326507024, %v2759
        %v2775 = vor.u32 %v2773, %v2774
        %vm2776 = vcmp.lt.s32.totalorder %v2757, 1
        %vm2777 = vcmp.lt.s32.totalorder %v2757, 2
        %vm2778 = vcmp.lt.s32.totalorder %v2757, 3
        %vm2779 = vcmp.lt.s32.totalorder %v2757, 4
        %v2780 = vsel %vm2776, %v2760, %v2763
        %v2781 = vsel %vm2779, %v2769, 2102212464
        %v2782 = vsel %vm2778, %v2766, %v2781
        %v2783 = vsel %vm2777, %v2780, %v2782
        %v2784 = vsel %vm2776, %v2763, %v2766
        %v2785 = vsel %vm2779, %v2772, 920167782
        %v2786 = vsel %vm2778, %v2769, %v2785
        %v2787 = vsel %vm2777, %v2784, %v2786
        %v2788 = vsel %vm2776, %v2766, %v2769
        %v2789 = vsel %vm2779, %v2775, 1326507024
        %v2790 = vsel %vm2778, %v2772, %v2789
        %v2791 = vsel %vm2777, %v2788, %v2790
        %v2792 = vshll.u32 %v2752, 8
        %v2793 = vmul.u32.u64.compose %v2792, %v2791
        %v2794 = vextract.low.u32 %v2793
        %v2795 = vextract.high.u32 %v2793
        %v2796 = vmul.u32.u64.compose %v2792, %v2787
        %v2797 = vextract.low.u32 %v2796
        %v2798 = vextract.high.u32 %v2796
        %v2799 = vmul.u32 %v2792, %v2783
        %v2800 = vadd.s32 %v2795, %v2797
        %vm2801 = vc.u32 %v2795, %v2797
        %v2802 = vadd.s32 %v2798, 1
        %v2803 = vsel %vm2801, %v2802, %v2798
        %v2804 = vadd.s32 %v2799, %v2803
        %v2805 = vadd.s32 %v2804, 536870912
        %v2806 = vshrl.u32 %v2805, 30
        %v2807 = vshll.u32 %v2806, 30
        %v2808 = vsub.s32 %v2804, %v2807
        %vm2809 = vcmp.lt.s32.totalorder %v2808, 0
        %v2810 = vsub.s32 0, %v2808
        %v2811 = vsel %vm2809, %v2810, %v2808
        %v2812 = vclz %v2811
        %v2813 = vsub.s32 %v2812, 2
        %vm2814 = vcmp.gt.s32.totalorder 0, %v2813
        %v2815 = vsel %vm2814, 0, %v2813
        %v2816 = vsub.s32 32, %v2815
        %v2817 = vshll.u32 %v2808, %v2815
        %v2818 = vshrl.u32 %v2800, %v2816
        %v2819 = vor.u32 %v2817, %v2818
        %v2820 = vsub.s32 4294967266, %v2815
        %v2821 = vadd.s32 %v2820, 127
        %v2822 = vshll.u32 %v2821, 23
        %v2823 = vor.u32 4788187, %v2822
        %v2824 = vand.u32 2147483647, %v2823
        %v2826 = vcvt.s32.f32 %v2819
        %v2827 = vmul.f32 %v2826, %v2824
        %v2828 = vxor.u32 %v2827, 2147483648
        %v2829 = vsel %vm2746, %v2828, %v2827
        %v2830 = vsub.s32 4, %v2806
        %v2831 = vsel %vm2746, %v2830, %v2806
        %v2832 = vsel %vm2745, %v434, %v2829
        %v2833 = vsel %vm2745, 0, %v2831
        %v2834 = vcosq.f32.pop %v2832
        %v2835 = vsinq.f32.pop %v2832
        %vm2836 = vweird.f32 %v434
        %v2837 = vand.u32 %v2833, 3
        %vm2838 = vcmp.lt.s32.totalorder %v2837, 2
        %vm2839 = vcmp.eq.s32.totalorder %v2837, 0
        %v2840 = vxor.u32 %v2835, 2147483648
        %v2841 = vsel %vm2839, %v2834, %v2840
        %vm2842 = vcmp.eq.s32.totalorder %v2837, 2
        %v2843 = vxor.u32 %v2834, 2147483648
        %v2844 = vsel %vm2842, %v2843, %v2835
        %v2845 = vsel %vm2838, %v2841, %v2844
        %v2846 = vsel %vm2836, nan, %v2845
        %v2847 = vand.u32 2147483647, %v436
        %vm2848 = vcmp.le.f32.partialorder %v2847, 0.7853982
        %vm2849 = vcmp.lt.s32.totalorder %v436, 0
        %v2850 = vand.u32 %v436, 2139095040
        %v2851 = vshrl.u32 %v2850, 23
        %v2852 = vsub.s32 %v2851, 127
        %v2853 = vand.u32 2147483647, %v436
        %v2854 = vand.u32 %v2853, 8388607
        %v2855 = vor.u32 %v2854, 8388608
        %v2856 = vsub.s32 0, %v2855
        %v2857 = vadd.s32 %v2852, 1
        %vm2858 = vcmp.gt.s32.totalorder %v2857, 0
        %v2859 = vsel %vm2858, %v2857, 0
        %v2860 = vshrl.u32 %v2859, 5
        %v2861 = vand.u32 %v2859, 31
        %v2862 = vsub.s32 32, %v2861
        %v2863 = vshrl.u32 683565275, %v2862
        %v2864 = vshll.u32 683565275, %v2861
        %v2865 = vshrl.u32 2475754826, %v2862
        %v2866 = vor.u32 %v2864, %v2865
        %v2867 = vshll.u32 2475754826, %v2861
        %v2868 = vshrl.u32 2131351028, %v2862
        %v2869 = vor.u32 %v2867, %v2868
        %v2870 = vshll.u32 2131351028, %v2861
        %v2871 = vshrl.u32 2102212464, %v2862
        %v2872 = vor.u32 %v2870, %v2871
        %v2873 = vshll.u32 2102212464, %v2861
        %v2874 = vshrl.u32 920167782, %v2862
        %v2875 = vor.u32 %v2873, %v2874
        %v2876 = vshll.u32 920167782, %v2861
        %v2877 = vshrl.u32 1326507024, %v2862
        %v2878 = vor.u32 %v2876, %v2877
        %vm2879 = vcmp.lt.s32.totalorder %v2860, 1
        %vm2880 = vcmp.lt.s32.totalorder %v2860, 2
        %vm2881 = vcmp.lt.s32.totalorder %v2860, 3
        %vm2882 = vcmp.lt.s32.totalorder %v2860, 4
        %v2883 = vsel %vm2879, %v2863, %v2866
        %v2884 = vsel %vm2882, %v2872, 2102212464
        %v2885 = vsel %vm2881, %v2869, %v2884
        %v2886 = vsel %vm2880, %v2883, %v2885
        %v2887 = vsel %vm2879, %v2866, %v2869
        %v2888 = vsel %vm2882, %v2875, 920167782
        %v2889 = vsel %vm2881, %v2872, %v2888
        %v2890 = vsel %vm2880, %v2887, %v2889
        %v2891 = vsel %vm2879, %v2869, %v2872
        %v2892 = vsel %vm2882, %v2878, 1326507024
        %v2893 = vsel %vm2881, %v2875, %v2892
        %v2894 = vsel %vm2880, %v2891, %v2893
        %v2895 = vshll.u32 %v2855, 8
        %v2896 = vmul.u32.u64.compose %v2895, %v2894
        %v2897 = vextract.low.u32 %v2896
        %v2898 = vextract.high.u32 %v2896
        %v2899 = vmul.u32.u64.compose %v2895, %v2890
        %v2900 = vextract.low.u32 %v2899
        %v2901 = vextract.high.u32 %v2899
        %v2902 = vmul.u32 %v2895, %v2886
        %v2903 = vadd.s32 %v2898, %v2900
        %vm2904 = vc.u32 %v2898, %v2900
        %v2905 = vadd.s32 %v2901, 1
        %v2906 = vsel %vm2904, %v2905, %v2901
        %v2907 = vadd.s32 %v2902, %v2906
        %v2908 = vadd.s32 %v2907, 536870912
        %v2909 = vshrl.u32 %v2908, 30
        %v2910 = vshll.u32 %v2909, 30
        %v2911 = vsub.s32 %v2907, %v2910
        %vm2912 = vcmp.lt.s32.totalorder %v2911, 0
        %v2913 = vsub.s32 0, %v2911
        %v2914 = vsel %vm2912, %v2913, %v2911
        %v2915 = vclz %v2914
        %v2916 = vsub.s32 %v2915, 2
        %vm2917 = vcmp.gt.s32.totalorder 0, %v2916
        %v2918 = vsel %vm2917, 0, %v2916
        %v2919 = vsub.s32 32, %v2918
        %v2920 = vshll.u32 %v2911, %v2918
        %v2921 = vshrl.u32 %v2903, %v2919
        %v2922 = vor.u32 %v2920, %v2921
        %v2923 = vsub.s32 4294967266, %v2918
        %v2924 = vadd.s32 %v2923, 127
        %v2925 = vshll.u32 %v2924, 23
        %v2926 = vor.u32 4788187, %v2925
        %v2927 = vand.u32 2147483647, %v2926
        %v2929 = vcvt.s32.f32 %v2922
        %v2930 = vmul.f32 %v2929, %v2927
        %v2931 = vxor.u32 %v2930, 2147483648
        %v2932 = vsel %vm2849, %v2931, %v2930
        %v2933 = vsub.s32 4, %v2909
        %v2934 = vsel %vm2849, %v2933, %v2909
        %v2935 = vsel %vm2848, %v436, %v2932
        %v2936 = vsel %vm2848, 0, %v2934
        %v2937 = vcosq.f32.pop %v2935
        %v2938 = vsinq.f32.pop %v2935
        %vm2939 = vweird.f32 %v436
        %v2940 = vand.u32 %v2936, 3
        %vm2941 = vcmp.lt.s32.totalorder %v2940, 2
        %vm2942 = vcmp.eq.s32.totalorder %v2940, 0
        %v2943 = vxor.u32 %v2938, 2147483648
        %v2944 = vsel %vm2942, %v2937, %v2943
        %vm2945 = vcmp.eq.s32.totalorder %v2940, 2
        %v2946 = vxor.u32 %v2937, 2147483648
        %v2947 = vsel %vm2945, %v2946, %v2938
        %v2948 = vsel %vm2941, %v2944, %v2947
        %v2949 = vsel %vm2939, nan, %v2948
        %v2950 = vand.u32 2147483647, %v440
        %vm2951 = vcmp.le.f32.partialorder %v2950, 0.7853982
        %vm2952 = vcmp.lt.s32.totalorder %v440, 0
        %v2953 = vand.u32 %v440, 2139095040
        %v2954 = vshrl.u32 %v2953, 23
        %v2955 = vsub.s32 %v2954, 127
        %v2956 = vand.u32 2147483647, %v440
        %v2957 = vand.u32 %v2956, 8388607
        %v2958 = vor.u32 %v2957, 8388608
        %v2959 = vsub.s32 0, %v2958
        %v2960 = vadd.s32 %v2955, 1
        %vm2961 = vcmp.gt.s32.totalorder %v2960, 0
        %v2962 = vsel %vm2961, %v2960, 0
        %v2963 = vshrl.u32 %v2962, 5
        %v2964 = vand.u32 %v2962, 31
        %v2965 = vsub.s32 32, %v2964
        %v2966 = vshrl.u32 683565275, %v2965
        %v2967 = vshll.u32 683565275, %v2964
        %v2968 = vshrl.u32 2475754826, %v2965
        %v2969 = vor.u32 %v2967, %v2968
        %v2970 = vshll.u32 2475754826, %v2964
        %v2971 = vshrl.u32 2131351028, %v2965
        %v2972 = vor.u32 %v2970, %v2971
        %v2973 = vshll.u32 2131351028, %v2964
        %v2974 = vshrl.u32 2102212464, %v2965
        %v2975 = vor.u32 %v2973, %v2974
        %v2976 = vshll.u32 2102212464, %v2964
        %v2977 = vshrl.u32 920167782, %v2965
        %v2978 = vor.u32 %v2976, %v2977
        %v2979 = vshll.u32 920167782, %v2964
        %v2980 = vshrl.u32 1326507024, %v2965
        %v2981 = vor.u32 %v2979, %v2980
        %vm2982 = vcmp.lt.s32.totalorder %v2963, 1
        %vm2983 = vcmp.lt.s32.totalorder %v2963, 2
        %vm2984 = vcmp.lt.s32.totalorder %v2963, 3
        %vm2985 = vcmp.lt.s32.totalorder %v2963, 4
        %v2986 = vsel %vm2982, %v2966, %v2969
        %v2987 = vsel %vm2985, %v2975, 2102212464
        %v2988 = vsel %vm2984, %v2972, %v2987
        %v2989 = vsel %vm2983, %v2986, %v2988
        %v2990 = vsel %vm2982, %v2969, %v2972
        %v2991 = vsel %vm2985, %v2978, 920167782
        %v2992 = vsel %vm2984, %v2975, %v2991
        %v2993 = vsel %vm2983, %v2990, %v2992
        %v2994 = vsel %vm2982, %v2972, %v2975
        %v2995 = vsel %vm2985, %v2981, 1326507024
        %v2996 = vsel %vm2984, %v2978, %v2995
        %v2997 = vsel %vm2983, %v2994, %v2996
        %v2998 = vshll.u32 %v2958, 8
        %v2999 = vmul.u32.u64.compose %v2998, %v2997
        %v3000 = vextract.low.u32 %v2999
        %v3001 = vextract.high.u32 %v2999
        %v3002 = vmul.u32.u64.compose %v2998, %v2993
        %v3003 = vextract.low.u32 %v3002
        %v3004 = vextract.high.u32 %v3002
        %v3005 = vmul.u32 %v2998, %v2989
        %v3006 = vadd.s32 %v3001, %v3003
        %vm3007 = vc.u32 %v3001, %v3003
        %v3008 = vadd.s32 %v3004, 1
        %v3009 = vsel %vm3007, %v3008, %v3004
        %v3010 = vadd.s32 %v3005, %v3009
        %v3011 = vadd.s32 %v3010, 536870912
        %v3012 = vshrl.u32 %v3011, 30
        %v3013 = vshll.u32 %v3012, 30
        %v3014 = vsub.s32 %v3010, %v3013
        %vm3015 = vcmp.lt.s32.totalorder %v3014, 0
        %v3016 = vsub.s32 0, %v3014
        %v3017 = vsel %vm3015, %v3016, %v3014
        %v3018 = vclz %v3017
        %v3019 = vsub.s32 %v3018, 2
        %vm3020 = vcmp.gt.s32.totalorder 0, %v3019
        %v3021 = vsel %vm3020, 0, %v3019
        %v3022 = vsub.s32 32, %v3021
        %v3023 = vshll.u32 %v3014, %v3021
        %v3024 = vshrl.u32 %v3006, %v3022
        %v3025 = vor.u32 %v3023, %v3024
        %v3026 = vsub.s32 4294967266, %v3021
        %v3027 = vadd.s32 %v3026, 127
        %v3028 = vshll.u32 %v3027, 23
        %v3029 = vor.u32 4788187, %v3028
        %v3030 = vand.u32 2147483647, %v3029
        %v3032 = vcvt.s32.f32 %v3025
        %v3033 = vmul.f32 %v3032, %v3030
        %v3034 = vxor.u32 %v3033, 2147483648
        %v3035 = vsel %vm2952, %v3034, %v3033
        %v3036 = vsub.s32 4, %v3012
        %v3037 = vsel %vm2952, %v3036, %v3012
        %v3038 = vsel %vm2951, %v440, %v3035
        %v3039 = vsel %vm2951, 0, %v3037
        %v3040 = vcosq.f32.pop %v3038
        %v3041 = vsinq.f32.pop %v3038
        %vm3042 = vweird.f32 %v440
        %v3043 = vand.u32 %v3039, 3
        %vm3044 = vcmp.lt.s32.totalorder %v3043, 2
        %vm3045 = vcmp.eq.s32.totalorder %v3043, 0
        %v3046 = vxor.u32 %v3041, 2147483648
        %v3047 = vsel %vm3045, %v3040, %v3046
        %vm3048 = vcmp.eq.s32.totalorder %v3043, 2
        %v3049 = vxor.u32 %v3040, 2147483648
        %v3050 = vsel %vm3048, %v3049, %v3041
        %v3051 = vsel %vm3044, %v3047, %v3050
        %v3052 = vsel %vm3042, nan, %v3051
        %v3053 = vand.u32 2147483647, %v442
        %vm3054 = vcmp.le.f32.partialorder %v3053, 0.7853982
        %vm3055 = vcmp.lt.s32.totalorder %v442, 0
        %v3056 = vand.u32 %v442, 2139095040
        %v3057 = vshrl.u32 %v3056, 23
        %v3058 = vsub.s32 %v3057, 127
        %v3059 = vand.u32 2147483647, %v442
        %v3060 = vand.u32 %v3059, 8388607
        %v3061 = vor.u32 %v3060, 8388608
        %v3062 = vsub.s32 0, %v3061
        %v3063 = vadd.s32 %v3058, 1
        %vm3064 = vcmp.gt.s32.totalorder %v3063, 0
        %v3065 = vsel %vm3064, %v3063, 0
        %v3066 = vshrl.u32 %v3065, 5
        %v3067 = vand.u32 %v3065, 31
        %v3068 = vsub.s32 32, %v3067
        %v3069 = vshrl.u32 683565275, %v3068
        %v3070 = vshll.u32 683565275, %v3067
        %v3071 = vshrl.u32 2475754826, %v3068
        %v3072 = vor.u32 %v3070, %v3071
        %v3073 = vshll.u32 2475754826, %v3067
        %v3074 = vshrl.u32 2131351028, %v3068
        %v3075 = vor.u32 %v3073, %v3074
        %v3076 = vshll.u32 2131351028, %v3067
        %v3077 = vshrl.u32 2102212464, %v3068
        %v3078 = vor.u32 %v3076, %v3077
        %v3079 = vshll.u32 2102212464, %v3067
        %v3080 = vshrl.u32 920167782, %v3068
        %v3081 = vor.u32 %v3079, %v3080
        %v3082 = vshll.u32 920167782, %v3067
        %v3083 = vshrl.u32 1326507024, %v3068
        %v3084 = vor.u32 %v3082, %v3083
        %vm3085 = vcmp.lt.s32.totalorder %v3066, 1
        %vm3086 = vcmp.lt.s32.totalorder %v3066, 2
        %vm3087 = vcmp.lt.s32.totalorder %v3066, 3
        %vm3088 = vcmp.lt.s32.totalorder %v3066, 4
        %v3089 = vsel %vm3085, %v3069, %v3072
        %v3090 = vsel %vm3088, %v3078, 2102212464
        %v3091 = vsel %vm3087, %v3075, %v3090
        %v3092 = vsel %vm3086, %v3089, %v3091
        %v3093 = vsel %vm3085, %v3072, %v3075
        %v3094 = vsel %vm3088, %v3081, 920167782
        %v3095 = vsel %vm3087, %v3078, %v3094
        %v3096 = vsel %vm3086, %v3093, %v3095
        %v3097 = vsel %vm3085, %v3075, %v3078
        %v3098 = vsel %vm3088, %v3084, 1326507024
        %v3099 = vsel %vm3087, %v3081, %v3098
        %v3100 = vsel %vm3086, %v3097, %v3099
        %v3101 = vshll.u32 %v3061, 8
        %v3102 = vmul.u32.u64.compose %v3101, %v3100
        %v3103 = vextract.low.u32 %v3102
        %v3104 = vextract.high.u32 %v3102
        %v3105 = vmul.u32.u64.compose %v3101, %v3096
        %v3106 = vextract.low.u32 %v3105
        %v3107 = vextract.high.u32 %v3105
        %v3108 = vmul.u32 %v3101, %v3092
        %v3109 = vadd.s32 %v3104, %v3106
        %vm3110 = vc.u32 %v3104, %v3106
        %v3111 = vadd.s32 %v3107, 1
        %v3112 = vsel %vm3110, %v3111, %v3107
        %v3113 = vadd.s32 %v3108, %v3112
        %v3114 = vadd.s32 %v3113, 536870912
        %v3115 = vshrl.u32 %v3114, 30
        %v3116 = vshll.u32 %v3115, 30
        %v3117 = vsub.s32 %v3113, %v3116
        %vm3118 = vcmp.lt.s32.totalorder %v3117, 0
        %v3119 = vsub.s32 0, %v3117
        %v3120 = vsel %vm3118, %v3119, %v3117
        %v3121 = vclz %v3120
        %v3122 = vsub.s32 %v3121, 2
        %vm3123 = vcmp.gt.s32.totalorder 0, %v3122
        %v3124 = vsel %vm3123, 0, %v3122
        %v3125 = vsub.s32 32, %v3124
        %v3126 = vshll.u32 %v3117, %v3124
        %v3127 = vshrl.u32 %v3109, %v3125
        %v3128 = vor.u32 %v3126, %v3127
        %v3129 = vsub.s32 4294967266, %v3124
        %v3130 = vadd.s32 %v3129, 127
        %v3131 = vshll.u32 %v3130, 23
        %v3132 = vor.u32 4788187, %v3131
        %v3133 = vand.u32 2147483647, %v3132
        %v3135 = vcvt.s32.f32 %v3128
        %v3136 = vmul.f32 %v3135, %v3133
        %v3137 = vxor.u32 %v3136, 2147483648
        %v3138 = vsel %vm3055, %v3137, %v3136
        %v3139 = vsub.s32 4, %v3115
        %v3140 = vsel %vm3055, %v3139, %v3115
        %v3141 = vsel %vm3054, %v442, %v3138
        %v3142 = vsel %vm3054, 0, %v3140
        %v3143 = vcosq.f32.pop %v3141
        %v3144 = vsinq.f32.pop %v3141
        %vm3145 = vweird.f32 %v442
        %v3146 = vand.u32 %v3142, 3
        %vm3147 = vcmp.lt.s32.totalorder %v3146, 2
        %vm3148 = vcmp.eq.s32.totalorder %v3146, 0
        %v3149 = vxor.u32 %v3144, 2147483648
        %v3150 = vsel %vm3148, %v3143, %v3149
        %vm3151 = vcmp.eq.s32.totalorder %v3146, 2
        %v3152 = vxor.u32 %v3143, 2147483648
        %v3153 = vsel %vm3151, %v3152, %v3144
        %v3154 = vsel %vm3147, %v3150, %v3153
        %v3155 = vsel %vm3145, nan, %v3154
        %v3156 = vand.u32 2147483647, %v446
        %vm3157 = vcmp.le.f32.partialorder %v3156, 0.7853982
        %vm3158 = vcmp.lt.s32.totalorder %v446, 0
        %v3159 = vand.u32 %v446, 2139095040
        %v3160 = vshrl.u32 %v3159, 23
        %v3161 = vsub.s32 %v3160, 127
        %v3162 = vand.u32 2147483647, %v446
        %v3163 = vand.u32 %v3162, 8388607
        %v3164 = vor.u32 %v3163, 8388608
        %v3165 = vsub.s32 0, %v3164
        %v3166 = vadd.s32 %v3161, 1
        %vm3167 = vcmp.gt.s32.totalorder %v3166, 0
        %v3168 = vsel %vm3167, %v3166, 0
        %v3169 = vshrl.u32 %v3168, 5
        %v3170 = vand.u32 %v3168, 31
        %v3171 = vsub.s32 32, %v3170
        %v3172 = vshrl.u32 683565275, %v3171
        %v3173 = vshll.u32 683565275, %v3170
        %v3174 = vshrl.u32 2475754826, %v3171
        %v3175 = vor.u32 %v3173, %v3174
        %v3176 = vshll.u32 2475754826, %v3170
        %v3177 = vshrl.u32 2131351028, %v3171
        %v3178 = vor.u32 %v3176, %v3177
        %v3179 = vshll.u32 2131351028, %v3170
        %v3180 = vshrl.u32 2102212464, %v3171
        %v3181 = vor.u32 %v3179, %v3180
        %v3182 = vshll.u32 2102212464, %v3170
        %v3183 = vshrl.u32 920167782, %v3171
        %v3184 = vor.u32 %v3182, %v3183
        %v3185 = vshll.u32 920167782, %v3170
        %v3186 = vshrl.u32 1326507024, %v3171
        %v3187 = vor.u32 %v3185, %v3186
        %vm3188 = vcmp.lt.s32.totalorder %v3169, 1
        %vm3189 = vcmp.lt.s32.totalorder %v3169, 2
        %vm3190 = vcmp.lt.s32.totalorder %v3169, 3
        %vm3191 = vcmp.lt.s32.totalorder %v3169, 4
        %v3192 = vsel %vm3188, %v3172, %v3175
        %v3193 = vsel %vm3191, %v3181, 2102212464
        %v3194 = vsel %vm3190, %v3178, %v3193
        %v3195 = vsel %vm3189, %v3192, %v3194
        %v3196 = vsel %vm3188, %v3175, %v3178
        %v3197 = vsel %vm3191, %v3184, 920167782
        %v3198 = vsel %vm3190, %v3181, %v3197
        %v3199 = vsel %vm3189, %v3196, %v3198
        %v3200 = vsel %vm3188, %v3178, %v3181
        %v3201 = vsel %vm3191, %v3187, 1326507024
        %v3202 = vsel %vm3190, %v3184, %v3201
        %v3203 = vsel %vm3189, %v3200, %v3202
        %v3204 = vshll.u32 %v3164, 8
        %v3205 = vmul.u32.u64.compose %v3204, %v3203
        %v3206 = vextract.low.u32 %v3205
        %v3207 = vextract.high.u32 %v3205
        %v3208 = vmul.u32.u64.compose %v3204, %v3199
        %v3209 = vextract.low.u32 %v3208
        %v3210 = vextract.high.u32 %v3208
        %v3211 = vmul.u32 %v3204, %v3195
        %v3212 = vadd.s32 %v3207, %v3209
        %vm3213 = vc.u32 %v3207, %v3209
        %v3214 = vadd.s32 %v3210, 1
        %v3215 = vsel %vm3213, %v3214, %v3210
        %v3216 = vadd.s32 %v3211, %v3215
        %v3217 = vadd.s32 %v3216, 536870912
        %v3218 = vshrl.u32 %v3217, 30
        %v3219 = vshll.u32 %v3218, 30
        %v3220 = vsub.s32 %v3216, %v3219
        %vm3221 = vcmp.lt.s32.totalorder %v3220, 0
        %v3222 = vsub.s32 0, %v3220
        %v3223 = vsel %vm3221, %v3222, %v3220
        %v3224 = vclz %v3223
        %v3225 = vsub.s32 %v3224, 2
        %vm3226 = vcmp.gt.s32.totalorder 0, %v3225
        %v3227 = vsel %vm3226, 0, %v3225
        %v3228 = vsub.s32 32, %v3227
        %v3229 = vshll.u32 %v3220, %v3227
        %v3230 = vshrl.u32 %v3212, %v3228
        %v3231 = vor.u32 %v3229, %v3230
        %v3232 = vsub.s32 4294967266, %v3227
        %v3233 = vadd.s32 %v3232, 127
        %v3234 = vshll.u32 %v3233, 23
        %v3235 = vor.u32 4788187, %v3234
        %v3236 = vand.u32 2147483647, %v3235
        %v3238 = vcvt.s32.f32 %v3231
        %v3239 = vmul.f32 %v3238, %v3236
        %v3240 = vxor.u32 %v3239, 2147483648
        %v3241 = vsel %vm3158, %v3240, %v3239
        %v3242 = vsub.s32 4, %v3218
        %v3243 = vsel %vm3158, %v3242, %v3218
        %v3244 = vsel %vm3157, %v446, %v3241
        %v3245 = vsel %vm3157, 0, %v3243
        %v3246 = vcosq.f32.pop %v3244
        %v3247 = vsinq.f32.pop %v3244
        %vm3248 = vweird.f32 %v446
        %v3249 = vand.u32 %v3245, 3
        %vm3250 = vcmp.lt.s32.totalorder %v3249, 2
        %vm3251 = vcmp.eq.s32.totalorder %v3249, 0
        %v3252 = vxor.u32 %v3247, 2147483648
        %v3253 = vsel %vm3251, %v3246, %v3252
        %vm3254 = vcmp.eq.s32.totalorder %v3249, 2
        %v3255 = vxor.u32 %v3246, 2147483648
        %v3256 = vsel %vm3254, %v3255, %v3247
        %v3257 = vsel %vm3250, %v3253, %v3256
        %v3258 = vsel %vm3248, nan, %v3257
        %v3259 = vand.u32 2147483647, %v448
        %vm3260 = vcmp.le.f32.partialorder %v3259, 0.7853982
        %vm3261 = vcmp.lt.s32.totalorder %v448, 0
        %v3262 = vand.u32 %v448, 2139095040
        %v3263 = vshrl.u32 %v3262, 23
        %v3264 = vsub.s32 %v3263, 127
        %v3265 = vand.u32 2147483647, %v448
        %v3266 = vand.u32 %v3265, 8388607
        %v3267 = vor.u32 %v3266, 8388608
        %v3268 = vsub.s32 0, %v3267
        %v3269 = vadd.s32 %v3264, 1
        %vm3270 = vcmp.gt.s32.totalorder %v3269, 0
        %v3271 = vsel %vm3270, %v3269, 0
        %v3272 = vshrl.u32 %v3271, 5
        %v3273 = vand.u32 %v3271, 31
        %v3274 = vsub.s32 32, %v3273
        %v3275 = vshrl.u32 683565275, %v3274
        %v3276 = vshll.u32 683565275, %v3273
        %v3277 = vshrl.u32 2475754826, %v3274
        %v3278 = vor.u32 %v3276, %v3277
        %v3279 = vshll.u32 2475754826, %v3273
        %v3280 = vshrl.u32 2131351028, %v3274
        %v3281 = vor.u32 %v3279, %v3280
        %v3282 = vshll.u32 2131351028, %v3273
        %v3283 = vshrl.u32 2102212464, %v3274
        %v3284 = vor.u32 %v3282, %v3283
        %v3285 = vshll.u32 2102212464, %v3273
        %v3286 = vshrl.u32 920167782, %v3274
        %v3287 = vor.u32 %v3285, %v3286
        %v3288 = vshll.u32 920167782, %v3273
        %v3289 = vshrl.u32 1326507024, %v3274
        %v3290 = vor.u32 %v3288, %v3289
        %vm3291 = vcmp.lt.s32.totalorder %v3272, 1
        %vm3292 = vcmp.lt.s32.totalorder %v3272, 2
        %vm3293 = vcmp.lt.s32.totalorder %v3272, 3
        %vm3294 = vcmp.lt.s32.totalorder %v3272, 4
        %v3295 = vsel %vm3291, %v3275, %v3278
        %v3296 = vsel %vm3294, %v3284, 2102212464
        %v3297 = vsel %vm3293, %v3281, %v3296
        %v3298 = vsel %vm3292, %v3295, %v3297
        %v3299 = vsel %vm3291, %v3278, %v3281
        %v3300 = vsel %vm3294, %v3287, 920167782
        %v3301 = vsel %vm3293, %v3284, %v3300
        %v3302 = vsel %vm3292, %v3299, %v3301
        %v3303 = vsel %vm3291, %v3281, %v3284
        %v3304 = vsel %vm3294, %v3290, 1326507024
        %v3305 = vsel %vm3293, %v3287, %v3304
        %v3306 = vsel %vm3292, %v3303, %v3305
        %v3307 = vshll.u32 %v3267, 8
        %v3308 = vmul.u32.u64.compose %v3307, %v3306
        %v3309 = vextract.low.u32 %v3308
        %v3310 = vextract.high.u32 %v3308
        %v3311 = vmul.u32.u64.compose %v3307, %v3302
        %v3312 = vextract.low.u32 %v3311
        %v3313 = vextract.high.u32 %v3311
        %v3314 = vmul.u32 %v3307, %v3298
        %v3315 = vadd.s32 %v3310, %v3312
        %vm3316 = vc.u32 %v3310, %v3312
        %v3317 = vadd.s32 %v3313, 1
        %v3318 = vsel %vm3316, %v3317, %v3313
        %v3319 = vadd.s32 %v3314, %v3318
        %v3320 = vadd.s32 %v3319, 536870912
        %v3321 = vshrl.u32 %v3320, 30
        %v3322 = vshll.u32 %v3321, 30
        %v3323 = vsub.s32 %v3319, %v3322
        %vm3324 = vcmp.lt.s32.totalorder %v3323, 0
        %v3325 = vsub.s32 0, %v3323
        %v3326 = vsel %vm3324, %v3325, %v3323
        %v3327 = vclz %v3326
        %v3328 = vsub.s32 %v3327, 2
        %vm3329 = vcmp.gt.s32.totalorder 0, %v3328
        %v3330 = vsel %vm3329, 0, %v3328
        %v3331 = vsub.s32 32, %v3330
        %v3332 = vshll.u32 %v3323, %v3330
        %v3333 = vshrl.u32 %v3315, %v3331
        %v3334 = vor.u32 %v3332, %v3333
        %v3335 = vsub.s32 4294967266, %v3330
        %v3336 = vadd.s32 %v3335, 127
        %v3337 = vshll.u32 %v3336, 23
        %v3338 = vor.u32 4788187, %v3337
        %v3339 = vand.u32 2147483647, %v3338
        %v3341 = vcvt.s32.f32 %v3334
        %v3342 = vmul.f32 %v3341, %v3339
        %v3343 = vxor.u32 %v3342, 2147483648
        %v3344 = vsel %vm3261, %v3343, %v3342
        %v3345 = vsub.s32 4, %v3321
        %v3346 = vsel %vm3261, %v3345, %v3321
        %v3347 = vsel %vm3260, %v448, %v3344
        %v3348 = vsel %vm3260, 0, %v3346
        %v3349 = vcosq.f32.pop %v3347
        %v3350 = vsinq.f32.pop %v3347
        %vm3351 = vweird.f32 %v448
        %v3352 = vand.u32 %v3348, 3
        %vm3353 = vcmp.lt.s32.totalorder %v3352, 2
        %vm3354 = vcmp.eq.s32.totalorder %v3352, 0
        %v3355 = vxor.u32 %v3350, 2147483648
        %v3356 = vsel %vm3354, %v3349, %v3355
        %vm3357 = vcmp.eq.s32.totalorder %v3352, 2
        %v3358 = vxor.u32 %v3349, 2147483648
        %v3359 = vsel %vm3357, %v3358, %v3350
        %v3360 = vsel %vm3353, %v3356, %v3359
        %v3361 = vsel %vm3351, nan, %v3360
        %v3362 = vand.u32 2147483647, %v452
        %vm3363 = vcmp.le.f32.partialorder %v3362, 0.7853982
        %vm3364 = vcmp.lt.s32.totalorder %v452, 0
        %v3365 = vand.u32 %v452, 2139095040
        %v3366 = vshrl.u32 %v3365, 23
        %v3367 = vsub.s32 %v3366, 127
        %v3368 = vand.u32 2147483647, %v452
        %v3369 = vand.u32 %v3368, 8388607
        %v3370 = vor.u32 %v3369, 8388608
        %v3371 = vsub.s32 0, %v3370
        %v3372 = vadd.s32 %v3367, 1
        %vm3373 = vcmp.gt.s32.totalorder %v3372, 0
        %v3374 = vsel %vm3373, %v3372, 0
        %v3375 = vshrl.u32 %v3374, 5
        %v3376 = vand.u32 %v3374, 31
        %v3377 = vsub.s32 32, %v3376
        %v3378 = vshrl.u32 683565275, %v3377
        %v3379 = vshll.u32 683565275, %v3376
        %v3380 = vshrl.u32 2475754826, %v3377
        %v3381 = vor.u32 %v3379, %v3380
        %v3382 = vshll.u32 2475754826, %v3376
        %v3383 = vshrl.u32 2131351028, %v3377
        %v3384 = vor.u32 %v3382, %v3383
        %v3385 = vshll.u32 2131351028, %v3376
        %v3386 = vshrl.u32 2102212464, %v3377
        %v3387 = vor.u32 %v3385, %v3386
        %v3388 = vshll.u32 2102212464, %v3376
        %v3389 = vshrl.u32 920167782, %v3377
        %v3390 = vor.u32 %v3388, %v3389
        %v3391 = vshll.u32 920167782, %v3376
        %v3392 = vshrl.u32 1326507024, %v3377
        %v3393 = vor.u32 %v3391, %v3392
        %vm3394 = vcmp.lt.s32.totalorder %v3375, 1
        %vm3395 = vcmp.lt.s32.totalorder %v3375, 2
        %vm3396 = vcmp.lt.s32.totalorder %v3375, 3
        %vm3397 = vcmp.lt.s32.totalorder %v3375, 4
        %v3398 = vsel %vm3394, %v3378, %v3381
        %v3399 = vsel %vm3397, %v3387, 2102212464
        %v3400 = vsel %vm3396, %v3384, %v3399
        %v3401 = vsel %vm3395, %v3398, %v3400
        %v3402 = vsel %vm3394, %v3381, %v3384
        %v3403 = vsel %vm3397, %v3390, 920167782
        %v3404 = vsel %vm3396, %v3387, %v3403
        %v3405 = vsel %vm3395, %v3402, %v3404
        %v3406 = vsel %vm3394, %v3384, %v3387
        %v3407 = vsel %vm3397, %v3393, 1326507024
        %v3408 = vsel %vm3396, %v3390, %v3407
        %v3409 = vsel %vm3395, %v3406, %v3408
        %v3410 = vshll.u32 %v3370, 8
        %v3411 = vmul.u32.u64.compose %v3410, %v3409
        %v3412 = vextract.low.u32 %v3411
        %v3413 = vextract.high.u32 %v3411
        %v3414 = vmul.u32.u64.compose %v3410, %v3405
        %v3415 = vextract.low.u32 %v3414
        %v3416 = vextract.high.u32 %v3414
        %v3417 = vmul.u32 %v3410, %v3401
        %v3418 = vadd.s32 %v3413, %v3415
        %vm3419 = vc.u32 %v3413, %v3415
        %v3420 = vadd.s32 %v3416, 1
        %v3421 = vsel %vm3419, %v3420, %v3416
        %v3422 = vadd.s32 %v3417, %v3421
        %v3423 = vadd.s32 %v3422, 536870912
        %v3424 = vshrl.u32 %v3423, 30
        %v3425 = vshll.u32 %v3424, 30
        %v3426 = vsub.s32 %v3422, %v3425
        %vm3427 = vcmp.lt.s32.totalorder %v3426, 0
        %v3428 = vsub.s32 0, %v3426
        %v3429 = vsel %vm3427, %v3428, %v3426
        %v3430 = vclz %v3429
        %v3431 = vsub.s32 %v3430, 2
        %vm3432 = vcmp.gt.s32.totalorder 0, %v3431
        %v3433 = vsel %vm3432, 0, %v3431
        %v3434 = vsub.s32 32, %v3433
        %v3435 = vshll.u32 %v3426, %v3433
        %v3436 = vshrl.u32 %v3418, %v3434
        %v3437 = vor.u32 %v3435, %v3436
        %v3438 = vsub.s32 4294967266, %v3433
        %v3439 = vadd.s32 %v3438, 127
        %v3440 = vshll.u32 %v3439, 23
        %v3441 = vor.u32 4788187, %v3440
        %v3442 = vand.u32 2147483647, %v3441
        %v3444 = vcvt.s32.f32 %v3437
        %v3445 = vmul.f32 %v3444, %v3442
        %v3446 = vxor.u32 %v3445, 2147483648
        %v3447 = vsel %vm3364, %v3446, %v3445
        %v3448 = vsub.s32 4, %v3424
        %v3449 = vsel %vm3364, %v3448, %v3424
        %v3450 = vsel %vm3363, %v452, %v3447
        %v3451 = vsel %vm3363, 0, %v3449
        %v3452 = vcosq.f32.pop %v3450
        %v3453 = vsinq.f32.pop %v3450
        %vm3454 = vweird.f32 %v452
        %v3455 = vand.u32 %v3451, 3
        %vm3456 = vcmp.lt.s32.totalorder %v3455, 2
        %vm3457 = vcmp.eq.s32.totalorder %v3455, 0
        %v3458 = vxor.u32 %v3453, 2147483648
        %v3459 = vsel %vm3457, %v3452, %v3458
        %vm3460 = vcmp.eq.s32.totalorder %v3455, 2
        %v3461 = vxor.u32 %v3452, 2147483648
        %v3462 = vsel %vm3460, %v3461, %v3453
        %v3463 = vsel %vm3456, %v3459, %v3462
        %v3464 = vsel %vm3454, nan, %v3463
        %v3465 = vand.u32 2147483647, %v454
        %vm3466 = vcmp.le.f32.partialorder %v3465, 0.7853982
        %vm3467 = vcmp.lt.s32.totalorder %v454, 0
        %v3468 = vand.u32 %v454, 2139095040
        %v3469 = vshrl.u32 %v3468, 23
        %v3470 = vsub.s32 %v3469, 127
        %v3471 = vand.u32 2147483647, %v454
        %v3472 = vand.u32 %v3471, 8388607
        %v3473 = vor.u32 %v3472, 8388608
        %v3474 = vsub.s32 0, %v3473
        %v3475 = vadd.s32 %v3470, 1
        %vm3476 = vcmp.gt.s32.totalorder %v3475, 0
        %v3477 = vsel %vm3476, %v3475, 0
        %v3478 = vshrl.u32 %v3477, 5
        %v3479 = vand.u32 %v3477, 31
        %v3480 = vsub.s32 32, %v3479
        %v3481 = vshrl.u32 683565275, %v3480
        %v3482 = vshll.u32 683565275, %v3479
        %v3483 = vshrl.u32 2475754826, %v3480
        %v3484 = vor.u32 %v3482, %v3483
        %v3485 = vshll.u32 2475754826, %v3479
        %v3486 = vshrl.u32 2131351028, %v3480
        %v3487 = vor.u32 %v3485, %v3486
        %v3488 = vshll.u32 2131351028, %v3479
        %v3489 = vshrl.u32 2102212464, %v3480
        %v3490 = vor.u32 %v3488, %v3489
        %v3491 = vshll.u32 2102212464, %v3479
        %v3492 = vshrl.u32 920167782, %v3480
        %v3493 = vor.u32 %v3491, %v3492
        %v3494 = vshll.u32 920167782, %v3479
        %v3495 = vshrl.u32 1326507024, %v3480
        %v3496 = vor.u32 %v3494, %v3495
        %vm3497 = vcmp.lt.s32.totalorder %v3478, 1
        %vm3498 = vcmp.lt.s32.totalorder %v3478, 2
        %vm3499 = vcmp.lt.s32.totalorder %v3478, 3
        %vm3500 = vcmp.lt.s32.totalorder %v3478, 4
        %v3501 = vsel %vm3497, %v3481, %v3484
        %v3502 = vsel %vm3500, %v3490, 2102212464
        %v3503 = vsel %vm3499, %v3487, %v3502
        %v3504 = vsel %vm3498, %v3501, %v3503
        %v3505 = vsel %vm3497, %v3484, %v3487
        %v3506 = vsel %vm3500, %v3493, 920167782
        %v3507 = vsel %vm3499, %v3490, %v3506
        %v3508 = vsel %vm3498, %v3505, %v3507
        %v3509 = vsel %vm3497, %v3487, %v3490
        %v3510 = vsel %vm3500, %v3496, 1326507024
        %v3511 = vsel %vm3499, %v3493, %v3510
        %v3512 = vsel %vm3498, %v3509, %v3511
        %v3513 = vshll.u32 %v3473, 8
        %v3514 = vmul.u32.u64.compose %v3513, %v3512
        %v3515 = vextract.low.u32 %v3514
        %v3516 = vextract.high.u32 %v3514
        %v3517 = vmul.u32.u64.compose %v3513, %v3508
        %v3518 = vextract.low.u32 %v3517
        %v3519 = vextract.high.u32 %v3517
        %v3520 = vmul.u32 %v3513, %v3504
        %v3521 = vadd.s32 %v3516, %v3518
        %vm3522 = vc.u32 %v3516, %v3518
        %v3523 = vadd.s32 %v3519, 1
        %v3524 = vsel %vm3522, %v3523, %v3519
        %v3525 = vadd.s32 %v3520, %v3524
        %v3526 = vadd.s32 %v3525, 536870912
        %v3527 = vshrl.u32 %v3526, 30
        %v3528 = vshll.u32 %v3527, 30
        %v3529 = vsub.s32 %v3525, %v3528
        %vm3530 = vcmp.lt.s32.totalorder %v3529, 0
        %v3531 = vsub.s32 0, %v3529
        %v3532 = vsel %vm3530, %v3531, %v3529
        %v3533 = vclz %v3532
        %v3534 = vsub.s32 %v3533, 2
        %vm3535 = vcmp.gt.s32.totalorder 0, %v3534
        %v3536 = vsel %vm3535, 0, %v3534
        %v3537 = vsub.s32 32, %v3536
        %v3538 = vshll.u32 %v3529, %v3536
        %v3539 = vshrl.u32 %v3521, %v3537
        %v3540 = vor.u32 %v3538, %v3539
        %v3541 = vsub.s32 4294967266, %v3536
        %v3542 = vadd.s32 %v3541, 127
        %v3543 = vshll.u32 %v3542, 23
        %v3544 = vor.u32 4788187, %v3543
        %v3545 = vand.u32 2147483647, %v3544
        %v3547 = vcvt.s32.f32 %v3540
        %v3548 = vmul.f32 %v3547, %v3545
        %v3549 = vxor.u32 %v3548, 2147483648
        %v3550 = vsel %vm3467, %v3549, %v3548
        %v3551 = vsub.s32 4, %v3527
        %v3552 = vsel %vm3467, %v3551, %v3527
        %v3553 = vsel %vm3466, %v454, %v3550
        %v3554 = vsel %vm3466, 0, %v3552
        %v3555 = vcosq.f32.pop %v3553
        %v3556 = vsinq.f32.pop %v3553
        %vm3557 = vweird.f32 %v454
        %v3558 = vand.u32 %v3554, 3
        %vm3559 = vcmp.lt.s32.totalorder %v3558, 2
        %vm3560 = vcmp.eq.s32.totalorder %v3558, 0
        %v3561 = vxor.u32 %v3556, 2147483648
        %v3562 = vsel %vm3560, %v3555, %v3561
        %vm3563 = vcmp.eq.s32.totalorder %v3558, 2
        %v3564 = vxor.u32 %v3555, 2147483648
        %v3565 = vsel %vm3563, %v3564, %v3556
        %v3566 = vsel %vm3559, %v3562, %v3565
        %v3567 = vsel %vm3557, nan, %v3566
        %v3568 = vand.u32 2147483647, %v458
        %vm3569 = vcmp.le.f32.partialorder %v3568, 0.7853982
        %vm3570 = vcmp.lt.s32.totalorder %v458, 0
        %v3571 = vand.u32 %v458, 2139095040
        %v3572 = vshrl.u32 %v3571, 23
        %v3573 = vsub.s32 %v3572, 127
        %v3574 = vand.u32 2147483647, %v458
        %v3575 = vand.u32 %v3574, 8388607
        %v3576 = vor.u32 %v3575, 8388608
        %v3577 = vsub.s32 0, %v3576
        %v3578 = vadd.s32 %v3573, 1
        %vm3579 = vcmp.gt.s32.totalorder %v3578, 0
        %v3580 = vsel %vm3579, %v3578, 0
        %v3581 = vshrl.u32 %v3580, 5
        %v3582 = vand.u32 %v3580, 31
        %v3583 = vsub.s32 32, %v3582
        %v3584 = vshrl.u32 683565275, %v3583
        %v3585 = vshll.u32 683565275, %v3582
        %v3586 = vshrl.u32 2475754826, %v3583
        %v3587 = vor.u32 %v3585, %v3586
        %v3588 = vshll.u32 2475754826, %v3582
        %v3589 = vshrl.u32 2131351028, %v3583
        %v3590 = vor.u32 %v3588, %v3589
        %v3591 = vshll.u32 2131351028, %v3582
        %v3592 = vshrl.u32 2102212464, %v3583
        %v3593 = vor.u32 %v3591, %v3592
        %v3594 = vshll.u32 2102212464, %v3582
        %v3595 = vshrl.u32 920167782, %v3583
        %v3596 = vor.u32 %v3594, %v3595
        %v3597 = vshll.u32 920167782, %v3582
        %v3598 = vshrl.u32 1326507024, %v3583
        %v3599 = vor.u32 %v3597, %v3598
        %vm3600 = vcmp.lt.s32.totalorder %v3581, 1
        %vm3601 = vcmp.lt.s32.totalorder %v3581, 2
        %vm3602 = vcmp.lt.s32.totalorder %v3581, 3
        %vm3603 = vcmp.lt.s32.totalorder %v3581, 4
        %v3604 = vsel %vm3600, %v3584, %v3587
        %v3605 = vsel %vm3603, %v3593, 2102212464
        %v3606 = vsel %vm3602, %v3590, %v3605
        %v3607 = vsel %vm3601, %v3604, %v3606
        %v3608 = vsel %vm3600, %v3587, %v3590
        %v3609 = vsel %vm3603, %v3596, 920167782
        %v3610 = vsel %vm3602, %v3593, %v3609
        %v3611 = vsel %vm3601, %v3608, %v3610
        %v3612 = vsel %vm3600, %v3590, %v3593
        %v3613 = vsel %vm3603, %v3599, 1326507024
        %v3614 = vsel %vm3602, %v3596, %v3613
        %v3615 = vsel %vm3601, %v3612, %v3614
        %v3616 = vshll.u32 %v3576, 8
        %v3617 = vmul.u32.u64.compose %v3616, %v3615
        %v3618 = vextract.low.u32 %v3617
        %v3619 = vextract.high.u32 %v3617
        %v3620 = vmul.u32.u64.compose %v3616, %v3611
        %v3621 = vextract.low.u32 %v3620
        %v3622 = vextract.high.u32 %v3620
        %v3623 = vmul.u32 %v3616, %v3607
        %v3624 = vadd.s32 %v3619, %v3621
        %vm3625 = vc.u32 %v3619, %v3621
        %v3626 = vadd.s32 %v3622, 1
        %v3627 = vsel %vm3625, %v3626, %v3622
        %v3628 = vadd.s32 %v3623, %v3627
        %v3629 = vadd.s32 %v3628, 536870912
        %v3630 = vshrl.u32 %v3629, 30
        %v3631 = vshll.u32 %v3630, 30
        %v3632 = vsub.s32 %v3628, %v3631
        %vm3633 = vcmp.lt.s32.totalorder %v3632, 0
        %v3634 = vsub.s32 0, %v3632
        %v3635 = vsel %vm3633, %v3634, %v3632
        %v3636 = vclz %v3635
        %v3637 = vsub.s32 %v3636, 2
        %vm3638 = vcmp.gt.s32.totalorder 0, %v3637
        %v3639 = vsel %vm3638, 0, %v3637
        %v3640 = vsub.s32 32, %v3639
        %v3641 = vshll.u32 %v3632, %v3639
        %v3642 = vshrl.u32 %v3624, %v3640
        %v3643 = vor.u32 %v3641, %v3642
        %v3644 = vsub.s32 4294967266, %v3639
        %v3645 = vadd.s32 %v3644, 127
        %v3646 = vshll.u32 %v3645, 23
        %v3647 = vor.u32 4788187, %v3646
        %v3648 = vand.u32 2147483647, %v3647
        %v3650 = vcvt.s32.f32 %v3643
        %v3651 = vmul.f32 %v3650, %v3648
        %v3652 = vxor.u32 %v3651, 2147483648
        %v3653 = vsel %vm3570, %v3652, %v3651
        %v3654 = vsub.s32 4, %v3630
        %v3655 = vsel %vm3570, %v3654, %v3630
        %v3656 = vsel %vm3569, %v458, %v3653
        %v3657 = vsel %vm3569, 0, %v3655
        %v3658 = vcosq.f32.pop %v3656
        %v3659 = vsinq.f32.pop %v3656
        %vm3660 = vweird.f32 %v458
        %v3661 = vand.u32 %v3657, 3
        %vm3662 = vcmp.lt.s32.totalorder %v3661, 2
        %vm3663 = vcmp.eq.s32.totalorder %v3661, 0
        %v3664 = vxor.u32 %v3659, 2147483648
        %v3665 = vsel %vm3663, %v3658, %v3664
        %vm3666 = vcmp.eq.s32.totalorder %v3661, 2
        %v3667 = vxor.u32 %v3658, 2147483648
        %v3668 = vsel %vm3666, %v3667, %v3659
        %v3669 = vsel %vm3662, %v3665, %v3668
        %v3670 = vsel %vm3660, nan, %v3669
        %v3671 = vand.u32 2147483647, %v460
        %vm3672 = vcmp.le.f32.partialorder %v3671, 0.7853982
        %vm3673 = vcmp.lt.s32.totalorder %v460, 0
        %v3674 = vand.u32 %v460, 2139095040
        %v3675 = vshrl.u32 %v3674, 23
        %v3676 = vsub.s32 %v3675, 127
        %v3677 = vand.u32 2147483647, %v460
        %v3678 = vand.u32 %v3677, 8388607
        %v3679 = vor.u32 %v3678, 8388608
        %v3680 = vsub.s32 0, %v3679
        %v3681 = vadd.s32 %v3676, 1
        %vm3682 = vcmp.gt.s32.totalorder %v3681, 0
        %v3683 = vsel %vm3682, %v3681, 0
        %v3684 = vshrl.u32 %v3683, 5
        %v3685 = vand.u32 %v3683, 31
        %v3686 = vsub.s32 32, %v3685
        %v3687 = vshrl.u32 683565275, %v3686
        %v3688 = vshll.u32 683565275, %v3685
        %v3689 = vshrl.u32 2475754826, %v3686
        %v3690 = vor.u32 %v3688, %v3689
        %v3691 = vshll.u32 2475754826, %v3685
        %v3692 = vshrl.u32 2131351028, %v3686
        %v3693 = vor.u32 %v3691, %v3692
        %v3694 = vshll.u32 2131351028, %v3685
        %v3695 = vshrl.u32 2102212464, %v3686
        %v3696 = vor.u32 %v3694, %v3695
        %v3697 = vshll.u32 2102212464, %v3685
        %v3698 = vshrl.u32 920167782, %v3686
        %v3699 = vor.u32 %v3697, %v3698
        %v3700 = vshll.u32 920167782, %v3685
        %v3701 = vshrl.u32 1326507024, %v3686
        %v3702 = vor.u32 %v3700, %v3701
        %vm3703 = vcmp.lt.s32.totalorder %v3684, 1
        %vm3704 = vcmp.lt.s32.totalorder %v3684, 2
        %vm3705 = vcmp.lt.s32.totalorder %v3684, 3
        %vm3706 = vcmp.lt.s32.totalorder %v3684, 4
        %v3707 = vsel %vm3703, %v3687, %v3690
        %v3708 = vsel %vm3706, %v3696, 2102212464
        %v3709 = vsel %vm3705, %v3693, %v3708
        %v3710 = vsel %vm3704, %v3707, %v3709
        %v3711 = vsel %vm3703, %v3690, %v3693
        %v3712 = vsel %vm3706, %v3699, 920167782
        %v3713 = vsel %vm3705, %v3696, %v3712
        %v3714 = vsel %vm3704, %v3711, %v3713
        %v3715 = vsel %vm3703, %v3693, %v3696
        %v3716 = vsel %vm3706, %v3702, 1326507024
        %v3717 = vsel %vm3705, %v3699, %v3716
        %v3718 = vsel %vm3704, %v3715, %v3717
        %v3719 = vshll.u32 %v3679, 8
        %v3720 = vmul.u32.u64.compose %v3719, %v3718
        %v3721 = vextract.low.u32 %v3720
        %v3722 = vextract.high.u32 %v3720
        %v3723 = vmul.u32.u64.compose %v3719, %v3714
        %v3724 = vextract.low.u32 %v3723
        %v3725 = vextract.high.u32 %v3723
        %v3726 = vmul.u32 %v3719, %v3710
        %v3727 = vadd.s32 %v3722, %v3724
        %vm3728 = vc.u32 %v3722, %v3724
        %v3729 = vadd.s32 %v3725, 1
        %v3730 = vsel %vm3728, %v3729, %v3725
        %v3731 = vadd.s32 %v3726, %v3730
        %v3732 = vadd.s32 %v3731, 536870912
        %v3733 = vshrl.u32 %v3732, 30
        %v3734 = vshll.u32 %v3733, 30
        %v3735 = vsub.s32 %v3731, %v3734
        %vm3736 = vcmp.lt.s32.totalorder %v3735, 0
        %v3737 = vsub.s32 0, %v3735
        %v3738 = vsel %vm3736, %v3737, %v3735
        %v3739 = vclz %v3738
        %v3740 = vsub.s32 %v3739, 2
        %vm3741 = vcmp.gt.s32.totalorder 0, %v3740
        %v3742 = vsel %vm3741, 0, %v3740
        %v3743 = vsub.s32 32, %v3742
        %v3744 = vshll.u32 %v3735, %v3742
        %v3745 = vshrl.u32 %v3727, %v3743
        %v3746 = vor.u32 %v3744, %v3745
        %v3747 = vsub.s32 4294967266, %v3742
        %v3748 = vadd.s32 %v3747, 127
        %v3749 = vshll.u32 %v3748, 23
        %v3750 = vor.u32 4788187, %v3749
        %v3751 = vand.u32 2147483647, %v3750
        %v3753 = vcvt.s32.f32 %v3746
        %v3754 = vmul.f32 %v3753, %v3751
        %v3755 = vxor.u32 %v3754, 2147483648
        %v3756 = vsel %vm3673, %v3755, %v3754
        %v3757 = vsub.s32 4, %v3733
        %v3758 = vsel %vm3673, %v3757, %v3733
        %v3759 = vsel %vm3672, %v460, %v3756
        %v3760 = vsel %vm3672, 0, %v3758
        %v3761 = vcosq.f32.pop %v3759
        %v3762 = vsinq.f32.pop %v3759
        %vm3763 = vweird.f32 %v460
        %v3764 = vand.u32 %v3760, 3
        %vm3765 = vcmp.lt.s32.totalorder %v3764, 2
        %vm3766 = vcmp.eq.s32.totalorder %v3764, 0
        %v3767 = vxor.u32 %v3762, 2147483648
        %v3768 = vsel %vm3766, %v3761, %v3767
        %vm3769 = vcmp.eq.s32.totalorder %v3764, 2
        %v3770 = vxor.u32 %v3761, 2147483648
        %v3771 = vsel %vm3769, %v3770, %v3762
        %v3772 = vsel %vm3765, %v3768, %v3771
        %v3773 = vsel %vm3763, nan, %v3772
        %v3774 = vld [vmem:[%s2] sm:$0xff]
        %v3775 = vld [vmem:[%s2 + $0x8] sm:$0xff]
        %v3776 = vld [vmem:[%s2 + $0x10] sm:$0xff]
        %v3777 = vld [vmem:[%s2 + $0x18] sm:$0xff]
        %v3778 = vld [vmem:[%s2 + $0x20] sm:$0xff]
        %v3779 = vld [vmem:[%s2 + $0x28] sm:$0xff]
        %v3780 = vld [vmem:[%s2 + $0x30] sm:$0xff]
        %v3781 = vld [vmem:[%s2 + $0x38] sm:$0xff]
        %v3782 = vld [vmem:[%s2 + $0x40] sm:$0xff]
        %v3783 = vld [vmem:[%s2 + $0x48] sm:$0xff]
        %v3784 = vld [vmem:[%s2 + $0x50] sm:$0xff]
        %v3785 = vld [vmem:[%s2 + $0x58] sm:$0xff]
        %v3786 = vld [vmem:[%s2 + $0x60] sm:$0xff]
        %v3787 = vld [vmem:[%s2 + $0x68] sm:$0xff]
        %v3788 = vld [vmem:[%s2 + $0x70] sm:$0xff]
        %v3789 = vld [vmem:[%s2 + $0x78] sm:$0xff]
        %v3790 = vld [vmem:[%s3] sm:$0xff]
        %v3791 = vld [vmem:[%s3 + $0x8] sm:$0xff]
        %v3792 = vld [vmem:[%s3 + $0x10] sm:$0xff]
        %v3793 = vld [vmem:[%s3 + $0x18] sm:$0xff]
        %v3794 = vld [vmem:[%s3 + $0x20] sm:$0xff]
        %v3795 = vld [vmem:[%s3 + $0x28] sm:$0xff]
        %v3796 = vld [vmem:[%s3 + $0x30] sm:$0xff]
        %v3797 = vld [vmem:[%s3 + $0x38] sm:$0xff]
        %v3798 = vld [vmem:[%s3 + $0x40] sm:$0xff]
        %v3799 = vld [vmem:[%s3 + $0x48] sm:$0xff]
        %v3800 = vld [vmem:[%s3 + $0x50] sm:$0xff]
        %v3801 = vld [vmem:[%s3 + $0x58] sm:$0xff]
        %v3802 = vld [vmem:[%s3 + $0x60] sm:$0xff]
        %v3803 = vld [vmem:[%s3 + $0x68] sm:$0xff]
        %v3804 = vld [vmem:[%s3 + $0x70] sm:$0xff]
        %v3805 = vld [vmem:[%s3 + $0x78] sm:$0xff]
        %3807 = vset.pattern.permute.xlu0 0
        %3808 = vperm.xlu0 %3807, %v3790
        %v3809 = vpop.permute.xlu0 %3808
        %3812 = vset.pattern.permute.xlu0 0
        %3813 = vperm.xlu0 %3812, %v3791
        %v3814 = vpop.permute.xlu0 %3813
        %3817 = vset.pattern.permute.xlu0 0
        %3818 = vperm.xlu0 %3817, %v3792
        %v3819 = vpop.permute.xlu0 %3818
        %3822 = vset.pattern.permute.xlu0 0
        %3823 = vperm.xlu0 %3822, %v3793
        %v3824 = vpop.permute.xlu0 %3823
        %3827 = vset.pattern.permute.xlu0 0
        %3828 = vperm.xlu0 %3827, %v3794
        %v3829 = vpop.permute.xlu0 %3828
        %3832 = vset.pattern.permute.xlu0 0
        %3833 = vperm.xlu0 %3832, %v3795
        %v3834 = vpop.permute.xlu0 %3833
        %3837 = vset.pattern.permute.xlu0 0
        %3838 = vperm.xlu0 %3837, %v3796
        %v3839 = vpop.permute.xlu0 %3838
        %3842 = vset.pattern.permute.xlu0 0
        %3843 = vperm.xlu0 %3842, %v3797
        %v3844 = vpop.permute.xlu0 %3843
        %3847 = vset.pattern.permute.xlu0 0
        %3848 = vperm.xlu0 %3847, %v3798
        %v3849 = vpop.permute.xlu0 %3848
        %3852 = vset.pattern.permute.xlu0 0
        %3853 = vperm.xlu0 %3852, %v3799
        %v3854 = vpop.permute.xlu0 %3853
        %3857 = vset.pattern.permute.xlu0 0
        %3858 = vperm.xlu0 %3857, %v3800
        %v3859 = vpop.permute.xlu0 %3858
        %3862 = vset.pattern.permute.xlu0 0
        %3863 = vperm.xlu0 %3862, %v3801
        %v3864 = vpop.permute.xlu0 %3863
        %3867 = vset.pattern.permute.xlu0 0
        %3868 = vperm.xlu0 %3867, %v3802
        %v3869 = vpop.permute.xlu0 %3868
        %3872 = vset.pattern.permute.xlu0 0
        %3873 = vperm.xlu0 %3872, %v3803
        %v3874 = vpop.permute.xlu0 %3873
        %3877 = vset.pattern.permute.xlu0 0
        %3878 = vperm.xlu0 %3877, %v3804
        %v3879 = vpop.permute.xlu0 %3878
        %3882 = vset.pattern.permute.xlu0 0
        %3883 = vperm.xlu0 %3882, %v3805
        %v3884 = vpop.permute.xlu0 %3883
        %3886 = vmatprep.subr.mxu0 %v669
        %3887 = vmatpush1.msra.mxu0 %v565
        %3888 = vmatprep.subr.mxu0 %v877
        %3889 = vmatpush1.msra.mxu0 %v773
        %3890 = vmatprep.subr.mxu0 %v1085
        %3891 = vmatpush1.msra.mxu0 %v981
        %3892 = vmatprep.subr.mxu0 %v1293
        %3893 = vmatpush1.msra.mxu0 %v1189
        %3894 = vmatprep.subr.mxu0 %v1501
        %3895 = vmatpush1.msra.mxu0 %v1397
        %3896 = vmatprep.subr.mxu0 %v1709
        %3897 = vmatpush1.msra.mxu0 %v1605
        %3898 = vmatprep.subr.mxu0 %v1917
        %3899 = vmatpush1.msra.mxu0 %v1813
        %3900 = vmatprep.subr.mxu0 %v2125
        %3901 = vmatpush1.msra.mxu0 %v2021
        %3902 = vmatprep.subr.mxu0 %v2331
        %3903 = vmatpush1.msra.mxu0 %v2228
        %3904 = vmatprep.subr.mxu0 %v2537
        %3905 = vmatpush1.msra.mxu0 %v2434
        %3906 = vmatprep.subr.mxu0 %v2743
        %3907 = vmatpush1.msra.mxu0 %v2640
        %3908 = vmatprep.subr.mxu0 %v2949
        %3909 = vmatpush1.msra.mxu0 %v2846
        %3910 = vmatprep.subr.mxu0 %v3155
        %3911 = vmatpush1.msra.mxu0 %v3052
        %3912 = vmatprep.subr.mxu0 %v3361
        %3913 = vmatpush1.msra.mxu0 %v3258
        %3914 = vmatprep.subr.mxu0 %v3567
        %3915 = vmatpush1.msra.mxu0 %v3464
        %3916 = vmatprep.subr.mxu0 %v3773
        %3917 = vmatpush1.msra.mxu0 %v3670
        %3918 = vmatprep.subr.mxu0 0.0
        %3919 = vmatpush1.msra.mxu0 0.0
        %3920 = vmatprep.subr.mxu0 0.0
        %3921 = vmatpush1.msra.mxu0 0.0
        %3922 = vmatprep.subr.mxu0 0.0
        %3923 = vmatpush1.msra.mxu0 0.0
        %3924 = vmatprep.subr.mxu0 0.0
        %3925 = vmatpush1.msra.mxu0 0.0
        %3926 = vmatprep.subr.mxu0 0.0
        %3927 = vmatpush1.msra.mxu0 0.0
        %3928 = vmatprep.subr.mxu0 0.0
        %3929 = vmatpush1.msra.mxu0 0.0
        %3930 = vmatprep.subr.mxu0 0.0
        %3931 = vmatpush1.msra.mxu0 0.0
        %3932 = vmatprep.subr.mxu0 0.0
        %3933 = vmatpush1.msra.mxu0 0.0
        %3934 = vmatprep.subr.mxu0 0.0
        %3935 = vmatpush1.msra.mxu0 0.0
        %3936 = vmatprep.subr.mxu0 0.0
        %3937 = vmatpush1.msra.mxu0 0.0
        %3938 = vmatprep.subr.mxu0 0.0
        %3939 = vmatpush1.msra.mxu0 0.0
        %3940 = vmatprep.subr.mxu0 0.0
        %3941 = vmatpush1.msra.mxu0 0.0
        %3942 = vmatprep.subr.mxu0 0.0
        %3943 = vmatpush1.msra.mxu0 0.0
        %3944 = vmatprep.subr.mxu0 0.0
        %3945 = vmatpush1.msra.mxu0 0.0
        %3946 = vmatprep.subr.mxu0 0.0
        %3947 = vmatpush1.msra.mxu0 0.0
        %3948 = vmatprep.subr.mxu0 0.0
        %3949 = vmatpush1.msra.mxu0 0.0
        %3950 = vmatprep.mubr.f32.mxu0 0.0
        %3951 = vmatmul.mubr.f32.gmra.mrb[0].mxu0 %v3774
        %v3952 = vpop.f32.mrb[0].mxu0
        %v3953 = vadd.f32 %v3809, %v3952
        %v3954 = vpop.f32.mrb[0].mxu0
        %v3955 = vadd.f32 %v3809, %v3954
        %3956 = vmatprep.mubr.f32.mxu0 0.0
        %3957 = vmatmul.mubr.f32.gmra.mrb[0].mxu0 %v3775
        %v3958 = vpop.f32.mrb[0].mxu0
        %v3959 = vadd.f32 %v3814, %v3958
        %v3960 = vpop.f32.mrb[0].mxu0
        %v3961 = vadd.f32 %v3814, %v3960
        %3962 = vmatprep.mubr.f32.mxu0 0.0
        %3963 = vmatmul.mubr.f32.gmra.mrb[0].mxu0 %v3776
        %v3964 = vpop.f32.mrb[0].mxu0
        %v3965 = vadd.f32 %v3819, %v3964
        %v3966 = vpop.f32.mrb[0].mxu0
        %v3967 = vadd.f32 %v3819, %v3966
        %3968 = vmatprep.mubr.f32.mxu0 0.0
        %3969 = vmatmul.mubr.f32.gmra.mrb[0].mxu0 %v3777
        %v3970 = vpop.f32.mrb[0].mxu0
        %v3971 = vadd.f32 %v3824, %v3970
        %v3972 = vpop.f32.mrb[0].mxu0
        %v3973 = vadd.f32 %v3824, %v3972
        %3974 = vmatprep.mubr.f32.mxu0 0.0
        %3975 = vmatmul.mubr.f32.gmra.mrb[0].mxu0 %v3778
        %v3976 = vpop.f32.mrb[0].mxu0
        %v3977 = vadd.f32 %v3829, %v3976
        %v3978 = vpop.f32.mrb[0].mxu0
        %v3979 = vadd.f32 %v3829, %v3978
        %3980 = vmatprep.mubr.f32.mxu0 0.0
        %3981 = vmatmul.mubr.f32.gmra.mrb[0].mxu0 %v3779
        %v3982 = vpop.f32.mrb[0].mxu0
        %v3983 = vadd.f32 %v3834, %v3982
        %v3984 = vpop.f32.mrb[0].mxu0
        %v3985 = vadd.f32 %v3834, %v3984
        %3986 = vmatprep.mubr.f32.mxu0 0.0
        %3987 = vmatmul.mubr.f32.gmra.mrb[0].mxu0 %v3780
        %v3988 = vpop.f32.mrb[0].mxu0
        %v3989 = vadd.f32 %v3839, %v3988
        %v3990 = vpop.f32.mrb[0].mxu0
        %v3991 = vadd.f32 %v3839, %v3990
        %3992 = vmatprep.mubr.f32.mxu0 0.0
        %3993 = vmatmul.mubr.f32.gmra.mrb[0].mxu0 %v3781
        %v3994 = vpop.f32.mrb[0].mxu0
        %v3995 = vadd.f32 %v3844, %v3994
        %v3996 = vpop.f32.mrb[0].mxu0
        %v3997 = vadd.f32 %v3844, %v3996
        %3998 = vmatprep.mubr.f32.mxu0 0.0
        %3999 = vmatmul.mubr.f32.gmra.mrb[0].mxu0 %v3782
        %v4000 = vpop.f32.mrb[0].mxu0
        %v4001 = vadd.f32 %v3849, %v4000
        %v4002 = vpop.f32.mrb[0].mxu0
        %v4003 = vadd.f32 %v3849, %v4002
        %4004 = vmatprep.mubr.f32.mxu0 0.0
        %4005 = vmatmul.mubr.f32.gmra.mrb[0].mxu0 %v3783
        %v4006 = vpop.f32.mrb[0].mxu0
        %v4007 = vadd.f32 %v3854, %v4006
        %v4008 = vpop.f32.mrb[0].mxu0
        %v4009 = vadd.f32 %v3854, %v4008
        %4010 = vmatprep.mubr.f32.mxu0 0.0
        %4011 = vmatmul.mubr.f32.gmra.mrb[0].mxu0 %v3784
        %v4012 = vpop.f32.mrb[0].mxu0
        %v4013 = vadd.f32 %v3859, %v4012
        %v4014 = vpop.f32.mrb[0].mxu0
        %v4015 = vadd.f32 %v3859, %v4014
        %4016 = vmatprep.mubr.f32.mxu0 0.0
        %4017 = vmatmul.mubr.f32.gmra.mrb[0].mxu0 %v3785
        %v4018 = vpop.f32.mrb[0].mxu0
        %v4019 = vadd.f32 %v3864, %v4018
        %v4020 = vpop.f32.mrb[0].mxu0
        %v4021 = vadd.f32 %v3864, %v4020
        %4022 = vmatprep.mubr.f32.mxu0 0.0
        %4023 = vmatmul.mubr.f32.gmra.mrb[0].mxu0 %v3786
        %v4024 = vpop.f32.mrb[0].mxu0
        %v4025 = vadd.f32 %v3869, %v4024
        %v4026 = vpop.f32.mrb[0].mxu0
        %v4027 = vadd.f32 %v3869, %v4026
        %4028 = vmatprep.mubr.f32.mxu0 0.0
        %4029 = vmatmul.mubr.f32.gmra.mrb[0].mxu0 %v3787
        %v4030 = vpop.f32.mrb[0].mxu0
        %v4031 = vadd.f32 %v3874, %v4030
        %v4032 = vpop.f32.mrb[0].mxu0
        %v4033 = vadd.f32 %v3874, %v4032
        %4034 = vmatprep.mubr.f32.mxu0 0.0
        %4035 = vmatmul.mubr.f32.gmra.mrb[0].mxu0 %v3788
        %v4036 = vpop.f32.mrb[0].mxu0
        %v4037 = vadd.f32 %v3879, %v4036
        %v4038 = vpop.f32.mrb[0].mxu0
        %v4039 = vadd.f32 %v3879, %v4038
        %4040 = vmatprep.mubr.f32.mxu0 0.0
        %4041 = vmatmul.mubr.f32.gmra.mrb[0].mxu0 %v3789
        %v4042 = vpop.f32.mrb[0].mxu0
        %v4043 = vadd.f32 %v3884, %v4042
        %v4044 = vpop.f32.mrb[0].mxu0
        %v4045 = vadd.f32 %v3884, %v4044
        %4046 = vdwg.mxu0
        %v4047 = vtanh.pop %v3953
        %v4048 = vtanh.pop %v3955
        %v4049 = vtanh.pop %v3959
        %v4050 = vtanh.pop %v3961
        %v4051 = vtanh.pop %v3965
        %v4052 = vtanh.pop %v3967
        %v4053 = vtanh.pop %v3971
        %v4054 = vtanh.pop %v3973
        %v4055 = vtanh.pop %v3977
        %v4056 = vtanh.pop %v3979
        %v4057 = vtanh.pop %v3983
        %v4058 = vtanh.pop %v3985
        %v4059 = vtanh.pop %v3989
        %v4060 = vtanh.pop %v3991
        %v4061 = vtanh.pop %v3995
        %v4062 = vtanh.pop %v3997
        %v4063 = vtanh.pop %v4001
        %v4064 = vtanh.pop %v4003
        %v4065 = vtanh.pop %v4007
        %v4066 = vtanh.pop %v4009
        %v4067 = vtanh.pop %v4013
        %v4068 = vtanh.pop %v4015
        %v4069 = vtanh.pop %v4019
        %v4070 = vtanh.pop %v4021
        %v4071 = vtanh.pop %v4025
        %v4072 = vtanh.pop %v4027
        %v4073 = vtanh.pop %v4031
        %v4074 = vtanh.pop %v4033
        %v4075 = vtanh.pop %v4037
        %v4076 = vtanh.pop %v4039
        %v4077 = vtanh.pop %v4043
        %v4078 = vtanh.pop %v4045
        %v4079 = vld [vmem:[%s4] sm:$0xff]
        %v4080 = vld [vmem:[%s4 + $0x8] sm:$0xff]
        %v4081 = vld [vmem:[%s4 + $0x10] sm:$0xff]
        %v4082 = vld [vmem:[%s4 + $0x18] sm:$0xff]
        %v4083 = vld [vmem:[%s4 + $0x20] sm:$0xff]
        %v4084 = vld [vmem:[%s4 + $0x28] sm:$0xff]
        %v4085 = vld [vmem:[%s4 + $0x30] sm:$0xff]
        %v4086 = vld [vmem:[%s4 + $0x38] sm:$0xff]
        %v4087 = vld [vmem:[%s4 + $0x40] sm:$0xff]
        %v4088 = vld [vmem:[%s4 + $0x48] sm:$0xff]
        %v4089 = vld [vmem:[%s4 + $0x50] sm:$0xff]
        %v4090 = vld [vmem:[%s4 + $0x58] sm:$0xff]
        %v4091 = vld [vmem:[%s4 + $0x60] sm:$0xff]
        %v4092 = vld [vmem:[%s4 + $0x68] sm:$0xff]
        %v4093 = vld [vmem:[%s4 + $0x70] sm:$0xff]
        %v4094 = vld [vmem:[%s4 + $0x78] sm:$0xff]
        %v4095 = vld [vmem:[%s5] sm:$0xff]
        %v4096 = vld [vmem:[%s5 + $0x8] sm:$0xff]
        %v4097 = vld [vmem:[%s5 + $0x10] sm:$0xff]
        %v4098 = vld [vmem:[%s5 + $0x18] sm:$0xff]
        %v4099 = vld [vmem:[%s5 + $0x20] sm:$0xff]
        %v4100 = vld [vmem:[%s5 + $0x28] sm:$0xff]
        %v4101 = vld [vmem:[%s5 + $0x30] sm:$0xff]
        %v4102 = vld [vmem:[%s5 + $0x38] sm:$0xff]
        %v4103 = vld [vmem:[%s5 + $0x40] sm:$0xff]
        %v4104 = vld [vmem:[%s5 + $0x48] sm:$0xff]
        %v4105 = vld [vmem:[%s5 + $0x50] sm:$0xff]
        %v4106 = vld [vmem:[%s5 + $0x58] sm:$0xff]
        %v4107 = vld [vmem:[%s5 + $0x60] sm:$0xff]
        %v4108 = vld [vmem:[%s5 + $0x68] sm:$0xff]
        %v4109 = vld [vmem:[%s5 + $0x70] sm:$0xff]
        %v4110 = vld [vmem:[%s5 + $0x78] sm:$0xff]
        %4112 = vset.pattern.permute.xlu0 0
        %4113 = vperm.xlu0 %4112, %v4095
        %v4114 = vpop.permute.xlu0 %4113
        %4117 = vset.pattern.permute.xlu0 0
        %4118 = vperm.xlu0 %4117, %v4096
        %v4119 = vpop.permute.xlu0 %4118
        %4122 = vset.pattern.permute.xlu0 0
        %4123 = vperm.xlu0 %4122, %v4097
        %v4124 = vpop.permute.xlu0 %4123
        %4127 = vset.pattern.permute.xlu0 0
        %4128 = vperm.xlu0 %4127, %v4098
        %v4129 = vpop.permute.xlu0 %4128
        %4132 = vset.pattern.permute.xlu0 0
        %4133 = vperm.xlu0 %4132, %v4099
        %v4134 = vpop.permute.xlu0 %4133
        %4137 = vset.pattern.permute.xlu0 0
        %4138 = vperm.xlu0 %4137, %v4100
        %v4139 = vpop.permute.xlu0 %4138
        %4142 = vset.pattern.permute.xlu0 0
        %4143 = vperm.xlu0 %4142, %v4101
        %v4144 = vpop.permute.xlu0 %4143
        %4147 = vset.pattern.permute.xlu0 0
        %4148 = vperm.xlu0 %4147, %v4102
        %v4149 = vpop.permute.xlu0 %4148
        %4152 = vset.pattern.permute.xlu0 0
        %4153 = vperm.xlu0 %4152, %v4103
        %v4154 = vpop.permute.xlu0 %4153
        %4157 = vset.pattern.permute.xlu0 0
        %4158 = vperm.xlu0 %4157, %v4104
        %v4159 = vpop.permute.xlu0 %4158
        %4162 = vset.pattern.permute.xlu0 0
        %4163 = vperm.xlu0 %4162, %v4105
        %v4164 = vpop.permute.xlu0 %4163
        %4167 = vset.pattern.permute.xlu0 0
        %4168 = vperm.xlu0 %4167, %v4106
        %v4169 = vpop.permute.xlu0 %4168
        %4172 = vset.pattern.permute.xlu0 0
        %4173 = vperm.xlu0 %4172, %v4107
        %v4174 = vpop.permute.xlu0 %4173
        %4177 = vset.pattern.permute.xlu0 0
        %4178 = vperm.xlu0 %4177, %v4108
        %v4179 = vpop.permute.xlu0 %4178
        %4182 = vset.pattern.permute.xlu0 0
        %4183 = vperm.xlu0 %4182, %v4109
        %v4184 = vpop.permute.xlu0 %4183
        %4187 = vset.pattern.permute.xlu0 0
        %4188 = vperm.xlu0 %4187, %v4110
        %v4189 = vpop.permute.xlu0 %4188
        %4191 = vmatprep.subr.mxu0 %v4048
        %4192 = vmatpush1.msra.mxu0 %v4047
        %4193 = vmatprep.subr.mxu0 %v4050
        %4194 = vmatpush1.msra.mxu0 %v4049
        %4195 = vmatprep.subr.mxu0 %v4052
        %4196 = vmatpush1.msra.mxu0 %v4051
        %4197 = vmatprep.subr.mxu0 %v4054
        %4198 = vmatpush1.msra.mxu0 %v4053
        %4199 = vmatprep.subr.mxu0 %v4056
        %4200 = vmatpush1.msra.mxu0 %v4055
        %4201 = vmatprep.subr.mxu0 %v4058
        %4202 = vmatpush1.msra.mxu0 %v4057
        %4203 = vmatprep.subr.mxu0 %v4060
        %4204 = vmatpush1.msra.mxu0 %v4059
        %4205 = vmatprep.subr.mxu0 %v4062
        %4206 = vmatpush1.msra.mxu0 %v4061
        %4207 = vmatprep.subr.mxu0 %v4064
        %4208 = vmatpush1.msra.mxu0 %v4063
        %4209 = vmatprep.subr.mxu0 %v4066
        %4210 = vmatpush1.msra.mxu0 %v4065
        %4211 = vmatprep.subr.mxu0 %v4068
        %4212 = vmatpush1.msra.mxu0 %v4067
        %4213 = vmatprep.subr.mxu0 %v4070
        %4214 = vmatpush1.msra.mxu0 %v4069
        %4215 = vmatprep.subr.mxu0 %v4072
        %4216 = vmatpush1.msra.mxu0 %v4071
        %4217 = vmatprep.subr.mxu0 %v4074
        %4218 = vmatpush1.msra.mxu0 %v4073
        %4219 = vmatprep.subr.mxu0 %v4076
        %4220 = vmatpush1.msra.mxu0 %v4075
        %4221 = vmatprep.subr.mxu0 %v4078
        %4222 = vmatpush1.msra.mxu0 %v4077
        %4223 = vmatprep.subr.mxu0 0.0
        %4224 = vmatpush1.msra.mxu0 0.0
        %4225 = vmatprep.subr.mxu0 0.0
        %4226 = vmatpush1.msra.mxu0 0.0
        %4227 = vmatprep.subr.mxu0 0.0
        %4228 = vmatpush1.msra.mxu0 0.0
        %4229 = vmatprep.subr.mxu0 0.0
        %4230 = vmatpush1.msra.mxu0 0.0
        %4231 = vmatprep.subr.mxu0 0.0
        %4232 = vmatpush1.msra.mxu0 0.0
        %4233 = vmatprep.subr.mxu0 0.0
        %4234 = vmatpush1.msra.mxu0 0.0
        %4235 = vmatprep.subr.mxu0 0.0
        %4236 = vmatpush1.msra.mxu0 0.0
        %4237 = vmatprep.subr.mxu0 0.0
        %4238 = vmatpush1.msra.mxu0 0.0
        %4239 = vmatprep.subr.mxu0 0.0
        %4240 = vmatpush1.msra.mxu0 0.0
        %4241 = vmatprep.subr.mxu0 0.0
        %4242 = vmatpush1.msra.mxu0 0.0
        %4243 = vmatprep.subr.mxu0 0.0
        %4244 = vmatpush1.msra.mxu0 0.0
        %4245 = vmatprep.subr.mxu0 0.0
        %4246 = vmatpush1.msra.mxu0 0.0
        %4247 = vmatprep.subr.mxu0 0.0
        %4248 = vmatpush1.msra.mxu0 0.0
        %4249 = vmatprep.subr.mxu0 0.0
        %4250 = vmatpush1.msra.mxu0 0.0
        %4251 = vmatprep.subr.mxu0 0.0
        %4252 = vmatpush1.msra.mxu0 0.0
        %4253 = vmatprep.subr.mxu0 0.0
        %4254 = vmatpush1.msra.mxu0 0.0
        %4255 = vmatprep.mubr.f32.mxu0 0.0
        %4256 = vmatmul.mubr.f32.gmra.mrb[0].mxu0 %v4079
        %v4257 = vpop.f32.mrb[0].mxu0
        %v4258 = vadd.f32 %v4114, %v4257
        %v4259 = vpop.f32.mrb[0].mxu0
        %v4260 = vadd.f32 %v4114, %v4259
        %4261 = vmatprep.mubr.f32.mxu0 0.0
        %4262 = vmatmul.mubr.f32.gmra.mrb[0].mxu0 %v4080
        %v4263 = vpop.f32.mrb[0].mxu0
        %v4264 = vadd.f32 %v4119, %v4263
        %v4265 = vpop.f32.mrb[0].mxu0
        %v4266 = vadd.f32 %v4119, %v4265
        %4267 = vmatprep.mubr.f32.mxu0 0.0
        %4268 = vmatmul.mubr.f32.gmra.mrb[0].mxu0 %v4081
        %v4269 = vpop.f32.mrb[0].mxu0
        %v4270 = vadd.f32 %v4124, %v4269
        %v4271 = vpop.f32.mrb[0].mxu0
        %v4272 = vadd.f32 %v4124, %v4271
        %4273 = vmatprep.mubr.f32.mxu0 0.0
        %4274 = vmatmul.mubr.f32.gmra.mrb[0].mxu0 %v4082
        %v4275 = vpop.f32.mrb[0].mxu0
        %v4276 = vadd.f32 %v4129, %v4275
        %v4277 = vpop.f32.mrb[0].mxu0
        %v4278 = vadd.f32 %v4129, %v4277
        %4279 = vmatprep.mubr.f32.mxu0 0.0
        %4280 = vmatmul.mubr.f32.gmra.mrb[0].mxu0 %v4083
        %v4281 = vpop.f32.mrb[0].mxu0
        %v4282 = vadd.f32 %v4134, %v4281
        %v4283 = vpop.f32.mrb[0].mxu0
        %v4284 = vadd.f32 %v4134, %v4283
        %4285 = vmatprep.mubr.f32.mxu0 0.0
        %4286 = vmatmul.mubr.f32.gmra.mrb[0].mxu0 %v4084
        %v4287 = vpop.f32.mrb[0].mxu0
        %v4288 = vadd.f32 %v4139, %v4287
        %v4289 = vpop.f32.mrb[0].mxu0
        %v4290 = vadd.f32 %v4139, %v4289
        %4291 = vmatprep.mubr.f32.mxu0 0.0
        %4292 = vmatmul.mubr.f32.gmra.mrb[0].mxu0 %v4085
        %v4293 = vpop.f32.mrb[0].mxu0
        %v4294 = vadd.f32 %v4144, %v4293
        %v4295 = vpop.f32.mrb[0].mxu0
        %v4296 = vadd.f32 %v4144, %v4295
        %4297 = vmatprep.mubr.f32.mxu0 0.0
        %4298 = vmatmul.mubr.f32.gmra.mrb[0].mxu0 %v4086
        %v4299 = vpop.f32.mrb[0].mxu0
        %v4300 = vadd.f32 %v4149, %v4299
        %v4301 = vpop.f32.mrb[0].mxu0
        %v4302 = vadd.f32 %v4149, %v4301
        %4303 = vmatprep.mubr.f32.mxu0 0.0
        %4304 = vmatmul.mubr.f32.gmra.mrb[0].mxu0 %v4087
        %v4305 = vpop.f32.mrb[0].mxu0
        %v4306 = vadd.f32 %v4154, %v4305
        %v4307 = vpop.f32.mrb[0].mxu0
        %v4308 = vadd.f32 %v4154, %v4307
        %4309 = vmatprep.mubr.f32.mxu0 0.0
        %4310 = vmatmul.mubr.f32.gmra.mrb[0].mxu0 %v4088
        %v4311 = vpop.f32.mrb[0].mxu0
        %v4312 = vadd.f32 %v4159, %v4311
        %v4313 = vpop.f32.mrb[0].mxu0
        %v4314 = vadd.f32 %v4159, %v4313
        %4315 = vmatprep.mubr.f32.mxu0 0.0
        %4316 = vmatmul.mubr.f32.gmra.mrb[0].mxu0 %v4089
        %v4317 = vpop.f32.mrb[0].mxu0
        %v4318 = vadd.f32 %v4164, %v4317
        %v4319 = vpop.f32.mrb[0].mxu0
        %v4320 = vadd.f32 %v4164, %v4319
        %4321 = vmatprep.mubr.f32.mxu0 0.0
        %4322 = vmatmul.mubr.f32.gmra.mrb[0].mxu0 %v4090
        %v4323 = vpop.f32.mrb[0].mxu0
        %v4324 = vadd.f32 %v4169, %v4323
        %v4325 = vpop.f32.mrb[0].mxu0
        %v4326 = vadd.f32 %v4169, %v4325
        %4327 = vmatprep.mubr.f32.mxu0 0.0
        %4328 = vmatmul.mubr.f32.gmra.mrb[0].mxu0 %v4091
        %v4329 = vpop.f32.mrb[0].mxu0
        %v4330 = vadd.f32 %v4174, %v4329
        %v4331 = vpop.f32.mrb[0].mxu0
        %v4332 = vadd.f32 %v4174, %v4331
        %4333 = vmatprep.mubr.f32.mxu0 0.0
        %4334 = vmatmul.mubr.f32.gmra.mrb[0].mxu0 %v4092
        %v4335 = vpop.f32.mrb[0].mxu0
        %v4336 = vadd.f32 %v4179, %v4335
        %v4337 = vpop.f32.mrb[0].mxu0
        %v4338 = vadd.f32 %v4179, %v4337
        %4339 = vmatprep.mubr.f32.mxu0 0.0
        %4340 = vmatmul.mubr.f32.gmra.mrb[0].mxu0 %v4093
        %v4341 = vpop.f32.mrb[0].mxu0
        %v4342 = vadd.f32 %v4184, %v4341
        %v4343 = vpop.f32.mrb[0].mxu0
        %v4344 = vadd.f32 %v4184, %v4343
        %4345 = vmatprep.mubr.f32.mxu0 0.0
        %4346 = vmatmul.mubr.f32.gmra.mrb[0].mxu0 %v4094
        %v4347 = vpop.f32.mrb[0].mxu0
        %v4348 = vadd.f32 %v4189, %v4347
        %v4349 = vpop.f32.mrb[0].mxu0
        %v4350 = vadd.f32 %v4189, %v4349
        %4351 = vdwg.mxu0
        %v4352 = vtanh.pop %v4258
        %v4353 = vtanh.pop %v4260
        %v4354 = vtanh.pop %v4264
        %v4355 = vtanh.pop %v4266
        %v4356 = vtanh.pop %v4270
        %v4357 = vtanh.pop %v4272
        %v4358 = vtanh.pop %v4276
        %v4359 = vtanh.pop %v4278
        %v4360 = vtanh.pop %v4282
        %v4361 = vtanh.pop %v4284
        %v4362 = vtanh.pop %v4288
        %v4363 = vtanh.pop %v4290
        %v4364 = vtanh.pop %v4294
        %v4365 = vtanh.pop %v4296
        %v4366 = vtanh.pop %v4300
        %v4367 = vtanh.pop %v4302
        %v4368 = vtanh.pop %v4306
        %v4369 = vtanh.pop %v4308
        %v4370 = vtanh.pop %v4312
        %v4371 = vtanh.pop %v4314
        %v4372 = vtanh.pop %v4318
        %v4373 = vtanh.pop %v4320
        %v4374 = vtanh.pop %v4324
        %v4375 = vtanh.pop %v4326
        %v4376 = vtanh.pop %v4330
        %v4377 = vtanh.pop %v4332
        %v4378 = vtanh.pop %v4336
        %v4379 = vtanh.pop %v4338
        %v4380 = vtanh.pop %v4342
        %v4381 = vtanh.pop %v4344
        %v4382 = vtanh.pop %v4348
        %v4383 = vtanh.pop %v4350
        %v4384 = vld [vmem:[%s6] sm:$0x1]
        %s4385 = sld [smem:[#allocation2]]
        %v4386 = vstv %s4385
        %4387 = vmatprep.subr.mxu0 %v4353
        %4388 = vmatpush1.msra.mxu0 %v4352
        %4389 = vmatprep.subr.mxu0 %v4355
        %4390 = vmatpush1.msra.mxu0 %v4354
        %4391 = vmatprep.subr.mxu0 %v4357
        %4392 = vmatpush1.msra.mxu0 %v4356
        %4393 = vmatprep.subr.mxu0 %v4359
        %4394 = vmatpush1.msra.mxu0 %v4358
        %4395 = vmatprep.subr.mxu0 %v4361
        %4396 = vmatpush1.msra.mxu0 %v4360
        %4397 = vmatprep.subr.mxu0 %v4363
        %4398 = vmatpush1.msra.mxu0 %v4362
        %4399 = vmatprep.subr.mxu0 %v4365
        %4400 = vmatpush1.msra.mxu0 %v4364
        %4401 = vmatprep.subr.mxu0 %v4367
        %4402 = vmatpush1.msra.mxu0 %v4366
        %4403 = vmatprep.subr.mxu0 %v4369
        %4404 = vmatpush1.msra.mxu0 %v4368
        %4405 = vmatprep.subr.mxu0 %v4371
        %4406 = vmatpush1.msra.mxu0 %v4370
        %4407 = vmatprep.subr.mxu0 %v4373
        %4408 = vmatpush1.msra.mxu0 %v4372
        %4409 = vmatprep.subr.mxu0 %v4375
        %4410 = vmatpush1.msra.mxu0 %v4374
        %4411 = vmatprep.subr.mxu0 %v4377
        %4412 = vmatpush1.msra.mxu0 %v4376
        %4413 = vmatprep.subr.mxu0 %v4379
        %4414 = vmatpush1.msra.mxu0 %v4378
        %4415 = vmatprep.subr.mxu0 %v4381
        %4416 = vmatpush1.msra.mxu0 %v4380
        %4417 = vmatprep.subr.mxu0 %v4383
        %4418 = vmatpush1.msra.mxu0 %v4382
        %4419 = vmatprep.subr.mxu0 0.0
        %4420 = vmatpush1.msra.mxu0 0.0
        %4421 = vmatprep.subr.mxu0 0.0
        %4422 = vmatpush1.msra.mxu0 0.0
        %4423 = vmatprep.subr.mxu0 0.0
        %4424 = vmatpush1.msra.mxu0 0.0
        %4425 = vmatprep.subr.mxu0 0.0
        %4426 = vmatpush1.msra.mxu0 0.0
        %4427 = vmatprep.subr.mxu0 0.0
        %4428 = vmatpush1.msra.mxu0 0.0
        %4429 = vmatprep.subr.mxu0 0.0
        %4430 = vmatpush1.msra.mxu0 0.0
        %4431 = vmatprep.subr.mxu0 0.0
        %4432 = vmatpush1.msra.mxu0 0.0
        %4433 = vmatprep.subr.mxu0 0.0
        %4434 = vmatpush1.msra.mxu0 0.0
        %4435 = vmatprep.subr.mxu0 0.0
        %4436 = vmatpush1.msra.mxu0 0.0
        %4437 = vmatprep.subr.mxu0 0.0
        %4438 = vmatpush1.msra.mxu0 0.0
        %4439 = vmatprep.subr.mxu0 0.0
        %4440 = vmatpush1.msra.mxu0 0.0
        %4441 = vmatprep.subr.mxu0 0.0
        %4442 = vmatpush1.msra.mxu0 0.0
        %4443 = vmatprep.subr.mxu0 0.0
        %4444 = vmatpush1.msra.mxu0 0.0
        %4445 = vmatprep.subr.mxu0 0.0
        %4446 = vmatpush1.msra.mxu0 0.0
        %4447 = vmatprep.subr.mxu0 0.0
        %4448 = vmatpush1.msra.mxu0 0.0
        %4449 = vmatprep.subr.mxu0 0.0
        %4450 = vmatpush1.msra.mxu0 0.0
        %4451 = vmatprep.mubr.f32.mxu0 0.0
        %4452 = vmatmul.mubr.f32.gmra.mrb[0].mxu0 %v4384
        %v4453 = vpop.f32.mrb[0].mxu0
        %v4454 = vadd.f32 %v4386, %v4453
        %v4455 = vpop.f32.mrb[0].mxu0
        %v4456 = vadd.f32 %v4386, %v4455
        %4457 = vdwg.mxu0
        %v4460 = vcombine.low %v4454, %v4456
        %v4462 = vunpack.c.l.s4 1966171168
        %v4463 = vunpack.c.0.s8 %v4462
        %v4464 = vlaneseq
        %v4465 = vshrl.u32 %v4464, 7
        %v4466 = vsub.s32 %v4463, %v4465
        %v4467 = vrot.slane %v4460, %v4466
        %v4469 = vunpack.c.l.s4 1966171168
        %v4470 = vunpack.c.0.s8 %v4469
        %v4471 = vlaneseq
        %v4472 = vshrl.u32 %v4471, 7
        %v4473 = vsub.s32 %v4470, %v4472
        %v4474 = vrot.slane %v4467, %v4473
        %v4476 = vlaneseq
        %vm4477 = vcmp.ge.s32.totalorder %v4476, 0
        %vm4478 = vcmp.lt.s32.totalorder %v4476, 256
        %vm4479 = vmand %vm4477, %vm4478
        %4480 = vst.msk [vmem:[%s300] sm:$0x3] %vm4479, %v4474
        %s4481 = sand.u32 %s204, 1
        %s4482 = scalar_lea.sflag [#allocation4], %s4481
        %s4483 = sand.u32 %s204, 1
        %s4484 = smul.addr %s4483, 2
        %s4485 = scalar_lea.vmem [#allocation3], %s4484
        // Predicated region
        $region53: #{enhanced_pinn_forward.1} parent=51 // pred_check
          %p4486 = pneg %p214
        $region54: #{enhanced_pinn_forward.1} parent=51 // pred_check_branch
          %4488 = sbr.rel (%p4486) target = $region56
        $region55: #{enhanced_pinn_forward.1} parent=51 // pred_region
          %s4489 = smul.u32 2, %s23
          %s4491 = ssub.s32 32, 32
          %4492 = vsyncadd %s4482, %s4491
          %s4493 = smul.addr %s4489, 16
          %s4494 = scalar_lea.hbm %s8, %s4493
          %s4496 = sshll.u32 %s4485, 4
          %s4497 = int_to_ptr.vmem [resolvable:$true] %s4496
          %4499 = dma.vmem_to_hbm [thread:$0]  %s4497, 32, %s4494, %s4482
        $region56: #{enhanced_pinn_forward.1} parent=51 // pred_fallthru
          _
      $region52: #{enhanced_pinn_forward.1} parent=5 // pred_fallthru
        _
      %p4500 = scmp.le.s32.totalorder 2, %s18
      // Predicated region
      $region57: #{enhanced_pinn_forward.1} parent=5 // pred_check
        %p4501 = pneg %p4500
      $region58: #{enhanced_pinn_forward.1} parent=5 // pred_check_branch
        %4503 = sbr.rel (%p4501) target = $region60
      $region59: #{enhanced_pinn_forward.1} parent=5 // pred_region
        %s4504 = ssub.s32 %s18, 2
        // Predicated region
        $region61: #{enhanced_pinn_forward.1} parent=59 // pred_check
          %p4505 = pneg %p220
        $region62: #{enhanced_pinn_forward.1} parent=59 // pred_check_branch
          %4507 = sbr.rel (%p4505) target = $region64
        $region63: #{enhanced_pinn_forward.1} parent=59 // pred_region
          %s4508 = sand.u32 %s205, 1
          %s4509 = scalar_lea.sflag [#allocation4], %s4508
          %s4510 = sand.u32 %s205, 1
          %s4511 = smul.addr %s4510, 2
          %s4512 = scalar_lea.vmem [#allocation3], %s4511
          %4513 = dma.done %s4509, 32
        $region64: #{enhanced_pinn_forward.1} parent=59 // pred_fallthru
          _
      $region60: #{enhanced_pinn_forward.1} parent=5 // pred_fallthru
        _
    $region6: #{enhanced_pinn_forward.1} parent=1 // loop_footer
      %s22 = sadd.s32 1, %s18
    $region7: #{enhanced_pinn_forward.1} parent=1 // loop_footer_branch
      %17 = sbr.rel target = $region3
    $region8: #{enhanced_pinn_forward.1} parent=1 // loop_exit
      _
    %4514 = vsyncpa [#allocation4], 1
    %s4515 = scalar_lea.sflag [#allocation4], 1
    %4516 = vsyncpa %s4515, 1

</llo_original>
